<compile_context>
chip_gen: v5e
topology: v5e:2x2
jax: 0.10.0
libtpu: 0.0.40
codegen_flags: <defaults>
</compile_context>

<pallas_src>
import jax
import jax.numpy as jnp
import numpy as np
from jax.experimental import pallas as pl
from jax.experimental.pallas import tpu as pltpu

EPS = 1e-5


def _bn_conv_bn_kernel(x_ref, g1_ref, w_ref, g2_ref, b2_ref, o_ref):
    # x_ref : (Cin, R)   full activation slab (channels on sublanes, spatial on lanes)
    # g1    : (Cin, 1)   BN1 gamma
    # w_ref : (TC, Cin)  Cout-tile of the 1x1 conv weight
    # g2/b2 : (TC, 1)    BN2 gamma / beta tile
    # o_ref : (TC, R)    output tile
    x = x_ref[...]
    r = x.shape[1]
    inv_r = 1.0 / r

    # ---- BN1 stats: two-pass variance (lane reductions on the XLU; the
    # centered xc is needed below anyway, so this adds no extra pass). ----
    mean1 = jnp.sum(x, axis=1, keepdims=True) * inv_r        # (Cin, 1)
    xc = x - mean1                                           # (Cin, R)
    var1 = jnp.sum(xc * xc, axis=1, keepdims=True) * inv_r   # biased variance
    s1 = g1_ref[...] * jax.lax.rsqrt(var1 + EPS)             # (Cin, 1)

    # beta1 is omitted: its contribution to the conv output is a per-output-
    # channel constant that BN2's batch-mean subtraction cancels exactly, so
    # the matmul output below is already zero-mean per output channel.
    xcs = xc * s1                                            # (Cin, R)

    # ---- 1x1 conv tile == matmul on the MXU (f32, matches PyTorch conv) ----
    yc = jnp.dot(w_ref[...], xcs, preferred_element_type=jnp.float32)  # (TC, R)

    # ---- BN2: mean2 == 0 analytically (yc built from zero-mean xcs), so the
    # single E[yc^2] sweep is cancellation-free. ----
    var2 = jnp.sum(yc * yc, axis=1, keepdims=True) * inv_r             # (TC, 1)
    s2 = g2_ref[...] * jax.lax.rsqrt(var2 + EPS)
    o_ref[...] = (yc * s2 + b2_ref[...]).astype(o_ref.dtype)


def _grid_steps_for_device():
    """One grid step per TensorCore: 1 on v5e/v6e, 2 on dual-TC chips."""
    try:
        kind = jax.devices()[0].device_kind.lower()
    except Exception:
        return 1
    single_tc = ("lite" in kind) or ("v5e" in kind) or ("v6" in kind)
    dual_tc = ("v7" in kind) or ("v4" in kind) or ("v3" in kind) or ("v5p" in kind)
    return 2 if (dual_tc and not single_tc) else 1


def bn_conv_bn(x_nchw, gamma1, beta1, w_oihw, gamma2, beta2, *, tile_cout=None):
    """x_nchw: (N, Cin, H, W) f32. Returns (N, Cout, H, W) f32 (training-mode BN)."""
    del beta1  # cancels exactly under BN2's mean subtraction (see kernel note)
    n, cin, h, w = x_nchw.shape
    cout = w_oihw.shape[0]
    r = n * h * w

    # NCHW -> (Cin, R). For N=1 this is a pure reshape (no data movement).
    if n == 1:
        x2d = x_nchw.reshape(cin, r)
    else:
        x2d = jnp.moveaxis(x_nchw, 1, 0).reshape(cin, r)

    # OIHW 1x1 weight -> (Cout, Cin) directly (no transpose needed).
    w2d = w_oihw.reshape(cout, cin)

    g1 = gamma1.reshape(cin, 1)
    g2 = gamma2.reshape(cout, 1)
    b2 = beta2.reshape(cout, 1)

    if tile_cout is None:
        steps = _grid_steps_for_device()
        tile_cout = cout // steps if cout % steps == 0 else cout
    tc = tile_cout if (cout % tile_cout == 0 and tile_cout % 8 == 0) else cout
    grid = (cout // tc,)

    cost = pl.CostEstimate(
        flops=2 * r * cin * cout,
        transcendentals=cin * grid[0] + cout,             # rsqrt per channel
        bytes_accessed=4 * (cin * r + cout * cin + cout * r + cin + 2 * cout),
    )

    out2d = pl.pallas_call(
        _bn_conv_bn_kernel,
        out_shape=jax.ShapeDtypeStruct((cout, r), jnp.float32),
        grid=grid,
        in_specs=[
            pl.BlockSpec((cin, r), lambda i: (0, 0)),      # x: resident across steps
            pl.BlockSpec((cin, 1), lambda i: (0, 0)),      # gamma1
            pl.BlockSpec((tc, cin), lambda i: (i, 0)),     # weight tile
            pl.BlockSpec((tc, 1), lambda i: (i, 0)),       # gamma2 tile
            pl.BlockSpec((tc, 1), lambda i: (i, 0)),       # beta2 tile
        ],
        out_specs=pl.BlockSpec((tc, r), lambda i: (i, 0)),
        compiler_params=pltpu.CompilerParams(
            dimension_semantics=("parallel",)),
        cost_estimate=cost,
    )(x2d, g1, w2d, g2, b2)

    # (Cout, R) -> NCHW
    if n == 1:
        return out2d.reshape(1, cout, h, w)
    return jnp.moveaxis(out2d.reshape(cout, n, h, w), 0, 1)


def _reference(x_nchw, gamma1, beta1, w_oihw, gamma2, beta2):
    """Pure-JAX reference matching PyTorch training-mode forward."""
    def bn(x, g, b):
        mean = jnp.mean(x, axis=(0, 2, 3), keepdims=True)
        var = jnp.mean((x - mean) ** 2, axis=(0, 2, 3), keepdims=True)
        return (x - mean) / jnp.sqrt(var + EPS) * g.reshape(1, -1, 1, 1) \
            + b.reshape(1, -1, 1, 1)

    x1 = bn(x_nchw, gamma1, beta1)
    y = jax.lax.conv_general_dilated(
        x1, w_oihw, window_strides=(1, 1), padding="VALID",
        dimension_numbers=("NCHW", "OIHW", "NCHW"),
        precision=jax.lax.Precision.HIGHEST)
    return bn(y, gamma2, beta2)


if __name__ == "__main__":
    key = jax.random.PRNGKey(0)
    k_x, k_w, k_g1, k_b1, k_g2, k_b2 = jax.random.split(key, 6)

    N, CIN, H, W = 1, 112, 14, 14
    COUT = 672

    x = jax.random.normal(k_x, (N, CIN, H, W), dtype=jnp.float32)
    conv_w = jax.random.normal(k_w, (COUT, CIN, 1, 1), dtype=jnp.float32) * 0.05
    gamma1 = 1.0 + 0.1 * jax.random.normal(k_g1, (CIN,), dtype=jnp.float32)
    beta1 = 0.1 * jax.random.normal(k_b1, (CIN,), dtype=jnp.float32)
    gamma2 = 1.0 + 0.1 * jax.random.normal(k_g2, (COUT,), dtype=jnp.float32)
    beta2 = 0.1 * jax.random.normal(k_b2, (COUT,), dtype=jnp.float32)

    out = bn_conv_bn(x, gamma1, beta1, conv_w, gamma2, beta2)
    out = jax.block_until_ready(out)

    ref = _reference(x, gamma1, beta1, conv_w, gamma2, beta2)
    np.testing.assert_allclose(np.asarray(out), np.asarray(ref),
                               rtol=1e-4, atol=1e-4)

    # TODO(synk): BatchNorm running_mean/running_var buffer updates (training
    # side-effect) are not produced; only the forward tensor is computed.
    print("KERNEL_OK")
</pallas_src>

<mosaic_0001>
module attributes {stable_mosaic.version = 11 : i64} {
  func.func @_bn_conv_bn_kernel(%arg0: i32, %arg1: memref<112x196xf32, #tpu.memory_space<vmem>>, %arg2: memref<112x1xf32, #tpu.memory_space<vmem>>, %arg3: memref<672x112xf32, #tpu.memory_space<vmem>>, %arg4: memref<672x1xf32, #tpu.memory_space<vmem>>, %arg5: memref<672x1xf32, #tpu.memory_space<vmem>>, %arg6: memref<672x196xf32, #tpu.memory_space<vmem>>) attributes {dimension_semantics = [#tpu.dimension_semantics<parallel>], iteration_bounds = array<i64: 1>, scalar_prefetch = 0 : i64, scratch_operands = 0 : i64, tpu.core_type = #tpu.core_type<tc>, window_params = [{pipeline_mode = #tpu.pipeline_mode<synchronous>, transform_indices = @transform_0, window_bounds = array<i64: 112, 196>}, {pipeline_mode = #tpu.pipeline_mode<synchronous>, transform_indices = @transform_1, window_bounds = array<i64: 112, 1>}, {transform_indices = @transform_2, window_bounds = array<i64: 672, 112>}, {transform_indices = @transform_3, window_bounds = array<i64: 672, 1>}, {transform_indices = @transform_4, window_bounds = array<i64: 672, 1>}, {transform_indices = @transform_5, window_bounds = array<i64: 672, 196>}]} {
    %c0 = arith.constant 0 : index
    %c0_0 = arith.constant 0 : index
    %0 = vector.load %arg1[%c0, %c0_0] : memref<112x196xf32, #tpu.memory_space<vmem>>, vector<112x196xf32>
    %cst = arith.constant dense<0.000000e+00> : vector<112xf32>
    %1 = vector.multi_reduction <add>, %0, %cst [1] : vector<112x196xf32> to vector<112xf32>
    %2 = vector.shape_cast %1 : vector<112xf32> to vector<112x1xf32>
    %cst_1 = arith.constant 0.00510204071 : f32
    %3 = vector.broadcast %cst_1 : f32 to vector<112x1xf32>
    %4 = arith.mulf %2, %3 : vector<112x1xf32>
    %5 = vector.broadcast %4 : vector<112x1xf32> to vector<112x196xf32>
    %6 = arith.subf %0, %5 : vector<112x196xf32>
    %7 = arith.mulf %6, %6 : vector<112x196xf32>
    %cst_2 = arith.constant dense<0.000000e+00> : vector<112xf32>
    %8 = vector.multi_reduction <add>, %7, %cst_2 [1] : vector<112x196xf32> to vector<112xf32>
    %9 = vector.shape_cast %8 : vector<112xf32> to vector<112x1xf32>
    %cst_3 = arith.constant 0.00510204071 : f32
    %10 = vector.broadcast %cst_3 : f32 to vector<112x1xf32>
    %11 = arith.mulf %9, %10 : vector<112x1xf32>
    %c0_4 = arith.constant 0 : index
    %c0_5 = arith.constant 0 : index
    %12 = vector.load %arg2[%c0_4, %c0_5] : memref<112x1xf32, #tpu.memory_space<vmem>>, vector<112x1xf32>
    %cst_6 = arith.constant 9.99999974E-6 : f32
    %13 = vector.broadcast %cst_6 : f32 to vector<112x1xf32>
    %14 = arith.addf %11, %13 : vector<112x1xf32>
    %15 = math.rsqrt %14 : vector<112x1xf32>
    %16 = arith.mulf %12, %15 : vector<112x1xf32>
    %17 = vector.broadcast %16 : vector<112x1xf32> to vector<112x196xf32>
    %18 = arith.mulf %6, %17 : vector<112x196xf32>
    %c0_7 = arith.constant 0 : index
    %c0_8 = arith.constant 0 : index
    %19 = vector.load %arg3[%c0_7, %c0_8] : memref<672x112xf32, #tpu.memory_space<vmem>>, vector<672x112xf32>
    %cst_9 = arith.constant dense<0.000000e+00> : vector<672x196xf32>
    %20 = tpu.matmul %19, %18, %cst_9 {dimension_numbers = #tpu.dot_dimension_numbers<[1], [0], [0], [1], [0, 0, 1, 1], [], []>} : vector<672x112xf32>, vector<112x196xf32>, vector<672x196xf32> -> vector<672x196xf32>
    %21 = arith.mulf %20, %20 : vector<672x196xf32>
    %cst_10 = arith.constant dense<0.000000e+00> : vector<672xf32>
    %22 = vector.multi_reduction <add>, %21, %cst_10 [1] : vector<672x196xf32> to vector<672xf32>
    %23 = vector.shape_cast %22 : vector<672xf32> to vector<672x1xf32>
    %cst_11 = arith.constant 0.00510204071 : f32
    %24 = vector.broadcast %cst_11 : f32 to vector<672x1xf32>
    %25 = arith.mulf %23, %24 : vector<672x1xf32>
    %c0_12 = arith.constant 0 : index
    %c0_13 = arith.constant 0 : index
    %26 = vector.load %arg4[%c0_12, %c0_13] : memref<672x1xf32, #tpu.memory_space<vmem>>, vector<672x1xf32>
    %cst_14 = arith.constant 9.99999974E-6 : f32
    %27 = vector.broadcast %cst_14 : f32 to vector<672x1xf32>
    %28 = arith.addf %25, %27 : vector<672x1xf32>
    %29 = math.rsqrt %28 : vector<672x1xf32>
    %30 = arith.mulf %26, %29 : vector<672x1xf32>
    %31 = vector.broadcast %30 : vector<672x1xf32> to vector<672x196xf32>
    %32 = arith.mulf %20, %31 : vector<672x196xf32>
    %c0_15 = arith.constant 0 : index
    %c0_16 = arith.constant 0 : index
    %33 = vector.load %arg5[%c0_15, %c0_16] : memref<672x1xf32, #tpu.memory_space<vmem>>, vector<672x1xf32>
    %34 = vector.broadcast %33 : vector<672x1xf32> to vector<672x196xf32>
    %35 = arith.addf %32, %34 : vector<672x196xf32>
    %c0_17 = arith.constant 0 : index
    %c0_18 = arith.constant 0 : index
    %36 = vector.load %arg6[%c0_17, %c0_18] : memref<672x196xf32, #tpu.memory_space<vmem>>, vector<672x196xf32>
    tpu.vector_store %arg6[%c0_17, %c0_18], %35 {strides = array<i32>} : memref<672x196xf32, #tpu.memory_space<vmem>>, vector<672x196xf32>,
    return
  }
  func.func @transform_0(%arg0: i32) -> (i32, i32) {
    %c0_i32 = arith.constant 0 : i32
    %c0_i32_0 = arith.constant 0 : i32
    %c0_i32_1 = arith.constant 0 : i32
    return %c0_i32, %c0_i32_0 : i32, i32
  }
  func.func @transform_1(%arg0: i32) -> (i32, i32) {
    %c0_i32 = arith.constant 0 : i32
    %c0_i32_0 = arith.constant 0 : i32
    %c0_i32_1 = arith.constant 0 : i32
    return %c0_i32, %c0_i32_0 : i32, i32
  }
  func.func @transform_2(%arg0: i32) -> (i32, i32) {
    %c0_i32 = arith.constant 0 : i32
    %c0_i32_0 = arith.constant 0 : i32
    return %arg0, %c0_i32 : i32, i32
  }
  func.func @transform_3(%arg0: i32) -> (i32, i32) {
    %c0_i32 = arith.constant 0 : i32
    %c0_i32_0 = arith.constant 0 : i32
    return %arg0, %c0_i32 : i32, i32
  }
  func.func @transform_4(%arg0: i32) -> (i32, i32) {
    %c0_i32 = arith.constant 0 : i32
    %c0_i32_0 = arith.constant 0 : i32
    return %arg0, %c0_i32 : i32, i32
  }
  func.func @transform_5(%arg0: i32) -> (i32, i32) {
    %c0_i32 = arith.constant 0 : i32
    %c0_i32_0 = arith.constant 0 : i32
    return %arg0, %c0_i32 : i32, i32
  }
}

</mosaic_0001>

<llo_original>
// kernel: tpu_custom_call.1
$region0: #{tpu_custom_call.1}
  #allocation0 [shape = 'u32[]', space=smem, size = 0x4, offset = 0x4, fixed_abs, tag = 'smem constant byte address 0x4 - core index']
  #allocation1 [shape = 'u32[72,128]{1,0:T(1,128)}', space=vmem, size = 0x9000, scoped, tag = 'internal scratch']
  %s0 = inlined_call_operand.vmem [shape: f32[112,196], index: 0, kind: input, shape index: {}]
  %s1 = inlined_call_operand.vmem [shape: f32[112,1], index: 1, kind: input, shape index: {}]
  %s2 = inlined_call_operand.vmem [shape: f32[672,112], index: 2, kind: input, shape index: {}]
  %s3 = inlined_call_operand.vmem [shape: f32[672,1], index: 3, kind: input, shape index: {}]
  %s4 = inlined_call_operand.vmem [shape: f32[672,1], index: 4, kind: input, shape index: {}]
  %s5 = inlined_call_operand.vmem [shape: f32[672,196], index: 5, kind: output, shape index: {}]
  %s6 = sld [smem:[#allocation0]]
  $region30: #{tpu_custom_call.1} parent=0
    _
  %s8 = ssub.s32 1, %s6
  %s9 = scalar_select 0, %s8, %s6
  // Predicated region
  $region2: #{tpu_custom_call.1} parent=0 // pred_check
    _
  $region3: #{tpu_custom_call.1} parent=0 // pred_check_branch
    %11 = sbr.rel (0) target = $region5
  $region4: #{tpu_custom_call.1} parent=0 // pred_region
    _
  $region5: #{tpu_custom_call.1} parent=0 // pred_fallthru
    _
  // Predicated region
  $region6: #{tpu_custom_call.1} parent=0 // pred_check
    _
  $region7: #{tpu_custom_call.1} parent=0 // pred_check_branch
    %13 = sbr.rel (0) target = $region9
  $region8: #{tpu_custom_call.1} parent=0 // pred_region
    _
  $region9: #{tpu_custom_call.1} parent=0 // pred_fallthru
    _
  // Predicated region
  $region10: #{tpu_custom_call.1} parent=0 // pred_check
    _
  $region11: #{tpu_custom_call.1} parent=0 // pred_check_branch
    %15 = sbr.rel (0) target = $region13
  $region12: #{tpu_custom_call.1} parent=0 // pred_region
    _
  $region13: #{tpu_custom_call.1} parent=0 // pred_fallthru
    _
  // Predicated region
  $region14: #{tpu_custom_call.1} parent=0 // pred_check
    _
  $region15: #{tpu_custom_call.1} parent=0 // pred_check_branch
    %17 = sbr.rel (0) target = $region17
  $region16: #{tpu_custom_call.1} parent=0 // pred_region
    _
  $region17: #{tpu_custom_call.1} parent=0 // pred_fallthru
    _
  // Predicated region
  $region18: #{tpu_custom_call.1} parent=0 // pred_check
    _
  $region19: #{tpu_custom_call.1} parent=0 // pred_check_branch
    %19 = sbr.rel (0) target = $region21
  $region20: #{tpu_custom_call.1} parent=0 // pred_region
    _
  $region21: #{tpu_custom_call.1} parent=0 // pred_fallthru
    _
  %v20 = vld [vmem:[%s0] sm:$0xff]
  %v21 = vld [vmem:[%s0 + $0x8] sm:$0xff]
  %v22 = vld [vmem:[%s0 + $0x10] sm:$0xff]
  %v23 = vld [vmem:[%s0 + $0x18] sm:$0xff]
  %v24 = vld [vmem:[%s0 + $0x20] sm:$0xff]
  %v25 = vld [vmem:[%s0 + $0x28] sm:$0xff]
  %v26 = vld [vmem:[%s0 + $0x30] sm:$0xff]
  %v27 = vld [vmem:[%s0 + $0x38] sm:$0xff]
  %v28 = vld [vmem:[%s0 + $0x40] sm:$0xff]
  %v29 = vld [vmem:[%s0 + $0x48] sm:$0xff]
  %v30 = vld [vmem:[%s0 + $0x50] sm:$0xff]
  %v31 = vld [vmem:[%s0 + $0x58] sm:$0xff]
  %v32 = vld [vmem:[%s0 + $0x60] sm:$0xff]
  %v33 = vld [vmem:[%s0 + $0x68] sm:$0xff]
  %v34 = vld [vmem:[%s0 + $0x70] sm:$0xff]
  %v35 = vld [vmem:[%s0 + $0x78] sm:$0xff]
  %v36 = vld [vmem:[%s0 + $0x80] sm:$0xff]
  %v37 = vld [vmem:[%s0 + $0x88] sm:$0xff]
  %v38 = vld [vmem:[%s0 + $0x90] sm:$0xff]
  %v39 = vld [vmem:[%s0 + $0x98] sm:$0xff]
  %v40 = vld [vmem:[%s0 + $0xa0] sm:$0xff]
  %v41 = vld [vmem:[%s0 + $0xa8] sm:$0xff]
  %v42 = vld [vmem:[%s0 + $0xb0] sm:$0xff]
  %v43 = vld [vmem:[%s0 + $0xb8] sm:$0xff]
  %v44 = vld [vmem:[%s0 + $0xc0] sm:$0xff]
  %v45 = vld [vmem:[%s0 + $0xc8] sm:$0xff]
  %v46 = vld [vmem:[%s0 + $0xd0] sm:$0xff]
  %v47 = vld [vmem:[%s0 + $0xd8] sm:$0xff]
  %vm48 = vcmask 556032
  %v49 = vsel %vm48, %v21, 0.0
  %v50 = vadd.f32 %v20, %v49
  %51 = vadd.xlane.f32.xlu0 %v50
  %v52 = vpop.xlane.xlu0 %51
  %v53 = vsel %vm48, %v23, 0.0
  %v54 = vadd.f32 %v22, %v53
  %55 = vadd.xlane.f32.xlu0 %v54
  %v56 = vpop.xlane.xlu0 %55
  %v57 = vsel %vm48, %v25, 0.0
  %v58 = vadd.f32 %v24, %v57
  %59 = vadd.xlane.f32.xlu0 %v58
  %v60 = vpop.xlane.xlu0 %59
  %v61 = vsel %vm48, %v27, 0.0
  %v62 = vadd.f32 %v26, %v61
  %63 = vadd.xlane.f32.xlu0 %v62
  %v64 = vpop.xlane.xlu0 %63
  %v65 = vsel %vm48, %v29, 0.0
  %v66 = vadd.f32 %v28, %v65
  %67 = vadd.xlane.f32.xlu0 %v66
  %v68 = vpop.xlane.xlu0 %67
  %v69 = vsel %vm48, %v31, 0.0
  %v70 = vadd.f32 %v30, %v69
  %71 = vadd.xlane.f32.xlu0 %v70
  %v72 = vpop.xlane.xlu0 %71
  %v73 = vsel %vm48, %v33, 0.0
  %v74 = vadd.f32 %v32, %v73
  %75 = vadd.xlane.f32.xlu0 %v74
  %v76 = vpop.xlane.xlu0 %75
  %v77 = vsel %vm48, %v35, 0.0
  %v78 = vadd.f32 %v34, %v77
  %79 = vadd.xlane.f32.xlu0 %v78
  %v80 = vpop.xlane.xlu0 %79
  %v81 = vsel %vm48, %v37, 0.0
  %v82 = vadd.f32 %v36, %v81
  %83 = vadd.xlane.f32.xlu0 %v82
  %v84 = vpop.xlane.xlu0 %83
  %v85 = vsel %vm48, %v39, 0.0
  %v86 = vadd.f32 %v38, %v85
  %87 = vadd.xlane.f32.xlu0 %v86
  %v88 = vpop.xlane.xlu0 %87
  %v89 = vsel %vm48, %v41, 0.0
  %v90 = vadd.f32 %v40, %v89
  %91 = vadd.xlane.f32.xlu0 %v90
  %v92 = vpop.xlane.xlu0 %91
  %v93 = vsel %vm48, %v43, 0.0
  %v94 = vadd.f32 %v42, %v93
  %95 = vadd.xlane.f32.xlu0 %v94
  %v96 = vpop.xlane.xlu0 %95
  %v97 = vsel %vm48, %v45, 0.0
  %v98 = vadd.f32 %v44, %v97
  %99 = vadd.xlane.f32.xlu0 %v98
  %v100 = vpop.xlane.xlu0 %99
  %v101 = vsel %vm48, %v47, 0.0
  %v102 = vadd.f32 %v46, %v101
  %103 = vadd.xlane.f32.xlu0 %v102
  %v104 = vpop.xlane.xlu0 %103
  %v105 = vmul.f32 %v52, 0.0051020407
  %v106 = vmul.f32 %v56, 0.0051020407
  %v107 = vmul.f32 %v60, 0.0051020407
  %v108 = vmul.f32 %v64, 0.0051020407
  %v109 = vmul.f32 %v68, 0.0051020407
  %v110 = vmul.f32 %v72, 0.0051020407
  %v111 = vmul.f32 %v76, 0.0051020407
  %v112 = vmul.f32 %v80, 0.0051020407
  %v113 = vmul.f32 %v84, 0.0051020407
  %v114 = vmul.f32 %v88, 0.0051020407
  %v115 = vmul.f32 %v92, 0.0051020407
  %v116 = vmul.f32 %v96, 0.0051020407
  %v117 = vmul.f32 %v100, 0.0051020407
  %v118 = vmul.f32 %v104, 0.0051020407
  %v119 = vsub.f32 %v20, %v105
  %v120 = vsub.f32 %v21, %v105
  %v121 = vsub.f32 %v22, %v106
  %v122 = vsub.f32 %v23, %v106
  %v123 = vsub.f32 %v24, %v107
  %v124 = vsub.f32 %v25, %v107
  %v125 = vsub.f32 %v26, %v108
  %v126 = vsub.f32 %v27, %v108
  %v127 = vsub.f32 %v28, %v109
  %v128 = vsub.f32 %v29, %v109
  %v129 = vsub.f32 %v30, %v110
  %v130 = vsub.f32 %v31, %v110
  %v131 = vsub.f32 %v32, %v111
  %v132 = vsub.f32 %v33, %v111
  %v133 = vsub.f32 %v34, %v112
  %v134 = vsub.f32 %v35, %v112
  %v135 = vsub.f32 %v36, %v113
  %v136 = vsub.f32 %v37, %v113
  %v137 = vsub.f32 %v38, %v114
  %v138 = vsub.f32 %v39, %v114
  %v139 = vsub.f32 %v40, %v115
  %v140 = vsub.f32 %v41, %v115
  %v141 = vsub.f32 %v42, %v116
  %v142 = vsub.f32 %v43, %v116
  %v143 = vsub.f32 %v44, %v117
  %v144 = vsub.f32 %v45, %v117
  %v145 = vsub.f32 %v46, %v118
  %v146 = vsub.f32 %v47, %v118
  %v147 = vmul.f32 %v119, %v119
  %v148 = vmul.f32 %v120, %v120
  %v149 = vmul.f32 %v121, %v121
  %v150 = vmul.f32 %v122, %v122
  %v151 = vmul.f32 %v123, %v123
  %v152 = vmul.f32 %v124, %v124
  %v153 = vmul.f32 %v125, %v125
  %v154 = vmul.f32 %v126, %v126
  %v155 = vmul.f32 %v127, %v127
  %v156 = vmul.f32 %v128, %v128
  %v157 = vmul.f32 %v129, %v129
  %v158 = vmul.f32 %v130, %v130
  %v159 = vmul.f32 %v131, %v131
  %v160 = vmul.f32 %v132, %v132
  %v161 = vmul.f32 %v133, %v133
  %v162 = vmul.f32 %v134, %v134
  %v163 = vmul.f32 %v135, %v135
  %v164 = vmul.f32 %v136, %v136
  %v165 = vmul.f32 %v137, %v137
  %v166 = vmul.f32 %v138, %v138
  %v167 = vmul.f32 %v139, %v139
  %v168 = vmul.f32 %v140, %v140
  %v169 = vmul.f32 %v141, %v141
  %v170 = vmul.f32 %v142, %v142
  %v171 = vmul.f32 %v143, %v143
  %v172 = vmul.f32 %v144, %v144
  %v173 = vmul.f32 %v145, %v145
  %v174 = vmul.f32 %v146, %v146
  %v175 = vsel %vm48, %v148, 0.0
  %v176 = vadd.f32 %v147, %v175
  %177 = vadd.xlane.f32.xlu0 %v176
  %v178 = vpop.xlane.xlu0 %177
  %v179 = vsel %vm48, %v150, 0.0
  %v180 = vadd.f32 %v149, %v179
  %181 = vadd.xlane.f32.xlu0 %v180
  %v182 = vpop.xlane.xlu0 %181
  %v183 = vsel %vm48, %v152, 0.0
  %v184 = vadd.f32 %v151, %v183
  %185 = vadd.xlane.f32.xlu0 %v184
  %v186 = vpop.xlane.xlu0 %185
  %v187 = vsel %vm48, %v154, 0.0
  %v188 = vadd.f32 %v153, %v187
  %189 = vadd.xlane.f32.xlu0 %v188
  %v190 = vpop.xlane.xlu0 %189
  %v191 = vsel %vm48, %v156, 0.0
  %v192 = vadd.f32 %v155, %v191
  %193 = vadd.xlane.f32.xlu0 %v192
  %v194 = vpop.xlane.xlu0 %193
  %v195 = vsel %vm48, %v158, 0.0
  %v196 = vadd.f32 %v157, %v195
  %197 = vadd.xlane.f32.xlu0 %v196
  %v198 = vpop.xlane.xlu0 %197
  %v199 = vsel %vm48, %v160, 0.0
  %v200 = vadd.f32 %v159, %v199
  %201 = vadd.xlane.f32.xlu0 %v200
  %v202 = vpop.xlane.xlu0 %201
  %v203 = vsel %vm48, %v162, 0.0
  %v204 = vadd.f32 %v161, %v203
  %205 = vadd.xlane.f32.xlu0 %v204
  %v206 = vpop.xlane.xlu0 %205
  %v207 = vsel %vm48, %v164, 0.0
  %v208 = vadd.f32 %v163, %v207
  %209 = vadd.xlane.f32.xlu0 %v208
  %v210 = vpop.xlane.xlu0 %209
  %v211 = vsel %vm48, %v166, 0.0
  %v212 = vadd.f32 %v165, %v211
  %213 = vadd.xlane.f32.xlu0 %v212
  %v214 = vpop.xlane.xlu0 %213
  %v215 = vsel %vm48, %v168, 0.0
  %v216 = vadd.f32 %v167, %v215
  %217 = vadd.xlane.f32.xlu0 %v216
  %v218 = vpop.xlane.xlu0 %217
  %v219 = vsel %vm48, %v170, 0.0
  %v220 = vadd.f32 %v169, %v219
  %221 = vadd.xlane.f32.xlu0 %v220
  %v222 = vpop.xlane.xlu0 %221
  %v223 = vsel %vm48, %v172, 0.0
  %v224 = vadd.f32 %v171, %v223
  %225 = vadd.xlane.f32.xlu0 %v224
  %v226 = vpop.xlane.xlu0 %225
  %v227 = vsel %vm48, %v174, 0.0
  %v228 = vadd.f32 %v173, %v227
  %229 = vadd.xlane.f32.xlu0 %v228
  %v230 = vpop.xlane.xlu0 %229
  %v231 = vmul.f32 %v178, 0.0051020407
  %v232 = vmul.f32 %v182, 0.0051020407
  %v233 = vmul.f32 %v186, 0.0051020407
  %v234 = vmul.f32 %v190, 0.0051020407
  %v235 = vmul.f32 %v194, 0.0051020407
  %v236 = vmul.f32 %v198, 0.0051020407
  %v237 = vmul.f32 %v202, 0.0051020407
  %v238 = vmul.f32 %v206, 0.0051020407
  %v239 = vmul.f32 %v210, 0.0051020407
  %v240 = vmul.f32 %v214, 0.0051020407
  %v241 = vmul.f32 %v218, 0.0051020407
  %v242 = vmul.f32 %v222, 0.0051020407
  %v243 = vmul.f32 %v226, 0.0051020407
  %v244 = vmul.f32 %v230, 0.0051020407
  %v245 = vld [vmem:[%s1] sm:$0xff]
  %v246 = vld [vmem:[%s1 + $0x8] sm:$0xff]
  %v247 = vld [vmem:[%s1 + $0x10] sm:$0xff]
  %v248 = vld [vmem:[%s1 + $0x18] sm:$0xff]
  %v249 = vld [vmem:[%s1 + $0x20] sm:$0xff]
  %v250 = vld [vmem:[%s1 + $0x28] sm:$0xff]
  %v251 = vld [vmem:[%s1 + $0x30] sm:$0xff]
  %v252 = vld [vmem:[%s1 + $0x38] sm:$0xff]
  %v253 = vld [vmem:[%s1 + $0x40] sm:$0xff]
  %v254 = vld [vmem:[%s1 + $0x48] sm:$0xff]
  %v255 = vld [vmem:[%s1 + $0x50] sm:$0xff]
  %v256 = vld [vmem:[%s1 + $0x58] sm:$0xff]
  %v257 = vld [vmem:[%s1 + $0x60] sm:$0xff]
  %v258 = vld [vmem:[%s1 + $0x68] sm:$0xff]
  %v259 = vadd.f32 %v231, 1e-05
  %v260 = vadd.f32 %v232, 1e-05
  %v261 = vadd.f32 %v233, 1e-05
  %v262 = vadd.f32 %v234, 1e-05
  %v263 = vadd.f32 %v235, 1e-05
  %v264 = vadd.f32 %v236, 1e-05
  %v265 = vadd.f32 %v237, 1e-05
  %v266 = vadd.f32 %v238, 1e-05
  %v267 = vadd.f32 %v239, 1e-05
  %v268 = vadd.f32 %v240, 1e-05
  %v269 = vadd.f32 %v241, 1e-05
  %v270 = vadd.f32 %v242, 1e-05
  %v271 = vadd.f32 %v243, 1e-05
  %v272 = vadd.f32 %v244, 1e-05
  %v273 = vrsqrt.pop %v259
  %v274 = vmul.f32 %v273, %v259
  %v275 = vmul.f32 %v274, %v273
  %v276 = vmul.f32 0.5, %v275
  %v277 = vsub.f32 1.5, %v276
  %v278 = vmul.f32 %v273, %v277
  %vm279 = vweird.f32 %v259
  %vm280 = vweird.f32 %v273
  %vm281 = vmor %vm279, %vm280
  %v282 = vsel %vm281, %v273, %v278
  %v283 = vrsqrt.pop %v260
  %v284 = vmul.f32 %v283, %v260
  %v285 = vmul.f32 %v284, %v283
  %v286 = vmul.f32 0.5, %v285
  %v287 = vsub.f32 1.5, %v286
  %v288 = vmul.f32 %v283, %v287
  %vm289 = vweird.f32 %v260
  %vm290 = vweird.f32 %v283
  %vm291 = vmor %vm289, %vm290
  %v292 = vsel %vm291, %v283, %v288
  %v293 = vrsqrt.pop %v261
  %v294 = vmul.f32 %v293, %v261
  %v295 = vmul.f32 %v294, %v293
  %v296 = vmul.f32 0.5, %v295
  %v297 = vsub.f32 1.5, %v296
  %v298 = vmul.f32 %v293, %v297
  %vm299 = vweird.f32 %v261
  %vm300 = vweird.f32 %v293
  %vm301 = vmor %vm299, %vm300
  %v302 = vsel %vm301, %v293, %v298
  %v303 = vrsqrt.pop %v262
  %v304 = vmul.f32 %v303, %v262
  %v305 = vmul.f32 %v304, %v303
  %v306 = vmul.f32 0.5, %v305
  %v307 = vsub.f32 1.5, %v306
  %v308 = vmul.f32 %v303, %v307
  %vm309 = vweird.f32 %v262
  %vm310 = vweird.f32 %v303
  %vm311 = vmor %vm309, %vm310
  %v312 = vsel %vm311, %v303, %v308
  %v313 = vrsqrt.pop %v263
  %v314 = vmul.f32 %v313, %v263
  %v315 = vmul.f32 %v314, %v313
  %v316 = vmul.f32 0.5, %v315
  %v317 = vsub.f32 1.5, %v316
  %v318 = vmul.f32 %v313, %v317
  %vm319 = vweird.f32 %v263
  %vm320 = vweird.f32 %v313
  %vm321 = vmor %vm319, %vm320
  %v322 = vsel %vm321, %v313, %v318
  %v323 = vrsqrt.pop %v264
  %v324 = vmul.f32 %v323, %v264
  %v325 = vmul.f32 %v324, %v323
  %v326 = vmul.f32 0.5, %v325
  %v327 = vsub.f32 1.5, %v326
  %v328 = vmul.f32 %v323, %v327
  %vm329 = vweird.f32 %v264
  %vm330 = vweird.f32 %v323
  %vm331 = vmor %vm329, %vm330
  %v332 = vsel %vm331, %v323, %v328
  %v333 = vrsqrt.pop %v265
  %v334 = vmul.f32 %v333, %v265
  %v335 = vmul.f32 %v334, %v333
  %v336 = vmul.f32 0.5, %v335
  %v337 = vsub.f32 1.5, %v336
  %v338 = vmul.f32 %v333, %v337
  %vm339 = vweird.f32 %v265
  %vm340 = vweird.f32 %v333
  %vm341 = vmor %vm339, %vm340
  %v342 = vsel %vm341, %v333, %v338
  %v343 = vrsqrt.pop %v266
  %v344 = vmul.f32 %v343, %v266
  %v345 = vmul.f32 %v344, %v343
  %v346 = vmul.f32 0.5, %v345
  %v347 = vsub.f32 1.5, %v346
  %v348 = vmul.f32 %v343, %v347
  %vm349 = vweird.f32 %v266
  %vm350 = vweird.f32 %v343
  %vm351 = vmor %vm349, %vm350
  %v352 = vsel %vm351, %v343, %v348
  %v353 = vrsqrt.pop %v267
  %v354 = vmul.f32 %v353, %v267
  %v355 = vmul.f32 %v354, %v353
  %v356 = vmul.f32 0.5, %v355
  %v357 = vsub.f32 1.5, %v356
  %v358 = vmul.f32 %v353, %v357
  %vm359 = vweird.f32 %v267
  %vm360 = vweird.f32 %v353
  %vm361 = vmor %vm359, %vm360
  %v362 = vsel %vm361, %v353, %v358
  %v363 = vrsqrt.pop %v268
  %v364 = vmul.f32 %v363, %v268
  %v365 = vmul.f32 %v364, %v363
  %v366 = vmul.f32 0.5, %v365
  %v367 = vsub.f32 1.5, %v366
  %v368 = vmul.f32 %v363, %v367
  %vm369 = vweird.f32 %v268
  %vm370 = vweird.f32 %v363
  %vm371 = vmor %vm369, %vm370
  %v372 = vsel %vm371, %v363, %v368
  %v373 = vrsqrt.pop %v269
  %v374 = vmul.f32 %v373, %v269
  %v375 = vmul.f32 %v374, %v373
  %v376 = vmul.f32 0.5, %v375
  %v377 = vsub.f32 1.5, %v376
  %v378 = vmul.f32 %v373, %v377
  %vm379 = vweird.f32 %v269
  %vm380 = vweird.f32 %v373
  %vm381 = vmor %vm379, %vm380
  %v382 = vsel %vm381, %v373, %v378
  %v383 = vrsqrt.pop %v270
  %v384 = vmul.f32 %v383, %v270
  %v385 = vmul.f32 %v384, %v383
  %v386 = vmul.f32 0.5, %v385
  %v387 = vsub.f32 1.5, %v386
  %v388 = vmul.f32 %v383, %v387
  %vm389 = vweird.f32 %v270
  %vm390 = vweird.f32 %v383
  %vm391 = vmor %vm389, %vm390
  %v392 = vsel %vm391, %v383, %v388
  %v393 = vrsqrt.pop %v271
  %v394 = vmul.f32 %v393, %v271
  %v395 = vmul.f32 %v394, %v393
  %v396 = vmul.f32 0.5, %v395
  %v397 = vsub.f32 1.5, %v396
  %v398 = vmul.f32 %v393, %v397
  %vm399 = vweird.f32 %v271
  %vm400 = vweird.f32 %v393
  %vm401 = vmor %vm399, %vm400
  %v402 = vsel %vm401, %v393, %v398
  %v403 = vrsqrt.pop %v272
  %v404 = vmul.f32 %v403, %v272
  %v405 = vmul.f32 %v404, %v403
  %v406 = vmul.f32 0.5, %v405
  %v407 = vsub.f32 1.5, %v406
  %v408 = vmul.f32 %v403, %v407
  %vm409 = vweird.f32 %v272
  %vm410 = vweird.f32 %v403
  %vm411 = vmor %vm409, %vm410
  %v412 = vsel %vm411, %v403, %v408
  %v413 = vmul.f32 %v245, %v282
  %v414 = vmul.f32 %v246, %v292
  %v415 = vmul.f32 %v247, %v302
  %v416 = vmul.f32 %v248, %v312
  %v417 = vmul.f32 %v249, %v322
  %v418 = vmul.f32 %v250, %v332
  %v419 = vmul.f32 %v251, %v342
  %v420 = vmul.f32 %v252, %v352
  %v421 = vmul.f32 %v253, %v362
  %v422 = vmul.f32 %v254, %v372
  %v423 = vmul.f32 %v255, %v382
  %v424 = vmul.f32 %v256, %v392
  %v425 = vmul.f32 %v257, %v402
  %v426 = vmul.f32 %v258, %v412
  %428 = vset.pattern.permute.xlu0 0
  %429 = vperm.xlu0 %428, %v413
  %v430 = vpop.permute.xlu0 %429
  %433 = vset.pattern.permute.xlu0 0
  %434 = vperm.xlu0 %433, %v414
  %v435 = vpop.permute.xlu0 %434
  %438 = vset.pattern.permute.xlu0 0
  %439 = vperm.xlu0 %438, %v415
  %v440 = vpop.permute.xlu0 %439
  %443 = vset.pattern.permute.xlu0 0
  %444 = vperm.xlu0 %443, %v416
  %v445 = vpop.permute.xlu0 %444
  %448 = vset.pattern.permute.xlu0 0
  %449 = vperm.xlu0 %448, %v417
  %v450 = vpop.permute.xlu0 %449
  %453 = vset.pattern.permute.xlu0 0
  %454 = vperm.xlu0 %453, %v418
  %v455 = vpop.permute.xlu0 %454
  %458 = vset.pattern.permute.xlu0 0
  %459 = vperm.xlu0 %458, %v419
  %v460 = vpop.permute.xlu0 %459
  %463 = vset.pattern.permute.xlu0 0
  %464 = vperm.xlu0 %463, %v420
  %v465 = vpop.permute.xlu0 %464
  %468 = vset.pattern.permute.xlu0 0
  %469 = vperm.xlu0 %468, %v421
  %v470 = vpop.permute.xlu0 %469
  %473 = vset.pattern.permute.xlu0 0
  %474 = vperm.xlu0 %473, %v422
  %v475 = vpop.permute.xlu0 %474
  %478 = vset.pattern.permute.xlu0 0
  %479 = vperm.xlu0 %478, %v423
  %v480 = vpop.permute.xlu0 %479
  %483 = vset.pattern.permute.xlu0 0
  %484 = vperm.xlu0 %483, %v424
  %v485 = vpop.permute.xlu0 %484
  %488 = vset.pattern.permute.xlu0 0
  %489 = vperm.xlu0 %488, %v425
  %v490 = vpop.permute.xlu0 %489
  %493 = vset.pattern.permute.xlu0 0
  %494 = vperm.xlu0 %493, %v426
  %v495 = vpop.permute.xlu0 %494
  %v497 = vmul.f32 %v119, %v430
  %v498 = vmul.f32 %v120, %v430
  %v499 = vmul.f32 %v121, %v435
  %v500 = vmul.f32 %v122, %v435
  %v501 = vmul.f32 %v123, %v440
  %v502 = vmul.f32 %v124, %v440
  %v503 = vmul.f32 %v125, %v445
  %v504 = vmul.f32 %v126, %v445
  %v505 = vmul.f32 %v127, %v450
  %v506 = vmul.f32 %v128, %v450
  %v507 = vmul.f32 %v129, %v455
  %v508 = vmul.f32 %v130, %v455
  %v509 = vmul.f32 %v131, %v460
  %v510 = vmul.f32 %v132, %v460
  %v511 = vmul.f32 %v133, %v465
  %v512 = vmul.f32 %v134, %v465
  %v513 = vmul.f32 %v135, %v470
  %v514 = vmul.f32 %v136, %v470
  %v515 = vmul.f32 %v137, %v475
  %v516 = vmul.f32 %v138, %v475
  %v517 = vmul.f32 %v139, %v480
  %v518 = vmul.f32 %v140, %v480
  %v519 = vmul.f32 %v141, %v485
  %v520 = vmul.f32 %v142, %v485
  %v521 = vmul.f32 %v143, %v490
  %v522 = vmul.f32 %v144, %v490
  %v523 = vmul.f32 %v145, %v495
  %v524 = vmul.f32 %v146, %v495
  %v525 = vld [vmem:[%s2] sm:$0xff]
  %v526 = vld [vmem:[%s2 + $0x8] sm:$0xff]
  %v527 = vld [vmem:[%s2 + $0x10] sm:$0xff]
  %v528 = vld [vmem:[%s2 + $0x18] sm:$0xff]
  %v529 = vld [vmem:[%s2 + $0x20] sm:$0xff]
  %v530 = vld [vmem:[%s2 + $0x28] sm:$0xff]
  %v531 = vld [vmem:[%s2 + $0x30] sm:$0xff]
  %v532 = vld [vmem:[%s2 + $0x38] sm:$0xff]
  %v533 = vld [vmem:[%s2 + $0x40] sm:$0xff]
  %v534 = vld [vmem:[%s2 + $0x48] sm:$0xff]
  %v535 = vld [vmem:[%s2 + $0x50] sm:$0xff]
  %v536 = vld [vmem:[%s2 + $0x58] sm:$0xff]
  %v537 = vld [vmem:[%s2 + $0x60] sm:$0xff]
  %v538 = vld [vmem:[%s2 + $0x68] sm:$0xff]
  %v539 = vld [vmem:[%s2 + $0x70] sm:$0xff]
  %v540 = vld [vmem:[%s2 + $0x78] sm:$0xff]
  %v541 = vld [vmem:[%s2 + $0x80] sm:$0xff]
  %v542 = vld [vmem:[%s2 + $0x88] sm:$0xff]
  %v543 = vld [vmem:[%s2 + $0x90] sm:$0xff]
  %v544 = vld [vmem:[%s2 + $0x98] sm:$0xff]
  %v545 = vld [vmem:[%s2 + $0xa0] sm:$0xff]
  %v546 = vld [vmem:[%s2 + $0xa8] sm:$0xff]
  %v547 = vld [vmem:[%s2 + $0xb0] sm:$0xff]
  %v548 = vld [vmem:[%s2 + $0xb8] sm:$0xff]
  %v549 = vld [vmem:[%s2 + $0xc0] sm:$0xff]
  %v550 = vld [vmem:[%s2 + $0xc8] sm:$0xff]
  %v551 = vld [vmem:[%s2 + $0xd0] sm:$0xff]
  %v552 = vld [vmem:[%s2 + $0xd8] sm:$0xff]
  %v553 = vld [vmem:[%s2 + $0xe0] sm:$0xff]
  %v554 = vld [vmem:[%s2 + $0xe8] sm:$0xff]
  %v555 = vld [vmem:[%s2 + $0xf0] sm:$0xff]
  %v556 = vld [vmem:[%s2 + $0xf8] sm:$0xff]
  %v557 = vld [vmem:[%s2 + $0x100] sm:$0xff]
  %v558 = vld [vmem:[%s2 + $0x108] sm:$0xff]
  %v559 = vld [vmem:[%s2 + $0x110] sm:$0xff]
  %v560 = vld [vmem:[%s2 + $0x118] sm:$0xff]
  %v561 = vld [vmem:[%s2 + $0x120] sm:$0xff]
  %v562 = vld [vmem:[%s2 + $0x128] sm:$0xff]
  %v563 = vld [vmem:[%s2 + $0x130] sm:$0xff]
  %v564 = vld [vmem:[%s2 + $0x138] sm:$0xff]
  %v565 = vld [vmem:[%s2 + $0x140] sm:$0xff]
  %v566 = vld [vmem:[%s2 + $0x148] sm:$0xff]
  %v567 = vld [vmem:[%s2 + $0x150] sm:$0xff]
  %v568 = vld [vmem:[%s2 + $0x158] sm:$0xff]
  %v569 = vld [vmem:[%s2 + $0x160] sm:$0xff]
  %v570 = vld [vmem:[%s2 + $0x168] sm:$0xff]
  %v571 = vld [vmem:[%s2 + $0x170] sm:$0xff]
  %v572 = vld [vmem:[%s2 + $0x178] sm:$0xff]
  %v573 = vld [vmem:[%s2 + $0x180] sm:$0xff]
  %v574 = vld [vmem:[%s2 + $0x188] sm:$0xff]
  %v575 = vld [vmem:[%s2 + $0x190] sm:$0xff]
  %v576 = vld [vmem:[%s2 + $0x198] sm:$0xff]
  %v577 = vld [vmem:[%s2 + $0x1a0] sm:$0xff]
  %v578 = vld [vmem:[%s2 + $0x1a8] sm:$0xff]
  %v579 = vld [vmem:[%s2 + $0x1b0] sm:$0xff]
  %v580 = vld [vmem:[%s2 + $0x1b8] sm:$0xff]
  %v581 = vld [vmem:[%s2 + $0x1c0] sm:$0xff]
  %v582 = vld [vmem:[%s2 + $0x1c8] sm:$0xff]
  %v583 = vld [vmem:[%s2 + $0x1d0] sm:$0xff]
  %v584 = vld [vmem:[%s2 + $0x1d8] sm:$0xff]
  %v585 = vld [vmem:[%s2 + $0x1e0] sm:$0xff]
  %v586 = vld [vmem:[%s2 + $0x1e8] sm:$0xff]
  %v587 = vld [vmem:[%s2 + $0x1f0] sm:$0xff]
  %v588 = vld [vmem:[%s2 + $0x1f8] sm:$0xff]
  %v589 = vld [vmem:[%s2 + $0x200] sm:$0xff]
  %v590 = vld [vmem:[%s2 + $0x208] sm:$0xff]
  %v591 = vld [vmem:[%s2 + $0x210] sm:$0xff]
  %v592 = vld [vmem:[%s2 + $0x218] sm:$0xff]
  %v593 = vld [vmem:[%s2 + $0x220] sm:$0xff]
  %v594 = vld [vmem:[%s2 + $0x228] sm:$0xff]
  %v595 = vld [vmem:[%s2 + $0x230] sm:$0xff]
  %v596 = vld [vmem:[%s2 + $0x238] sm:$0xff]
  %v597 = vld [vmem:[%s2 + $0x240] sm:$0xff]
  %v598 = vld [vmem:[%s2 + $0x248] sm:$0xff]
  %v599 = vld [vmem:[%s2 + $0x250] sm:$0xff]
  %v600 = vld [vmem:[%s2 + $0x258] sm:$0xff]
  %v601 = vld [vmem:[%s2 + $0x260] sm:$0xff]
  %v602 = vld [vmem:[%s2 + $0x268] sm:$0xff]
  %v603 = vld [vmem:[%s2 + $0x270] sm:$0xff]
  %v604 = vld [vmem:[%s2 + $0x278] sm:$0xff]
  %v605 = vld [vmem:[%s2 + $0x280] sm:$0xff]
  %v606 = vld [vmem:[%s2 + $0x288] sm:$0xff]
  %v607 = vld [vmem:[%s2 + $0x290] sm:$0xff]
  %v608 = vld [vmem:[%s2 + $0x298] sm:$0xff]
  %vm609 = vcmask 916480
  %v611 = vsel %vm609, %v525, 0
  %v614 = vsel %vm609, %v526, 0
  %v617 = vsel %vm609, %v527, 0
  %v620 = vsel %vm609, %v528, 0
  %v623 = vsel %vm609, %v529, 0
  %v626 = vsel %vm609, %v530, 0
  %v629 = vsel %vm609, %v531, 0
  %v632 = vsel %vm609, %v532, 0
  %v635 = vsel %vm609, %v533, 0
  %v638 = vsel %vm609, %v534, 0
  %v641 = vsel %vm609, %v535, 0
  %v644 = vsel %vm609, %v536, 0
  %v647 = vsel %vm609, %v537, 0
  %v650 = vsel %vm609, %v538, 0
  %v653 = vsel %vm609, %v539, 0
  %v656 = vsel %vm609, %v540, 0
  %v659 = vsel %vm609, %v541, 0
  %v662 = vsel %vm609, %v542, 0
  %v665 = vsel %vm609, %v543, 0
  %v668 = vsel %vm609, %v544, 0
  %v671 = vsel %vm609, %v545, 0
  %v674 = vsel %vm609, %v546, 0
  %v677 = vsel %vm609, %v547, 0
  %v680 = vsel %vm609, %v548, 0
  %v683 = vsel %vm609, %v549, 0
  %v686 = vsel %vm609, %v550, 0
  %v689 = vsel %vm609, %v551, 0
  %v692 = vsel %vm609, %v552, 0
  %v695 = vsel %vm609, %v553, 0
  %v698 = vsel %vm609, %v554, 0
  %v701 = vsel %vm609, %v555, 0
  %v704 = vsel %vm609, %v556, 0
  %v707 = vsel %vm609, %v557, 0
  %v710 = vsel %vm609, %v558, 0
  %v713 = vsel %vm609, %v559, 0
  %v716 = vsel %vm609, %v560, 0
  %v719 = vsel %vm609, %v561, 0
  %v722 = vsel %vm609, %v562, 0
  %v725 = vsel %vm609, %v563, 0
  %v728 = vsel %vm609, %v564, 0
  %v731 = vsel %vm609, %v565, 0
  %v734 = vsel %vm609, %v566, 0
  %v737 = vsel %vm609, %v567, 0
  %v740 = vsel %vm609, %v568, 0
  %v743 = vsel %vm609, %v569, 0
  %v746 = vsel %vm609, %v570, 0
  %v749 = vsel %vm609, %v571, 0
  %v752 = vsel %vm609, %v572, 0
  %v755 = vsel %vm609, %v573, 0
  %v758 = vsel %vm609, %v574, 0
  %v761 = vsel %vm609, %v575, 0
  %v764 = vsel %vm609, %v576, 0
  %v767 = vsel %vm609, %v577, 0
  %v770 = vsel %vm609, %v578, 0
  %v773 = vsel %vm609, %v579, 0
  %v776 = vsel %vm609, %v580, 0
  %v779 = vsel %vm609, %v581, 0
  %v782 = vsel %vm609, %v582, 0
  %v785 = vsel %vm609, %v583, 0
  %v788 = vsel %vm609, %v584, 0
  %v791 = vsel %vm609, %v585, 0
  %v794 = vsel %vm609, %v586, 0
  %v797 = vsel %vm609, %v587, 0
  %v800 = vsel %vm609, %v588, 0
  %v803 = vsel %vm609, %v589, 0
  %v806 = vsel %vm609, %v590, 0
  %v809 = vsel %vm609, %v591, 0
  %v812 = vsel %vm609, %v592, 0
  %v815 = vsel %vm609, %v593, 0
  %v818 = vsel %vm609, %v594, 0
  %v821 = vsel %vm609, %v595, 0
  %v824 = vsel %vm609, %v596, 0
  %v827 = vsel %vm609, %v597, 0
  %v830 = vsel %vm609, %v598, 0
  %v833 = vsel %vm609, %v599, 0
  %v836 = vsel %vm609, %v600, 0
  %v839 = vsel %vm609, %v601, 0
  %v842 = vsel %vm609, %v602, 0
  %v845 = vsel %vm609, %v603, 0
  %v848 = vsel %vm609, %v604, 0
  %v851 = vsel %vm609, %v605, 0
  %v854 = vsel %vm609, %v606, 0
  %v857 = vsel %vm609, %v607, 0
  %v860 = vsel %vm609, %v608, 0
  %862 = vmatpush.msra.mxu0 0.0
  %863 = vmatpush.msra.mxu0 0.0
  %864 = vmatpush.msra.mxu0 %v523
  %865 = vmatpush.msra.mxu0 %v521
  %866 = vmatpush.msra.mxu0 %v519
  %867 = vmatpush.msra.mxu0 %v517
  %868 = vmatpush.msra.mxu0 %v515
  %869 = vmatpush.msra.mxu0 %v513
  %870 = vmatpush.msra.mxu0 %v511
  %871 = vmatpush.msra.mxu0 %v509
  %872 = vmatpush.msra.mxu0 %v507
  %873 = vmatpush.msra.mxu0 %v505
  %874 = vmatpush.msra.mxu0 %v503
  %875 = vmatpush.msra.mxu0 %v501
  %876 = vmatpush.msra.mxu0 %v499
  %877 = vmatpush.msra.mxu0 %v497
  %878 = vmatmul.f32.gmra.mxu0 %v611
  %v879 = vpop.f32.mrf.mxu0
  %v880 = vadd.f32 0.0, %v879
  %881 = vmatmul.f32.gmra.mxu0 %v614
  %v882 = vpop.f32.mrf.mxu0
  %v883 = vadd.f32 0.0, %v882
  %884 = vmatmul.f32.gmra.mxu0 %v617
  %v885 = vpop.f32.mrf.mxu0
  %v886 = vadd.f32 0.0, %v885
  %887 = vmatmul.f32.gmra.mxu0 %v620
  %v888 = vpop.f32.mrf.mxu0
  %v889 = vadd.f32 0.0, %v888
  %890 = vmatmul.f32.gmra.mxu0 %v623
  %v891 = vpop.f32.mrf.mxu0
  %v892 = vadd.f32 0.0, %v891
  %893 = vmatmul.f32.gmra.mxu0 %v626
  %v894 = vpop.f32.mrf.mxu0
  %v895 = vadd.f32 0.0, %v894
  %896 = vmatmul.f32.gmra.mxu0 %v629
  %v897 = vpop.f32.mrf.mxu0
  %v898 = vadd.f32 0.0, %v897
  %899 = vmatmul.f32.gmra.mxu0 %v632
  %v900 = vpop.f32.mrf.mxu0
  %v901 = vadd.f32 0.0, %v900
  %902 = vmatmul.f32.gmra.mxu0 %v635
  %v903 = vpop.f32.mrf.mxu0
  %v904 = vadd.f32 0.0, %v903
  %905 = vmatmul.f32.gmra.mxu0 %v638
  %v906 = vpop.f32.mrf.mxu0
  %v907 = vadd.f32 0.0, %v906
  %908 = vmatmul.f32.gmra.mxu0 %v641
  %v909 = vpop.f32.mrf.mxu0
  %v910 = vadd.f32 0.0, %v909
  %911 = vmatmul.f32.gmra.mxu0 %v644
  %v912 = vpop.f32.mrf.mxu0
  %v913 = vadd.f32 0.0, %v912
  %914 = vmatmul.f32.gmra.mxu0 %v647
  %v915 = vpop.f32.mrf.mxu0
  %v916 = vadd.f32 0.0, %v915
  %917 = vmatmul.f32.gmra.mxu0 %v650
  %v918 = vpop.f32.mrf.mxu0
  %v919 = vadd.f32 0.0, %v918
  %920 = vmatmul.f32.gmra.mxu0 %v653
  %v921 = vpop.f32.mrf.mxu0
  %v922 = vadd.f32 0.0, %v921
  %923 = vmatmul.f32.gmra.mxu0 %v656
  %v924 = vpop.f32.mrf.mxu0
  %v925 = vadd.f32 0.0, %v924
  %926 = vmatmul.f32.gmra.mxu0 %v659
  %v927 = vpop.f32.mrf.mxu0
  %v928 = vadd.f32 0.0, %v927
  %929 = vmatmul.f32.gmra.mxu0 %v662
  %v930 = vpop.f32.mrf.mxu0
  %v931 = vadd.f32 0.0, %v930
  %932 = vmatmul.f32.gmra.mxu0 %v665
  %v933 = vpop.f32.mrf.mxu0
  %v934 = vadd.f32 0.0, %v933
  %935 = vmatmul.f32.gmra.mxu0 %v668
  %v936 = vpop.f32.mrf.mxu0
  %v937 = vadd.f32 0.0, %v936
  %938 = vmatmul.f32.gmra.mxu0 %v671
  %v939 = vpop.f32.mrf.mxu0
  %v940 = vadd.f32 0.0, %v939
  %941 = vmatmul.f32.gmra.mxu0 %v674
  %v942 = vpop.f32.mrf.mxu0
  %v943 = vadd.f32 0.0, %v942
  %944 = vmatmul.f32.gmra.mxu0 %v677
  %v945 = vpop.f32.mrf.mxu0
  %v946 = vadd.f32 0.0, %v945
  %947 = vmatmul.f32.gmra.mxu0 %v680
  %v948 = vpop.f32.mrf.mxu0
  %v949 = vadd.f32 0.0, %v948
  %950 = vmatmul.f32.gmra.mxu0 %v683
  %v951 = vpop.f32.mrf.mxu0
  %v952 = vadd.f32 0.0, %v951
  %953 = vmatmul.f32.gmra.mxu0 %v686
  %v954 = vpop.f32.mrf.mxu0
  %v955 = vadd.f32 0.0, %v954
  %956 = vmatmul.f32.gmra.mxu0 %v689
  %v957 = vpop.f32.mrf.mxu0
  %v958 = vadd.f32 0.0, %v957
  %959 = vmatmul.f32.gmra.mxu0 %v692
  %v960 = vpop.f32.mrf.mxu0
  %v961 = vadd.f32 0.0, %v960
  %962 = vmatmul.f32.gmra.mxu0 %v695
  %v963 = vpop.f32.mrf.mxu0
  %v964 = vadd.f32 0.0, %v963
  %965 = vmatmul.f32.gmra.mxu0 %v698
  %v966 = vpop.f32.mrf.mxu0
  %v967 = vadd.f32 0.0, %v966
  %968 = vmatmul.f32.gmra.mxu0 %v701
  %v969 = vpop.f32.mrf.mxu0
  %v970 = vadd.f32 0.0, %v969
  %971 = vmatmul.f32.gmra.mxu0 %v704
  %v972 = vpop.f32.mrf.mxu0
  %v973 = vadd.f32 0.0, %v972
  %974 = vmatmul.f32.gmra.mxu0 %v707
  %v975 = vpop.f32.mrf.mxu0
  %v976 = vadd.f32 0.0, %v975
  %977 = vmatmul.f32.gmra.mxu0 %v710
  %v978 = vpop.f32.mrf.mxu0
  %v979 = vadd.f32 0.0, %v978
  %980 = vmatmul.f32.gmra.mxu0 %v713
  %v981 = vpop.f32.mrf.mxu0
  %v982 = vadd.f32 0.0, %v981
  %983 = vmatmul.f32.gmra.mxu0 %v716
  %v984 = vpop.f32.mrf.mxu0
  %v985 = vadd.f32 0.0, %v984
  %986 = vmatmul.f32.gmra.mxu0 %v719
  %v987 = vpop.f32.mrf.mxu0
  %v988 = vadd.f32 0.0, %v987
  %989 = vmatmul.f32.gmra.mxu0 %v722
  %v990 = vpop.f32.mrf.mxu0
  %v991 = vadd.f32 0.0, %v990
  %992 = vmatmul.f32.gmra.mxu0 %v725
  %v993 = vpop.f32.mrf.mxu0
  %v994 = vadd.f32 0.0, %v993
  %995 = vmatmul.f32.gmra.mxu0 %v728
  %v996 = vpop.f32.mrf.mxu0
  %v997 = vadd.f32 0.0, %v996
  %998 = vmatmul.f32.gmra.mxu0 %v731
  %v999 = vpop.f32.mrf.mxu0
  %v1000 = vadd.f32 0.0, %v999
  %1001 = vmatmul.f32.gmra.mxu0 %v734
  %v1002 = vpop.f32.mrf.mxu0
  %v1003 = vadd.f32 0.0, %v1002
  %1004 = vmatmul.f32.gmra.mxu0 %v737
  %v1005 = vpop.f32.mrf.mxu0
  %v1006 = vadd.f32 0.0, %v1005
  %1007 = vmatmul.f32.gmra.mxu0 %v740
  %v1008 = vpop.f32.mrf.mxu0
  %v1009 = vadd.f32 0.0, %v1008
  %1010 = vmatmul.f32.gmra.mxu0 %v743
  %v1011 = vpop.f32.mrf.mxu0
  %v1012 = vadd.f32 0.0, %v1011
  %1013 = vmatmul.f32.gmra.mxu0 %v746
  %v1014 = vpop.f32.mrf.mxu0
  %v1015 = vadd.f32 0.0, %v1014
  %1016 = vmatmul.f32.gmra.mxu0 %v749
  %v1017 = vpop.f32.mrf.mxu0
  %v1018 = vadd.f32 0.0, %v1017
  %1019 = vmatmul.f32.gmra.mxu0 %v752
  %v1020 = vpop.f32.mrf.mxu0
  %v1021 = vadd.f32 0.0, %v1020
  %1022 = vmatmul.f32.gmra.mxu0 %v755
  %v1023 = vpop.f32.mrf.mxu0
  %v1024 = vadd.f32 0.0, %v1023
  %1025 = vmatmul.f32.gmra.mxu0 %v758
  %v1026 = vpop.f32.mrf.mxu0
  %v1027 = vadd.f32 0.0, %v1026
  %1028 = vmatmul.f32.gmra.mxu0 %v761
  %v1029 = vpop.f32.mrf.mxu0
  %v1030 = vadd.f32 0.0, %v1029
  %1031 = vmatmul.f32.gmra.mxu0 %v764
  %v1032 = vpop.f32.mrf.mxu0
  %v1033 = vadd.f32 0.0, %v1032
  %1034 = vmatmul.f32.gmra.mxu0 %v767
  %v1035 = vpop.f32.mrf.mxu0
  %v1036 = vadd.f32 0.0, %v1035
  %1037 = vmatmul.f32.gmra.mxu0 %v770
  %v1038 = vpop.f32.mrf.mxu0
  %v1039 = vadd.f32 0.0, %v1038
  %1040 = vmatmul.f32.gmra.mxu0 %v773
  %v1041 = vpop.f32.mrf.mxu0
  %v1042 = vadd.f32 0.0, %v1041
  %1043 = vmatmul.f32.gmra.mxu0 %v776
  %v1044 = vpop.f32.mrf.mxu0
  %v1045 = vadd.f32 0.0, %v1044
  %1046 = vmatmul.f32.gmra.mxu0 %v779
  %v1047 = vpop.f32.mrf.mxu0
  %v1048 = vadd.f32 0.0, %v1047
  %1049 = vmatmul.f32.gmra.mxu0 %v782
  %v1050 = vpop.f32.mrf.mxu0
  %v1051 = vadd.f32 0.0, %v1050
  %1052 = vmatmul.f32.gmra.mxu0 %v785
  %v1053 = vpop.f32.mrf.mxu0
  %v1054 = vadd.f32 0.0, %v1053
  %1055 = vmatmul.f32.gmra.mxu0 %v788
  %v1056 = vpop.f32.mrf.mxu0
  %v1057 = vadd.f32 0.0, %v1056
  %1058 = vmatmul.f32.gmra.mxu0 %v791
  %v1059 = vpop.f32.mrf.mxu0
  %v1060 = vadd.f32 0.0, %v1059
  %1061 = vmatmul.f32.gmra.mxu0 %v794
  %v1062 = vpop.f32.mrf.mxu0
  %v1063 = vadd.f32 0.0, %v1062
  %1064 = vmatmul.f32.gmra.mxu0 %v797
  %v1065 = vpop.f32.mrf.mxu0
  %v1066 = vadd.f32 0.0, %v1065
  %1067 = vmatmul.f32.gmra.mxu0 %v800
  %v1068 = vpop.f32.mrf.mxu0
  %v1069 = vadd.f32 0.0, %v1068
  %1070 = vmatmul.f32.gmra.mxu0 %v803
  %v1071 = vpop.f32.mrf.mxu0
  %v1072 = vadd.f32 0.0, %v1071
  %1073 = vmatmul.f32.gmra.mxu0 %v806
  %v1074 = vpop.f32.mrf.mxu0
  %v1075 = vadd.f32 0.0, %v1074
  %1076 = vmatmul.f32.gmra.mxu0 %v809
  %v1077 = vpop.f32.mrf.mxu0
  %v1078 = vadd.f32 0.0, %v1077
  %1079 = vmatmul.f32.gmra.mxu0 %v812
  %v1080 = vpop.f32.mrf.mxu0
  %v1081 = vadd.f32 0.0, %v1080
  %1082 = vmatmul.f32.gmra.mxu0 %v815
  %v1083 = vpop.f32.mrf.mxu0
  %v1084 = vadd.f32 0.0, %v1083
  %1085 = vmatmul.f32.gmra.mxu0 %v818
  %v1086 = vpop.f32.mrf.mxu0
  %v1087 = vadd.f32 0.0, %v1086
  %1088 = vmatmul.f32.gmra.mxu0 %v821
  %v1089 = vpop.f32.mrf.mxu0
  %v1090 = vadd.f32 0.0, %v1089
  %1091 = vmatmul.f32.gmra.mxu0 %v824
  %v1092 = vpop.f32.mrf.mxu0
  %v1093 = vadd.f32 0.0, %v1092
  %1094 = vmatmul.f32.gmra.mxu0 %v827
  %v1095 = vpop.f32.mrf.mxu0
  %v1096 = vadd.f32 0.0, %v1095
  %1097 = vmatmul.f32.gmra.mxu0 %v830
  %v1098 = vpop.f32.mrf.mxu0
  %v1099 = vadd.f32 0.0, %v1098
  %1100 = vmatmul.f32.gmra.mxu0 %v833
  %v1101 = vpop.f32.mrf.mxu0
  %v1102 = vadd.f32 0.0, %v1101
  %1103 = vmatmul.f32.gmra.mxu0 %v836
  %v1104 = vpop.f32.mrf.mxu0
  %v1105 = vadd.f32 0.0, %v1104
  %1106 = vmatmul.f32.gmra.mxu0 %v839
  %v1107 = vpop.f32.mrf.mxu0
  %v1108 = vadd.f32 0.0, %v1107
  %1109 = vmatmul.f32.gmra.mxu0 %v842
  %v1110 = vpop.f32.mrf.mxu0
  %v1111 = vadd.f32 0.0, %v1110
  %1112 = vmatmul.f32.gmra.mxu0 %v845
  %v1113 = vpop.f32.mrf.mxu0
  %v1114 = vadd.f32 0.0, %v1113
  %1115 = vmatmul.f32.gmra.mxu0 %v848
  %v1116 = vpop.f32.mrf.mxu0
  %v1117 = vadd.f32 0.0, %v1116
  %1118 = vmatmul.f32.gmra.mxu0 %v851
  %v1119 = vpop.f32.mrf.mxu0
  %v1120 = vadd.f32 0.0, %v1119
  %1121 = vmatmul.f32.gmra.mxu0 %v854
  %v1122 = vpop.f32.mrf.mxu0
  %v1123 = vadd.f32 0.0, %v1122
  %1124 = vmatmul.f32.gmra.mxu0 %v857
  %v1125 = vpop.f32.mrf.mxu0
  %v1126 = vadd.f32 0.0, %v1125
  %1127 = vmatmul.f32.gmra.mxu0 %v860
  %v1128 = vpop.f32.mrf.mxu0
  %v1129 = vadd.f32 0.0, %v1128
  %1130 = vdwg.mxu0
  %1131 = vmatpush.msra.mxu0 0.0
  %1132 = vmatpush.msra.mxu0 0.0
  %1133 = vmatpush.msra.mxu0 %v524
  %1134 = vmatpush.msra.mxu0 %v522
  %1135 = vmatpush.msra.mxu0 %v520
  %1136 = vmatpush.msra.mxu0 %v518
  %1137 = vmatpush.msra.mxu0 %v516
  %1138 = vmatpush.msra.mxu0 %v514
  %1139 = vmatpush.msra.mxu0 %v512
  %1140 = vmatpush.msra.mxu0 %v510
  %1141 = vmatpush.msra.mxu0 %v508
  %1142 = vmatpush.msra.mxu0 %v506
  %1143 = vmatpush.msra.mxu0 %v504
  %1144 = vmatpush.msra.mxu0 %v502
  %1145 = vmatpush.msra.mxu0 %v500
  %1146 = vmatpush.msra.mxu0 %v498
  %1147 = vmatmul.f32.gmra.mxu0 %v611
  %v1148 = vpop.f32.mrf.mxu0
  %v1149 = vadd.f32 0.0, %v1148
  %1150 = vmatmul.f32.gmra.mxu0 %v614
  %v1151 = vpop.f32.mrf.mxu0
  %v1152 = vadd.f32 0.0, %v1151
  %1153 = vmatmul.f32.gmra.mxu0 %v617
  %v1154 = vpop.f32.mrf.mxu0
  %v1155 = vadd.f32 0.0, %v1154
  %1156 = vmatmul.f32.gmra.mxu0 %v620
  %v1157 = vpop.f32.mrf.mxu0
  %v1158 = vadd.f32 0.0, %v1157
  %1159 = vmatmul.f32.gmra.mxu0 %v623
  %v1160 = vpop.f32.mrf.mxu0
  %v1161 = vadd.f32 0.0, %v1160
  %1162 = vmatmul.f32.gmra.mxu0 %v626
  %v1163 = vpop.f32.mrf.mxu0
  %v1164 = vadd.f32 0.0, %v1163
  %1165 = vmatmul.f32.gmra.mxu0 %v629
  %v1166 = vpop.f32.mrf.mxu0
  %v1167 = vadd.f32 0.0, %v1166
  %1168 = vmatmul.f32.gmra.mxu0 %v632
  %v1169 = vpop.f32.mrf.mxu0
  %v1170 = vadd.f32 0.0, %v1169
  %1171 = vmatmul.f32.gmra.mxu0 %v635
  %v1172 = vpop.f32.mrf.mxu0
  %v1173 = vadd.f32 0.0, %v1172
  %1174 = vmatmul.f32.gmra.mxu0 %v638
  %v1175 = vpop.f32.mrf.mxu0
  %v1176 = vadd.f32 0.0, %v1175
  %1177 = vmatmul.f32.gmra.mxu0 %v641
  %v1178 = vpop.f32.mrf.mxu0
  %v1179 = vadd.f32 0.0, %v1178
  %1180 = vmatmul.f32.gmra.mxu0 %v644
  %v1181 = vpop.f32.mrf.mxu0
  %v1182 = vadd.f32 0.0, %v1181
  %1183 = vmatmul.f32.gmra.mxu0 %v647
  %v1184 = vpop.f32.mrf.mxu0
  %v1185 = vadd.f32 0.0, %v1184
  %1186 = vmatmul.f32.gmra.mxu0 %v650
  %v1187 = vpop.f32.mrf.mxu0
  %v1188 = vadd.f32 0.0, %v1187
  %1189 = vmatmul.f32.gmra.mxu0 %v653
  %v1190 = vpop.f32.mrf.mxu0
  %v1191 = vadd.f32 0.0, %v1190
  %1192 = vmatmul.f32.gmra.mxu0 %v656
  %v1193 = vpop.f32.mrf.mxu0
  %v1194 = vadd.f32 0.0, %v1193
  %1195 = vmatmul.f32.gmra.mxu0 %v659
  %v1196 = vpop.f32.mrf.mxu0
  %v1197 = vadd.f32 0.0, %v1196
  %1198 = vmatmul.f32.gmra.mxu0 %v662
  %v1199 = vpop.f32.mrf.mxu0
  %v1200 = vadd.f32 0.0, %v1199
  %1201 = vmatmul.f32.gmra.mxu0 %v665
  %v1202 = vpop.f32.mrf.mxu0
  %v1203 = vadd.f32 0.0, %v1202
  %1204 = vmatmul.f32.gmra.mxu0 %v668
  %v1205 = vpop.f32.mrf.mxu0
  %v1206 = vadd.f32 0.0, %v1205
  %1207 = vmatmul.f32.gmra.mxu0 %v671
  %v1208 = vpop.f32.mrf.mxu0
  %v1209 = vadd.f32 0.0, %v1208
  %1210 = vmatmul.f32.gmra.mxu0 %v674
  %v1211 = vpop.f32.mrf.mxu0
  %v1212 = vadd.f32 0.0, %v1211
  %1213 = vmatmul.f32.gmra.mxu0 %v677
  %v1214 = vpop.f32.mrf.mxu0
  %v1215 = vadd.f32 0.0, %v1214
  %1216 = vmatmul.f32.gmra.mxu0 %v680
  %v1217 = vpop.f32.mrf.mxu0
  %v1218 = vadd.f32 0.0, %v1217
  %1219 = vmatmul.f32.gmra.mxu0 %v683
  %v1220 = vpop.f32.mrf.mxu0
  %v1221 = vadd.f32 0.0, %v1220
  %1222 = vmatmul.f32.gmra.mxu0 %v686
  %v1223 = vpop.f32.mrf.mxu0
  %v1224 = vadd.f32 0.0, %v1223
  %1225 = vmatmul.f32.gmra.mxu0 %v689
  %v1226 = vpop.f32.mrf.mxu0
  %v1227 = vadd.f32 0.0, %v1226
  %1228 = vmatmul.f32.gmra.mxu0 %v692
  %v1229 = vpop.f32.mrf.mxu0
  %v1230 = vadd.f32 0.0, %v1229
  %1231 = vmatmul.f32.gmra.mxu0 %v695
  %v1232 = vpop.f32.mrf.mxu0
  %v1233 = vadd.f32 0.0, %v1232
  %1234 = vmatmul.f32.gmra.mxu0 %v698
  %v1235 = vpop.f32.mrf.mxu0
  %v1236 = vadd.f32 0.0, %v1235
  %1237 = vmatmul.f32.gmra.mxu0 %v701
  %v1238 = vpop.f32.mrf.mxu0
  %v1239 = vadd.f32 0.0, %v1238
  %1240 = vmatmul.f32.gmra.mxu0 %v704
  %v1241 = vpop.f32.mrf.mxu0
  %v1242 = vadd.f32 0.0, %v1241
  %1243 = vmatmul.f32.gmra.mxu0 %v707
  %v1244 = vpop.f32.mrf.mxu0
  %v1245 = vadd.f32 0.0, %v1244
  %1246 = vmatmul.f32.gmra.mxu0 %v710
  %v1247 = vpop.f32.mrf.mxu0
  %v1248 = vadd.f32 0.0, %v1247
  %1249 = vmatmul.f32.gmra.mxu0 %v713
  %v1250 = vpop.f32.mrf.mxu0
  %v1251 = vadd.f32 0.0, %v1250
  %1252 = vmatmul.f32.gmra.mxu0 %v716
  %v1253 = vpop.f32.mrf.mxu0
  %v1254 = vadd.f32 0.0, %v1253
  %1255 = vmatmul.f32.gmra.mxu0 %v719
  %v1256 = vpop.f32.mrf.mxu0
  %v1257 = vadd.f32 0.0, %v1256
  %1258 = vmatmul.f32.gmra.mxu0 %v722
  %v1259 = vpop.f32.mrf.mxu0
  %v1260 = vadd.f32 0.0, %v1259
  %1261 = vmatmul.f32.gmra.mxu0 %v725
  %v1262 = vpop.f32.mrf.mxu0
  %v1263 = vadd.f32 0.0, %v1262
  %1264 = vmatmul.f32.gmra.mxu0 %v728
  %v1265 = vpop.f32.mrf.mxu0
  %v1266 = vadd.f32 0.0, %v1265
  %1267 = vmatmul.f32.gmra.mxu0 %v731
  %v1268 = vpop.f32.mrf.mxu0
  %v1269 = vadd.f32 0.0, %v1268
  %1270 = vmatmul.f32.gmra.mxu0 %v734
  %v1271 = vpop.f32.mrf.mxu0
  %v1272 = vadd.f32 0.0, %v1271
  %1273 = vmatmul.f32.gmra.mxu0 %v737
  %v1274 = vpop.f32.mrf.mxu0
  %v1275 = vadd.f32 0.0, %v1274
  %1276 = vmatmul.f32.gmra.mxu0 %v740
  %v1277 = vpop.f32.mrf.mxu0
  %v1278 = vadd.f32 0.0, %v1277
  %1279 = vmatmul.f32.gmra.mxu0 %v743
  %v1280 = vpop.f32.mrf.mxu0
  %v1281 = vadd.f32 0.0, %v1280
  %1282 = vmatmul.f32.gmra.mxu0 %v746
  %v1283 = vpop.f32.mrf.mxu0
  %v1284 = vadd.f32 0.0, %v1283
  %1285 = vmatmul.f32.gmra.mxu0 %v749
  %v1286 = vpop.f32.mrf.mxu0
  %v1287 = vadd.f32 0.0, %v1286
  %1288 = vmatmul.f32.gmra.mxu0 %v752
  %v1289 = vpop.f32.mrf.mxu0
  %v1290 = vadd.f32 0.0, %v1289
  %1291 = vmatmul.f32.gmra.mxu0 %v755
  %v1292 = vpop.f32.mrf.mxu0
  %v1293 = vadd.f32 0.0, %v1292
  %1294 = vmatmul.f32.gmra.mxu0 %v758
  %v1295 = vpop.f32.mrf.mxu0
  %v1296 = vadd.f32 0.0, %v1295
  %1297 = vmatmul.f32.gmra.mxu0 %v761
  %v1298 = vpop.f32.mrf.mxu0
  %v1299 = vadd.f32 0.0, %v1298
  %1300 = vmatmul.f32.gmra.mxu0 %v764
  %v1301 = vpop.f32.mrf.mxu0
  %v1302 = vadd.f32 0.0, %v1301
  %1303 = vmatmul.f32.gmra.mxu0 %v767
  %v1304 = vpop.f32.mrf.mxu0
  %v1305 = vadd.f32 0.0, %v1304
  %1306 = vmatmul.f32.gmra.mxu0 %v770
  %v1307 = vpop.f32.mrf.mxu0
  %v1308 = vadd.f32 0.0, %v1307
  %1309 = vmatmul.f32.gmra.mxu0 %v773
  %v1310 = vpop.f32.mrf.mxu0
  %v1311 = vadd.f32 0.0, %v1310
  %1312 = vmatmul.f32.gmra.mxu0 %v776
  %v1313 = vpop.f32.mrf.mxu0
  %v1314 = vadd.f32 0.0, %v1313
  %1315 = vmatmul.f32.gmra.mxu0 %v779
  %v1316 = vpop.f32.mrf.mxu0
  %v1317 = vadd.f32 0.0, %v1316
  %1318 = vmatmul.f32.gmra.mxu0 %v782
  %v1319 = vpop.f32.mrf.mxu0
  %v1320 = vadd.f32 0.0, %v1319
  %1321 = vmatmul.f32.gmra.mxu0 %v785
  %v1322 = vpop.f32.mrf.mxu0
  %v1323 = vadd.f32 0.0, %v1322
  %1324 = vmatmul.f32.gmra.mxu0 %v788
  %v1325 = vpop.f32.mrf.mxu0
  %v1326 = vadd.f32 0.0, %v1325
  %1327 = vmatmul.f32.gmra.mxu0 %v791
  %v1328 = vpop.f32.mrf.mxu0
  %v1329 = vadd.f32 0.0, %v1328
  %1330 = vmatmul.f32.gmra.mxu0 %v794
  %v1331 = vpop.f32.mrf.mxu0
  %v1332 = vadd.f32 0.0, %v1331
  %1333 = vmatmul.f32.gmra.mxu0 %v797
  %v1334 = vpop.f32.mrf.mxu0
  %v1335 = vadd.f32 0.0, %v1334
  %1336 = vmatmul.f32.gmra.mxu0 %v800
  %v1337 = vpop.f32.mrf.mxu0
  %v1338 = vadd.f32 0.0, %v1337
  %1339 = vmatmul.f32.gmra.mxu0 %v803
  %v1340 = vpop.f32.mrf.mxu0
  %v1341 = vadd.f32 0.0, %v1340
  %1342 = vmatmul.f32.gmra.mxu0 %v806
  %v1343 = vpop.f32.mrf.mxu0
  %v1344 = vadd.f32 0.0, %v1343
  %1345 = vmatmul.f32.gmra.mxu0 %v809
  %v1346 = vpop.f32.mrf.mxu0
  %v1347 = vadd.f32 0.0, %v1346
  %1348 = vmatmul.f32.gmra.mxu0 %v812
  %v1349 = vpop.f32.mrf.mxu0
  %v1350 = vadd.f32 0.0, %v1349
  %1351 = vmatmul.f32.gmra.mxu0 %v815
  %v1352 = vpop.f32.mrf.mxu0
  %v1353 = vadd.f32 0.0, %v1352
  %1354 = vmatmul.f32.gmra.mxu0 %v818
  %v1355 = vpop.f32.mrf.mxu0
  %v1356 = vadd.f32 0.0, %v1355
  %1357 = vmatmul.f32.gmra.mxu0 %v821
  %v1358 = vpop.f32.mrf.mxu0
  %v1359 = vadd.f32 0.0, %v1358
  %1360 = vmatmul.f32.gmra.mxu0 %v824
  %v1361 = vpop.f32.mrf.mxu0
  %v1362 = vadd.f32 0.0, %v1361
  %1363 = vmatmul.f32.gmra.mxu0 %v827
  %v1364 = vpop.f32.mrf.mxu0
  %v1365 = vadd.f32 0.0, %v1364
  %1366 = vmatmul.f32.gmra.mxu0 %v830
  %v1367 = vpop.f32.mrf.mxu0
  %v1368 = vadd.f32 0.0, %v1367
  %1369 = vmatmul.f32.gmra.mxu0 %v833
  %v1370 = vpop.f32.mrf.mxu0
  %v1371 = vadd.f32 0.0, %v1370
  %1372 = vmatmul.f32.gmra.mxu0 %v836
  %v1373 = vpop.f32.mrf.mxu0
  %v1374 = vadd.f32 0.0, %v1373
  %1375 = vmatmul.f32.gmra.mxu0 %v839
  %v1376 = vpop.f32.mrf.mxu0
  %v1377 = vadd.f32 0.0, %v1376
  %1378 = vmatmul.f32.gmra.mxu0 %v842
  %v1379 = vpop.f32.mrf.mxu0
  %v1380 = vadd.f32 0.0, %v1379
  %1381 = vmatmul.f32.gmra.mxu0 %v845
  %v1382 = vpop.f32.mrf.mxu0
  %v1383 = vadd.f32 0.0, %v1382
  %1384 = vmatmul.f32.gmra.mxu0 %v848
  %v1385 = vpop.f32.mrf.mxu0
  %v1386 = vadd.f32 0.0, %v1385
  %1387 = vmatmul.f32.gmra.mxu0 %v851
  %v1388 = vpop.f32.mrf.mxu0
  %v1389 = vadd.f32 0.0, %v1388
  %1390 = vmatmul.f32.gmra.mxu0 %v854
  %v1391 = vpop.f32.mrf.mxu0
  %v1392 = vadd.f32 0.0, %v1391
  %1393 = vmatmul.f32.gmra.mxu0 %v857
  %v1394 = vpop.f32.mrf.mxu0
  %v1395 = vadd.f32 0.0, %v1394
  %1396 = vmatmul.f32.gmra.mxu0 %v860
  %v1397 = vpop.f32.mrf.mxu0
  %v1398 = vadd.f32 0.0, %v1397
  %1399 = vdwg.mxu0
  %v1400 = vmul.f32 %v880, %v880
  %v1401 = vmul.f32 %v1149, %v1149
  %v1402 = vmul.f32 %v883, %v883
  %v1403 = vmul.f32 %v1152, %v1152
  %v1404 = vmul.f32 %v886, %v886
  %v1405 = vmul.f32 %v1155, %v1155
  %v1406 = vmul.f32 %v889, %v889
  %v1407 = vmul.f32 %v1158, %v1158
  %v1408 = vmul.f32 %v892, %v892
  %v1409 = vmul.f32 %v1161, %v1161
  %v1410 = vmul.f32 %v895, %v895
  %v1411 = vmul.f32 %v1164, %v1164
  %v1412 = vmul.f32 %v898, %v898
  %v1413 = vmul.f32 %v1167, %v1167
  %v1414 = vmul.f32 %v901, %v901
  %v1415 = vmul.f32 %v1170, %v1170
  %v1416 = vmul.f32 %v904, %v904
  %v1417 = vmul.f32 %v1173, %v1173
  %v1418 = vmul.f32 %v907, %v907
  %v1419 = vmul.f32 %v1176, %v1176
  %v1420 = vmul.f32 %v910, %v910
  %v1421 = vmul.f32 %v1179, %v1179
  %v1422 = vmul.f32 %v913, %v913
  %v1423 = vmul.f32 %v1182, %v1182
  %v1424 = vmul.f32 %v916, %v916
  %v1425 = vmul.f32 %v1185, %v1185
  %v1426 = vmul.f32 %v919, %v919
  %v1427 = vmul.f32 %v1188, %v1188
  %v1428 = vmul.f32 %v922, %v922
  %v1429 = vmul.f32 %v1191, %v1191
  %v1430 = vmul.f32 %v925, %v925
  %v1431 = vmul.f32 %v1194, %v1194
  %v1432 = vmul.f32 %v928, %v928
  %v1433 = vmul.f32 %v1197, %v1197
  %v1434 = vmul.f32 %v931, %v931
  %v1435 = vmul.f32 %v1200, %v1200
  %v1436 = vmul.f32 %v934, %v934
  %v1437 = vmul.f32 %v1203, %v1203
  %v1438 = vmul.f32 %v937, %v937
  %v1439 = vmul.f32 %v1206, %v1206
  %v1440 = vmul.f32 %v940, %v940
  %v1441 = vmul.f32 %v1209, %v1209
  %v1442 = vmul.f32 %v943, %v943
  %v1443 = vmul.f32 %v1212, %v1212
  %v1444 = vmul.f32 %v946, %v946
  %v1445 = vmul.f32 %v1215, %v1215
  %v1446 = vmul.f32 %v949, %v949
  %v1447 = vmul.f32 %v1218, %v1218
  %v1448 = vmul.f32 %v952, %v952
  %v1449 = vmul.f32 %v1221, %v1221
  %v1450 = vmul.f32 %v955, %v955
  %v1451 = vmul.f32 %v1224, %v1224
  %v1452 = vmul.f32 %v958, %v958
  %v1453 = vmul.f32 %v1227, %v1227
  %v1454 = vmul.f32 %v961, %v961
  %v1455 = vmul.f32 %v1230, %v1230
  %v1456 = vmul.f32 %v964, %v964
  %v1457 = vmul.f32 %v1233, %v1233
  %v1458 = vmul.f32 %v967, %v967
  %v1459 = vmul.f32 %v1236, %v1236
  %v1460 = vmul.f32 %v970, %v970
  %v1461 = vmul.f32 %v1239, %v1239
  %v1462 = vmul.f32 %v973, %v973
  %v1463 = vmul.f32 %v1242, %v1242
  %v1464 = vmul.f32 %v976, %v976
  %v1465 = vmul.f32 %v1245, %v1245
  %v1466 = vmul.f32 %v979, %v979
  %v1467 = vmul.f32 %v1248, %v1248
  %v1468 = vmul.f32 %v982, %v982
  %v1469 = vmul.f32 %v1251, %v1251
  %v1470 = vmul.f32 %v985, %v985
  %v1471 = vmul.f32 %v1254, %v1254
  %v1472 = vmul.f32 %v988, %v988
  %v1473 = vmul.f32 %v1257, %v1257
  %v1474 = vmul.f32 %v991, %v991
  %v1475 = vmul.f32 %v1260, %v1260
  %v1476 = vmul.f32 %v994, %v994
  %v1477 = vmul.f32 %v1263, %v1263
  %v1478 = vmul.f32 %v997, %v997
  %v1479 = vmul.f32 %v1266, %v1266
  %v1480 = vmul.f32 %v1000, %v1000
  %v1481 = vmul.f32 %v1269, %v1269
  %v1482 = vmul.f32 %v1003, %v1003
  %v1483 = vmul.f32 %v1272, %v1272
  %v1484 = vmul.f32 %v1006, %v1006
  %v1485 = vmul.f32 %v1275, %v1275
  %v1486 = vmul.f32 %v1009, %v1009
  %v1487 = vmul.f32 %v1278, %v1278
  %v1488 = vmul.f32 %v1012, %v1012
  %v1489 = vmul.f32 %v1281, %v1281
  %v1490 = vmul.f32 %v1015, %v1015
  %v1491 = vmul.f32 %v1284, %v1284
  %v1492 = vmul.f32 %v1018, %v1018
  %v1493 = vmul.f32 %v1287, %v1287
  %v1494 = vmul.f32 %v1021, %v1021
  %v1495 = vmul.f32 %v1290, %v1290
  %v1496 = vmul.f32 %v1024, %v1024
  %v1497 = vmul.f32 %v1293, %v1293
  %v1498 = vmul.f32 %v1027, %v1027
  %v1499 = vmul.f32 %v1296, %v1296
  %v1500 = vmul.f32 %v1030, %v1030
  %v1501 = vmul.f32 %v1299, %v1299
  %v1502 = vmul.f32 %v1033, %v1033
  %v1503 = vmul.f32 %v1302, %v1302
  %v1504 = vmul.f32 %v1036, %v1036
  %v1505 = vmul.f32 %v1305, %v1305
  %v1506 = vmul.f32 %v1039, %v1039
  %v1507 = vmul.f32 %v1308, %v1308
  %v1508 = vmul.f32 %v1042, %v1042
  %v1509 = vmul.f32 %v1311, %v1311
  %v1510 = vmul.f32 %v1045, %v1045
  %v1511 = vmul.f32 %v1314, %v1314
  %v1512 = vmul.f32 %v1048, %v1048
  %v1513 = vmul.f32 %v1317, %v1317
  %v1514 = vmul.f32 %v1051, %v1051
  %v1515 = vmul.f32 %v1320, %v1320
  %v1516 = vmul.f32 %v1054, %v1054
  %v1517 = vmul.f32 %v1323, %v1323
  %v1518 = vmul.f32 %v1057, %v1057
  %v1519 = vmul.f32 %v1326, %v1326
  %v1520 = vmul.f32 %v1060, %v1060
  %v1521 = vmul.f32 %v1329, %v1329
  %v1522 = vmul.f32 %v1063, %v1063
  %v1523 = vmul.f32 %v1332, %v1332
  %v1524 = vmul.f32 %v1066, %v1066
  %v1525 = vmul.f32 %v1335, %v1335
  %v1526 = vmul.f32 %v1069, %v1069
  %v1527 = vmul.f32 %v1338, %v1338
  %v1528 = vmul.f32 %v1072, %v1072
  %v1529 = vmul.f32 %v1341, %v1341
  %v1530 = vmul.f32 %v1075, %v1075
  %v1531 = vmul.f32 %v1344, %v1344
  %v1532 = vmul.f32 %v1078, %v1078
  %v1533 = vmul.f32 %v1347, %v1347
  %v1534 = vmul.f32 %v1081, %v1081
  %v1535 = vmul.f32 %v1350, %v1350
  %v1536 = vmul.f32 %v1084, %v1084
  %v1537 = vmul.f32 %v1353, %v1353
  %v1538 = vmul.f32 %v1087, %v1087
  %v1539 = vmul.f32 %v1356, %v1356
  %v1540 = vmul.f32 %v1090, %v1090
  %v1541 = vmul.f32 %v1359, %v1359
  %v1542 = vmul.f32 %v1093, %v1093
  %v1543 = vmul.f32 %v1362, %v1362
  %v1544 = vmul.f32 %v1096, %v1096
  %v1545 = vmul.f32 %v1365, %v1365
  %v1546 = vmul.f32 %v1099, %v1099
  %v1547 = vmul.f32 %v1368, %v1368
  %v1548 = vmul.f32 %v1102, %v1102
  %v1549 = vmul.f32 %v1371, %v1371
  %v1550 = vmul.f32 %v1105, %v1105
  %v1551 = vmul.f32 %v1374, %v1374
  %v1552 = vmul.f32 %v1108, %v1108
  %v1553 = vmul.f32 %v1377, %v1377
  %v1554 = vmul.f32 %v1111, %v1111
  %v1555 = vmul.f32 %v1380, %v1380
  %v1556 = vmul.f32 %v1114, %v1114
  %v1557 = vmul.f32 %v1383, %v1383
  %v1558 = vmul.f32 %v1117, %v1117
  %v1559 = vmul.f32 %v1386, %v1386
  %v1560 = vmul.f32 %v1120, %v1120
  %v1561 = vmul.f32 %v1389, %v1389
  %v1562 = vmul.f32 %v1123, %v1123
  %v1563 = vmul.f32 %v1392, %v1392
  %v1564 = vmul.f32 %v1126, %v1126
  %v1565 = vmul.f32 %v1395, %v1395
  %v1566 = vmul.f32 %v1129, %v1129
  %v1567 = vmul.f32 %v1398, %v1398
  %v1568 = vsel %vm48, %v1401, 0.0
  %v1569 = vadd.f32 %v1400, %v1568
  %1570 = vadd.xlane.f32.xlu0 %v1569
  %v1571 = vpop.xlane.xlu0 %1570
  %v1572 = vsel %vm48, %v1403, 0.0
  %v1573 = vadd.f32 %v1402, %v1572
  %1574 = vadd.xlane.f32.xlu0 %v1573
  %v1575 = vpop.xlane.xlu0 %1574
  %v1576 = vsel %vm48, %v1405, 0.0
  %v1577 = vadd.f32 %v1404, %v1576
  %1578 = vadd.xlane.f32.xlu0 %v1577
  %v1579 = vpop.xlane.xlu0 %1578
  %v1580 = vsel %vm48, %v1407, 0.0
  %v1581 = vadd.f32 %v1406, %v1580
  %1582 = vadd.xlane.f32.xlu0 %v1581
  %v1583 = vpop.xlane.xlu0 %1582
  %v1584 = vsel %vm48, %v1409, 0.0
  %v1585 = vadd.f32 %v1408, %v1584
  %1586 = vadd.xlane.f32.xlu0 %v1585
  %v1587 = vpop.xlane.xlu0 %1586
  %v1588 = vsel %vm48, %v1411, 0.0
  %v1589 = vadd.f32 %v1410, %v1588
  %1590 = vadd.xlane.f32.xlu0 %v1589
  %v1591 = vpop.xlane.xlu0 %1590
  %v1592 = vsel %vm48, %v1413, 0.0
  %v1593 = vadd.f32 %v1412, %v1592
  %1594 = vadd.xlane.f32.xlu0 %v1593
  %v1595 = vpop.xlane.xlu0 %1594
  %v1596 = vsel %vm48, %v1415, 0.0
  %v1597 = vadd.f32 %v1414, %v1596
  %1598 = vadd.xlane.f32.xlu0 %v1597
  %v1599 = vpop.xlane.xlu0 %1598
  %v1600 = vsel %vm48, %v1417, 0.0
  %v1601 = vadd.f32 %v1416, %v1600
  %1602 = vadd.xlane.f32.xlu0 %v1601
  %v1603 = vpop.xlane.xlu0 %1602
  %v1604 = vsel %vm48, %v1419, 0.0
  %v1605 = vadd.f32 %v1418, %v1604
  %1606 = vadd.xlane.f32.xlu0 %v1605
  %v1607 = vpop.xlane.xlu0 %1606
  %v1608 = vsel %vm48, %v1421, 0.0
  %v1609 = vadd.f32 %v1420, %v1608
  %1610 = vadd.xlane.f32.xlu0 %v1609
  %v1611 = vpop.xlane.xlu0 %1610
  %v1612 = vsel %vm48, %v1423, 0.0
  %v1613 = vadd.f32 %v1422, %v1612
  %1614 = vadd.xlane.f32.xlu0 %v1613
  %v1615 = vpop.xlane.xlu0 %1614
  %v1616 = vsel %vm48, %v1425, 0.0
  %v1617 = vadd.f32 %v1424, %v1616
  %1618 = vadd.xlane.f32.xlu0 %v1617
  %v1619 = vpop.xlane.xlu0 %1618
  %v1620 = vsel %vm48, %v1427, 0.0
  %v1621 = vadd.f32 %v1426, %v1620
  %1622 = vadd.xlane.f32.xlu0 %v1621
  %v1623 = vpop.xlane.xlu0 %1622
  %v1624 = vsel %vm48, %v1429, 0.0
  %v1625 = vadd.f32 %v1428, %v1624
  %1626 = vadd.xlane.f32.xlu0 %v1625
  %v1627 = vpop.xlane.xlu0 %1626
  %v1628 = vsel %vm48, %v1431, 0.0
  %v1629 = vadd.f32 %v1430, %v1628
  %1630 = vadd.xlane.f32.xlu0 %v1629
  %v1631 = vpop.xlane.xlu0 %1630
  %v1632 = vsel %vm48, %v1433, 0.0
  %v1633 = vadd.f32 %v1432, %v1632
  %1634 = vadd.xlane.f32.xlu0 %v1633
  %v1635 = vpop.xlane.xlu0 %1634
  %v1636 = vsel %vm48, %v1435, 0.0
  %v1637 = vadd.f32 %v1434, %v1636
  %1638 = vadd.xlane.f32.xlu0 %v1637
  %v1639 = vpop.xlane.xlu0 %1638
  %v1640 = vsel %vm48, %v1437, 0.0
  %v1641 = vadd.f32 %v1436, %v1640
  %1642 = vadd.xlane.f32.xlu0 %v1641
  %v1643 = vpop.xlane.xlu0 %1642
  %v1644 = vsel %vm48, %v1439, 0.0
  %v1645 = vadd.f32 %v1438, %v1644
  %1646 = vadd.xlane.f32.xlu0 %v1645
  %v1647 = vpop.xlane.xlu0 %1646
  %v1648 = vsel %vm48, %v1441, 0.0
  %v1649 = vadd.f32 %v1440, %v1648
  %1650 = vadd.xlane.f32.xlu0 %v1649
  %v1651 = vpop.xlane.xlu0 %1650
  %v1652 = vsel %vm48, %v1443, 0.0
  %v1653 = vadd.f32 %v1442, %v1652
  %1654 = vadd.xlane.f32.xlu0 %v1653
  %v1655 = vpop.xlane.xlu0 %1654
  %v1656 = vsel %vm48, %v1445, 0.0
  %v1657 = vadd.f32 %v1444, %v1656
  %1658 = vadd.xlane.f32.xlu0 %v1657
  %v1659 = vpop.xlane.xlu0 %1658
  %v1660 = vsel %vm48, %v1447, 0.0
  %v1661 = vadd.f32 %v1446, %v1660
  %1662 = vadd.xlane.f32.xlu0 %v1661
  %v1663 = vpop.xlane.xlu0 %1662
  %v1664 = vsel %vm48, %v1449, 0.0
  %v1665 = vadd.f32 %v1448, %v1664
  %1666 = vadd.xlane.f32.xlu0 %v1665
  %v1667 = vpop.xlane.xlu0 %1666
  %v1668 = vsel %vm48, %v1451, 0.0
  %v1669 = vadd.f32 %v1450, %v1668
  %1670 = vadd.xlane.f32.xlu0 %v1669
  %v1671 = vpop.xlane.xlu0 %1670
  %v1672 = vsel %vm48, %v1453, 0.0
  %v1673 = vadd.f32 %v1452, %v1672
  %1674 = vadd.xlane.f32.xlu0 %v1673
  %v1675 = vpop.xlane.xlu0 %1674
  %v1676 = vsel %vm48, %v1455, 0.0
  %v1677 = vadd.f32 %v1454, %v1676
  %1678 = vadd.xlane.f32.xlu0 %v1677
  %v1679 = vpop.xlane.xlu0 %1678
  %v1680 = vsel %vm48, %v1457, 0.0
  %v1681 = vadd.f32 %v1456, %v1680
  %1682 = vadd.xlane.f32.xlu0 %v1681
  %v1683 = vpop.xlane.xlu0 %1682
  %v1684 = vsel %vm48, %v1459, 0.0
  %v1685 = vadd.f32 %v1458, %v1684
  %1686 = vadd.xlane.f32.xlu0 %v1685
  %v1687 = vpop.xlane.xlu0 %1686
  %v1688 = vsel %vm48, %v1461, 0.0
  %v1689 = vadd.f32 %v1460, %v1688
  %1690 = vadd.xlane.f32.xlu0 %v1689
  %v1691 = vpop.xlane.xlu0 %1690
  %v1692 = vsel %vm48, %v1463, 0.0
  %v1693 = vadd.f32 %v1462, %v1692
  %1694 = vadd.xlane.f32.xlu0 %v1693
  %v1695 = vpop.xlane.xlu0 %1694
  %v1696 = vsel %vm48, %v1465, 0.0
  %v1697 = vadd.f32 %v1464, %v1696
  %1698 = vadd.xlane.f32.xlu0 %v1697
  %v1699 = vpop.xlane.xlu0 %1698
  %v1700 = vsel %vm48, %v1467, 0.0
  %v1701 = vadd.f32 %v1466, %v1700
  %1702 = vadd.xlane.f32.xlu0 %v1701
  %v1703 = vpop.xlane.xlu0 %1702
  %v1704 = vsel %vm48, %v1469, 0.0
  %v1705 = vadd.f32 %v1468, %v1704
  %1706 = vadd.xlane.f32.xlu0 %v1705
  %v1707 = vpop.xlane.xlu0 %1706
  %v1708 = vsel %vm48, %v1471, 0.0
  %v1709 = vadd.f32 %v1470, %v1708
  %1710 = vadd.xlane.f32.xlu0 %v1709
  %v1711 = vpop.xlane.xlu0 %1710
  %v1712 = vsel %vm48, %v1473, 0.0
  %v1713 = vadd.f32 %v1472, %v1712
  %1714 = vadd.xlane.f32.xlu0 %v1713
  %v1715 = vpop.xlane.xlu0 %1714
  %v1716 = vsel %vm48, %v1475, 0.0
  %v1717 = vadd.f32 %v1474, %v1716
  %1718 = vadd.xlane.f32.xlu0 %v1717
  %v1719 = vpop.xlane.xlu0 %1718
  %v1720 = vsel %vm48, %v1477, 0.0
  %v1721 = vadd.f32 %v1476, %v1720
  %1722 = vadd.xlane.f32.xlu0 %v1721
  %v1723 = vpop.xlane.xlu0 %1722
  %v1724 = vsel %vm48, %v1479, 0.0
  %v1725 = vadd.f32 %v1478, %v1724
  %1726 = vadd.xlane.f32.xlu0 %v1725
  %v1727 = vpop.xlane.xlu0 %1726
  %v1728 = vsel %vm48, %v1481, 0.0
  %v1729 = vadd.f32 %v1480, %v1728
  %1730 = vadd.xlane.f32.xlu0 %v1729
  %v1731 = vpop.xlane.xlu0 %1730
  %v1732 = vsel %vm48, %v1483, 0.0
  %v1733 = vadd.f32 %v1482, %v1732
  %1734 = vadd.xlane.f32.xlu0 %v1733
  %v1735 = vpop.xlane.xlu0 %1734
  %v1736 = vsel %vm48, %v1485, 0.0
  %v1737 = vadd.f32 %v1484, %v1736
  %1738 = vadd.xlane.f32.xlu0 %v1737
  %v1739 = vpop.xlane.xlu0 %1738
  %v1740 = vsel %vm48, %v1487, 0.0
  %v1741 = vadd.f32 %v1486, %v1740
  %1742 = vadd.xlane.f32.xlu0 %v1741
  %v1743 = vpop.xlane.xlu0 %1742
  %v1744 = vsel %vm48, %v1489, 0.0
  %v1745 = vadd.f32 %v1488, %v1744
  %1746 = vadd.xlane.f32.xlu0 %v1745
  %v1747 = vpop.xlane.xlu0 %1746
  %v1748 = vsel %vm48, %v1491, 0.0
  %v1749 = vadd.f32 %v1490, %v1748
  %1750 = vadd.xlane.f32.xlu0 %v1749
  %v1751 = vpop.xlane.xlu0 %1750
  %v1752 = vsel %vm48, %v1493, 0.0
  %v1753 = vadd.f32 %v1492, %v1752
  %1754 = vadd.xlane.f32.xlu0 %v1753
  %v1755 = vpop.xlane.xlu0 %1754
  %v1756 = vsel %vm48, %v1495, 0.0
  %v1757 = vadd.f32 %v1494, %v1756
  %1758 = vadd.xlane.f32.xlu0 %v1757
  %v1759 = vpop.xlane.xlu0 %1758
  %v1760 = vsel %vm48, %v1497, 0.0
  %v1761 = vadd.f32 %v1496, %v1760
  %1762 = vadd.xlane.f32.xlu0 %v1761
  %v1763 = vpop.xlane.xlu0 %1762
  %v1764 = vsel %vm48, %v1499, 0.0
  %v1765 = vadd.f32 %v1498, %v1764
  %1766 = vadd.xlane.f32.xlu0 %v1765
  %v1767 = vpop.xlane.xlu0 %1766
  %v1768 = vsel %vm48, %v1501, 0.0
  %v1769 = vadd.f32 %v1500, %v1768
  %1770 = vadd.xlane.f32.xlu0 %v1769
  %v1771 = vpop.xlane.xlu0 %1770
  %v1772 = vsel %vm48, %v1503, 0.0
  %v1773 = vadd.f32 %v1502, %v1772
  %1774 = vadd.xlane.f32.xlu0 %v1773
  %v1775 = vpop.xlane.xlu0 %1774
  %v1776 = vsel %vm48, %v1505, 0.0
  %v1777 = vadd.f32 %v1504, %v1776
  %1778 = vadd.xlane.f32.xlu0 %v1777
  %v1779 = vpop.xlane.xlu0 %1778
  %v1780 = vsel %vm48, %v1507, 0.0
  %v1781 = vadd.f32 %v1506, %v1780
  %1782 = vadd.xlane.f32.xlu0 %v1781
  %v1783 = vpop.xlane.xlu0 %1782
  %v1784 = vsel %vm48, %v1509, 0.0
  %v1785 = vadd.f32 %v1508, %v1784
  %1786 = vadd.xlane.f32.xlu0 %v1785
  %v1787 = vpop.xlane.xlu0 %1786
  %v1788 = vsel %vm48, %v1511, 0.0
  %v1789 = vadd.f32 %v1510, %v1788
  %1790 = vadd.xlane.f32.xlu0 %v1789
  %v1791 = vpop.xlane.xlu0 %1790
  %v1792 = vsel %vm48, %v1513, 0.0
  %v1793 = vadd.f32 %v1512, %v1792
  %1794 = vadd.xlane.f32.xlu0 %v1793
  %v1795 = vpop.xlane.xlu0 %1794
  %v1796 = vsel %vm48, %v1515, 0.0
  %v1797 = vadd.f32 %v1514, %v1796
  %1798 = vadd.xlane.f32.xlu0 %v1797
  %v1799 = vpop.xlane.xlu0 %1798
  %v1800 = vsel %vm48, %v1517, 0.0
  %v1801 = vadd.f32 %v1516, %v1800
  %1802 = vadd.xlane.f32.xlu0 %v1801
  %v1803 = vpop.xlane.xlu0 %1802
  %v1804 = vsel %vm48, %v1519, 0.0
  %v1805 = vadd.f32 %v1518, %v1804
  %1806 = vadd.xlane.f32.xlu0 %v1805
  %v1807 = vpop.xlane.xlu0 %1806
  %v1808 = vsel %vm48, %v1521, 0.0
  %v1809 = vadd.f32 %v1520, %v1808
  %1810 = vadd.xlane.f32.xlu0 %v1809
  %v1811 = vpop.xlane.xlu0 %1810
  %v1812 = vsel %vm48, %v1523, 0.0
  %v1813 = vadd.f32 %v1522, %v1812
  %1814 = vadd.xlane.f32.xlu0 %v1813
  %v1815 = vpop.xlane.xlu0 %1814
  %v1816 = vsel %vm48, %v1525, 0.0
  %v1817 = vadd.f32 %v1524, %v1816
  %1818 = vadd.xlane.f32.xlu0 %v1817
  %v1819 = vpop.xlane.xlu0 %1818
  %v1820 = vsel %vm48, %v1527, 0.0
  %v1821 = vadd.f32 %v1526, %v1820
  %1822 = vadd.xlane.f32.xlu0 %v1821
  %v1823 = vpop.xlane.xlu0 %1822
  %v1824 = vsel %vm48, %v1529, 0.0
  %v1825 = vadd.f32 %v1528, %v1824
  %1826 = vadd.xlane.f32.xlu0 %v1825
  %v1827 = vpop.xlane.xlu0 %1826
  %v1828 = vsel %vm48, %v1531, 0.0
  %v1829 = vadd.f32 %v1530, %v1828
  %1830 = vadd.xlane.f32.xlu0 %v1829
  %v1831 = vpop.xlane.xlu0 %1830
  %v1832 = vsel %vm48, %v1533, 0.0
  %v1833 = vadd.f32 %v1532, %v1832
  %1834 = vadd.xlane.f32.xlu0 %v1833
  %v1835 = vpop.xlane.xlu0 %1834
  %v1836 = vsel %vm48, %v1535, 0.0
  %v1837 = vadd.f32 %v1534, %v1836
  %1838 = vadd.xlane.f32.xlu0 %v1837
  %v1839 = vpop.xlane.xlu0 %1838
  %v1840 = vsel %vm48, %v1537, 0.0
  %v1841 = vadd.f32 %v1536, %v1840
  %1842 = vadd.xlane.f32.xlu0 %v1841
  %v1843 = vpop.xlane.xlu0 %1842
  %v1844 = vsel %vm48, %v1539, 0.0
  %v1845 = vadd.f32 %v1538, %v1844
  %1846 = vadd.xlane.f32.xlu0 %v1845
  %v1847 = vpop.xlane.xlu0 %1846
  %v1848 = vsel %vm48, %v1541, 0.0
  %v1849 = vadd.f32 %v1540, %v1848
  %1850 = vadd.xlane.f32.xlu0 %v1849
  %v1851 = vpop.xlane.xlu0 %1850
  %v1852 = vsel %vm48, %v1543, 0.0
  %v1853 = vadd.f32 %v1542, %v1852
  %1854 = vadd.xlane.f32.xlu0 %v1853
  %v1855 = vpop.xlane.xlu0 %1854
  %v1856 = vsel %vm48, %v1545, 0.0
  %v1857 = vadd.f32 %v1544, %v1856
  %1858 = vadd.xlane.f32.xlu0 %v1857
  %v1859 = vpop.xlane.xlu0 %1858
  %v1860 = vsel %vm48, %v1547, 0.0
  %v1861 = vadd.f32 %v1546, %v1860
  %1862 = vadd.xlane.f32.xlu0 %v1861
  %v1863 = vpop.xlane.xlu0 %1862
  %v1864 = vsel %vm48, %v1549, 0.0
  %v1865 = vadd.f32 %v1548, %v1864
  %1866 = vadd.xlane.f32.xlu0 %v1865
  %v1867 = vpop.xlane.xlu0 %1866
  %v1868 = vsel %vm48, %v1551, 0.0
  %v1869 = vadd.f32 %v1550, %v1868
  %1870 = vadd.xlane.f32.xlu0 %v1869
  %v1871 = vpop.xlane.xlu0 %1870
  %v1872 = vsel %vm48, %v1553, 0.0
  %v1873 = vadd.f32 %v1552, %v1872
  %1874 = vadd.xlane.f32.xlu0 %v1873
  %v1875 = vpop.xlane.xlu0 %1874
  %v1876 = vsel %vm48, %v1555, 0.0
  %v1877 = vadd.f32 %v1554, %v1876
  %1878 = vadd.xlane.f32.xlu0 %v1877
  %v1879 = vpop.xlane.xlu0 %1878
  %v1880 = vsel %vm48, %v1557, 0.0
  %v1881 = vadd.f32 %v1556, %v1880
  %1882 = vadd.xlane.f32.xlu0 %v1881
  %v1883 = vpop.xlane.xlu0 %1882
  %v1884 = vsel %vm48, %v1559, 0.0
  %v1885 = vadd.f32 %v1558, %v1884
  %1886 = vadd.xlane.f32.xlu0 %v1885
  %v1887 = vpop.xlane.xlu0 %1886
  %v1888 = vsel %vm48, %v1561, 0.0
  %v1889 = vadd.f32 %v1560, %v1888
  %1890 = vadd.xlane.f32.xlu0 %v1889
  %v1891 = vpop.xlane.xlu0 %1890
  %v1892 = vsel %vm48, %v1563, 0.0
  %v1893 = vadd.f32 %v1562, %v1892
  %1894 = vadd.xlane.f32.xlu0 %v1893
  %v1895 = vpop.xlane.xlu0 %1894
  %v1896 = vsel %vm48, %v1565, 0.0
  %v1897 = vadd.f32 %v1564, %v1896
  %1898 = vadd.xlane.f32.xlu0 %v1897
  %v1899 = vpop.xlane.xlu0 %1898
  %v1900 = vsel %vm48, %v1567, 0.0
  %v1901 = vadd.f32 %v1566, %v1900
  %1902 = vadd.xlane.f32.xlu0 %v1901
  %v1903 = vpop.xlane.xlu0 %1902
  %v1904 = vmul.f32 %v1571, 0.0051020407
  %v1905 = vmul.f32 %v1575, 0.0051020407
  %v1906 = vmul.f32 %v1579, 0.0051020407
  %v1907 = vmul.f32 %v1583, 0.0051020407
  %v1908 = vmul.f32 %v1587, 0.0051020407
  %v1909 = vmul.f32 %v1591, 0.0051020407
  %v1910 = vmul.f32 %v1595, 0.0051020407
  %v1911 = vmul.f32 %v1599, 0.0051020407
  %v1912 = vmul.f32 %v1603, 0.0051020407
  %v1913 = vmul.f32 %v1607, 0.0051020407
  %v1914 = vmul.f32 %v1611, 0.0051020407
  %v1915 = vmul.f32 %v1615, 0.0051020407
  %v1916 = vmul.f32 %v1619, 0.0051020407
  %v1917 = vmul.f32 %v1623, 0.0051020407
  %v1918 = vmul.f32 %v1627, 0.0051020407
  %v1919 = vmul.f32 %v1631, 0.0051020407
  %v1920 = vmul.f32 %v1635, 0.0051020407
  %v1921 = vmul.f32 %v1639, 0.0051020407
  %v1922 = vmul.f32 %v1643, 0.0051020407
  %v1923 = vmul.f32 %v1647, 0.0051020407
  %v1924 = vmul.f32 %v1651, 0.0051020407
  %v1925 = vmul.f32 %v1655, 0.0051020407
  %v1926 = vmul.f32 %v1659, 0.0051020407
  %v1927 = vmul.f32 %v1663, 0.0051020407
  %v1928 = vmul.f32 %v1667, 0.0051020407
  %v1929 = vmul.f32 %v1671, 0.0051020407
  %v1930 = vmul.f32 %v1675, 0.0051020407
  %v1931 = vmul.f32 %v1679, 0.0051020407
  %v1932 = vmul.f32 %v1683, 0.0051020407
  %v1933 = vmul.f32 %v1687, 0.0051020407
  %v1934 = vmul.f32 %v1691, 0.0051020407
  %v1935 = vmul.f32 %v1695, 0.0051020407
  %v1936 = vmul.f32 %v1699, 0.0051020407
  %v1937 = vmul.f32 %v1703, 0.0051020407
  %v1938 = vmul.f32 %v1707, 0.0051020407
  %v1939 = vmul.f32 %v1711, 0.0051020407
  %v1940 = vmul.f32 %v1715, 0.0051020407
  %v1941 = vmul.f32 %v1719, 0.0051020407
  %v1942 = vmul.f32 %v1723, 0.0051020407
  %v1943 = vmul.f32 %v1727, 0.0051020407
  %v1944 = vmul.f32 %v1731, 0.0051020407
  %v1945 = vmul.f32 %v1735, 0.0051020407
  %v1946 = vmul.f32 %v1739, 0.0051020407
  %v1947 = vmul.f32 %v1743, 0.0051020407
  %v1948 = vmul.f32 %v1747, 0.0051020407
  %v1949 = vmul.f32 %v1751, 0.0051020407
  %v1950 = vmul.f32 %v1755, 0.0051020407
  %v1951 = vmul.f32 %v1759, 0.0051020407
  %v1952 = vmul.f32 %v1763, 0.0051020407
  %v1953 = vmul.f32 %v1767, 0.0051020407
  %v1954 = vmul.f32 %v1771, 0.0051020407
  %v1955 = vmul.f32 %v1775, 0.0051020407
  %v1956 = vmul.f32 %v1779, 0.0051020407
  %v1957 = vmul.f32 %v1783, 0.0051020407
  %v1958 = vmul.f32 %v1787, 0.0051020407
  %v1959 = vmul.f32 %v1791, 0.0051020407
  %v1960 = vmul.f32 %v1795, 0.0051020407
  %v1961 = vmul.f32 %v1799, 0.0051020407
  %v1962 = vmul.f32 %v1803, 0.0051020407
  %v1963 = vmul.f32 %v1807, 0.0051020407
  %v1964 = vmul.f32 %v1811, 0.0051020407
  %v1965 = vmul.f32 %v1815, 0.0051020407
  %v1966 = vmul.f32 %v1819, 0.0051020407
  %v1967 = vmul.f32 %v1823, 0.0051020407
  %v1968 = vmul.f32 %v1827, 0.0051020407
  %v1969 = vmul.f32 %v1831, 0.0051020407
  %v1970 = vmul.f32 %v1835, 0.0051020407
  %v1971 = vmul.f32 %v1839, 0.0051020407
  %v1972 = vmul.f32 %v1843, 0.0051020407
  %v1973 = vmul.f32 %v1847, 0.0051020407
  %v1974 = vmul.f32 %v1851, 0.0051020407
  %v1975 = vmul.f32 %v1855, 0.0051020407
  %v1976 = vmul.f32 %v1859, 0.0051020407
  %v1977 = vmul.f32 %v1863, 0.0051020407
  %v1978 = vmul.f32 %v1867, 0.0051020407
  %v1979 = vmul.f32 %v1871, 0.0051020407
  %v1980 = vmul.f32 %v1875, 0.0051020407
  %v1981 = vmul.f32 %v1879, 0.0051020407
  %v1982 = vmul.f32 %v1883, 0.0051020407
  %v1983 = vmul.f32 %v1887, 0.0051020407
  %v1984 = vmul.f32 %v1891, 0.0051020407
  %v1985 = vmul.f32 %v1895, 0.0051020407
  %v1986 = vmul.f32 %v1899, 0.0051020407
  %v1987 = vmul.f32 %v1903, 0.0051020407
  %v1988 = vld [vmem:[%s3] sm:$0xff]
  %v1989 = vld [vmem:[%s3 + $0x8] sm:$0xff]
  %v1990 = vld [vmem:[%s3 + $0x10] sm:$0xff]
  %v1991 = vld [vmem:[%s3 + $0x18] sm:$0xff]
  %v1992 = vld [vmem:[%s3 + $0x20] sm:$0xff]
  %v1993 = vld [vmem:[%s3 + $0x28] sm:$0xff]
  %v1994 = vld [vmem:[%s3 + $0x30] sm:$0xff]
  %v1995 = vld [vmem:[%s3 + $0x38] sm:$0xff]
  %v1996 = vld [vmem:[%s3 + $0x40] sm:$0xff]
  %v1997 = vld [vmem:[%s3 + $0x48] sm:$0xff]
  %v1998 = vld [vmem:[%s3 + $0x50] sm:$0xff]
  %v1999 = vld [vmem:[%s3 + $0x58] sm:$0xff]
  %v2000 = vld [vmem:[%s3 + $0x60] sm:$0xff]
  %v2001 = vld [vmem:[%s3 + $0x68] sm:$0xff]
  %v2002 = vld [vmem:[%s3 + $0x70] sm:$0xff]
  %v2003 = vld [vmem:[%s3 + $0x78] sm:$0xff]
  %v2004 = vld [vmem:[%s3 + $0x80] sm:$0xff]
  %v2005 = vld [vmem:[%s3 + $0x88] sm:$0xff]
  %v2006 = vld [vmem:[%s3 + $0x90] sm:$0xff]
  %v2007 = vld [vmem:[%s3 + $0x98] sm:$0xff]
  %v2008 = vld [vmem:[%s3 + $0xa0] sm:$0xff]
  %v2009 = vld [vmem:[%s3 + $0xa8] sm:$0xff]
  %v2010 = vld [vmem:[%s3 + $0xb0] sm:$0xff]
  %v2011 = vld [vmem:[%s3 + $0xb8] sm:$0xff]
  %v2012 = vld [vmem:[%s3 + $0xc0] sm:$0xff]
  %v2013 = vld [vmem:[%s3 + $0xc8] sm:$0xff]
  %v2014 = vld [vmem:[%s3 + $0xd0] sm:$0xff]
  %v2015 = vld [vmem:[%s3 + $0xd8] sm:$0xff]
  %v2016 = vld [vmem:[%s3 + $0xe0] sm:$0xff]
  %v2017 = vld [vmem:[%s3 + $0xe8] sm:$0xff]
  %v2018 = vld [vmem:[%s3 + $0xf0] sm:$0xff]
  %v2019 = vld [vmem:[%s3 + $0xf8] sm:$0xff]
  %v2020 = vld [vmem:[%s3 + $0x100] sm:$0xff]
  %v2021 = vld [vmem:[%s3 + $0x108] sm:$0xff]
  %v2022 = vld [vmem:[%s3 + $0x110] sm:$0xff]
  %v2023 = vld [vmem:[%s3 + $0x118] sm:$0xff]
  %v2024 = vld [vmem:[%s3 + $0x120] sm:$0xff]
  %v2025 = vld [vmem:[%s3 + $0x128] sm:$0xff]
  %v2026 = vld [vmem:[%s3 + $0x130] sm:$0xff]
  %v2027 = vld [vmem:[%s3 + $0x138] sm:$0xff]
  %v2028 = vld [vmem:[%s3 + $0x140] sm:$0xff]
  %v2029 = vld [vmem:[%s3 + $0x148] sm:$0xff]
  %v2030 = vld [vmem:[%s3 + $0x150] sm:$0xff]
  %v2031 = vld [vmem:[%s3 + $0x158] sm:$0xff]
  %v2032 = vld [vmem:[%s3 + $0x160] sm:$0xff]
  %v2033 = vld [vmem:[%s3 + $0x168] sm:$0xff]
  %v2034 = vld [vmem:[%s3 + $0x170] sm:$0xff]
  %v2035 = vld [vmem:[%s3 + $0x178] sm:$0xff]
  %v2036 = vld [vmem:[%s3 + $0x180] sm:$0xff]
  %v2037 = vld [vmem:[%s3 + $0x188] sm:$0xff]
  %v2038 = vld [vmem:[%s3 + $0x190] sm:$0xff]
  %v2039 = vld [vmem:[%s3 + $0x198] sm:$0xff]
  %v2040 = vld [vmem:[%s3 + $0x1a0] sm:$0xff]
  %v2041 = vld [vmem:[%s3 + $0x1a8] sm:$0xff]
  %v2042 = vld [vmem:[%s3 + $0x1b0] sm:$0xff]
  %v2043 = vld [vmem:[%s3 + $0x1b8] sm:$0xff]
  %v2044 = vld [vmem:[%s3 + $0x1c0] sm:$0xff]
  %v2045 = vld [vmem:[%s3 + $0x1c8] sm:$0xff]
  %v2046 = vld [vmem:[%s3 + $0x1d0] sm:$0xff]
  %v2047 = vld [vmem:[%s3 + $0x1d8] sm:$0xff]
  %v2048 = vld [vmem:[%s3 + $0x1e0] sm:$0xff]
  %v2049 = vld [vmem:[%s3 + $0x1e8] sm:$0xff]
  %v2050 = vld [vmem:[%s3 + $0x1f0] sm:$0xff]
  %v2051 = vld [vmem:[%s3 + $0x1f8] sm:$0xff]
  %v2052 = vld [vmem:[%s3 + $0x200] sm:$0xff]
  %v2053 = vld [vmem:[%s3 + $0x208] sm:$0xff]
  %v2054 = vld [vmem:[%s3 + $0x210] sm:$0xff]
  %v2055 = vld [vmem:[%s3 + $0x218] sm:$0xff]
  %v2056 = vld [vmem:[%s3 + $0x220] sm:$0xff]
  %v2057 = vld [vmem:[%s3 + $0x228] sm:$0xff]
  %v2058 = vld [vmem:[%s3 + $0x230] sm:$0xff]
  %v2059 = vld [vmem:[%s3 + $0x238] sm:$0xff]
  %v2060 = vld [vmem:[%s3 + $0x240] sm:$0xff]
  %v2061 = vld [vmem:[%s3 + $0x248] sm:$0xff]
  %v2062 = vld [vmem:[%s3 + $0x250] sm:$0xff]
  %v2063 = vld [vmem:[%s3 + $0x258] sm:$0xff]
  %v2064 = vld [vmem:[%s3 + $0x260] sm:$0xff]
  %v2065 = vld [vmem:[%s3 + $0x268] sm:$0xff]
  %v2066 = vld [vmem:[%s3 + $0x270] sm:$0xff]
  %v2067 = vld [vmem:[%s3 + $0x278] sm:$0xff]
  %v2068 = vld [vmem:[%s3 + $0x280] sm:$0xff]
  %v2069 = vld [vmem:[%s3 + $0x288] sm:$0xff]
  %v2070 = vld [vmem:[%s3 + $0x290] sm:$0xff]
  %v2071 = vld [vmem:[%s3 + $0x298] sm:$0xff]
  %v2072 = vadd.f32 %v1904, 1e-05
  %v2073 = vadd.f32 %v1905, 1e-05
  %v2074 = vadd.f32 %v1906, 1e-05
  %v2075 = vadd.f32 %v1907, 1e-05
  %v2076 = vadd.f32 %v1908, 1e-05
  %v2077 = vadd.f32 %v1909, 1e-05
  %v2078 = vadd.f32 %v1910, 1e-05
  %v2079 = vadd.f32 %v1911, 1e-05
  %v2080 = vadd.f32 %v1912, 1e-05
  %v2081 = vadd.f32 %v1913, 1e-05
  %v2082 = vadd.f32 %v1914, 1e-05
  %v2083 = vadd.f32 %v1915, 1e-05
  %v2084 = vadd.f32 %v1916, 1e-05
  %v2085 = vadd.f32 %v1917, 1e-05
  %v2086 = vadd.f32 %v1918, 1e-05
  %v2087 = vadd.f32 %v1919, 1e-05
  %v2088 = vadd.f32 %v1920, 1e-05
  %v2089 = vadd.f32 %v1921, 1e-05
  %v2090 = vadd.f32 %v1922, 1e-05
  %v2091 = vadd.f32 %v1923, 1e-05
  %v2092 = vadd.f32 %v1924, 1e-05
  %v2093 = vadd.f32 %v1925, 1e-05
  %v2094 = vadd.f32 %v1926, 1e-05
  %v2095 = vadd.f32 %v1927, 1e-05
  %v2096 = vadd.f32 %v1928, 1e-05
  %v2097 = vadd.f32 %v1929, 1e-05
  %v2098 = vadd.f32 %v1930, 1e-05
  %v2099 = vadd.f32 %v1931, 1e-05
  %v2100 = vadd.f32 %v1932, 1e-05
  %v2101 = vadd.f32 %v1933, 1e-05
  %v2102 = vadd.f32 %v1934, 1e-05
  %v2103 = vadd.f32 %v1935, 1e-05
  %v2104 = vadd.f32 %v1936, 1e-05
  %v2105 = vadd.f32 %v1937, 1e-05
  %v2106 = vadd.f32 %v1938, 1e-05
  %v2107 = vadd.f32 %v1939, 1e-05
  %v2108 = vadd.f32 %v1940, 1e-05
  %v2109 = vadd.f32 %v1941, 1e-05
  %v2110 = vadd.f32 %v1942, 1e-05
  %v2111 = vadd.f32 %v1943, 1e-05
  %v2112 = vadd.f32 %v1944, 1e-05
  %v2113 = vadd.f32 %v1945, 1e-05
  %v2114 = vadd.f32 %v1946, 1e-05
  %v2115 = vadd.f32 %v1947, 1e-05
  %v2116 = vadd.f32 %v1948, 1e-05
  %v2117 = vadd.f32 %v1949, 1e-05
  %v2118 = vadd.f32 %v1950, 1e-05
  %v2119 = vadd.f32 %v1951, 1e-05
  %v2120 = vadd.f32 %v1952, 1e-05
  %v2121 = vadd.f32 %v1953, 1e-05
  %v2122 = vadd.f32 %v1954, 1e-05
  %v2123 = vadd.f32 %v1955, 1e-05
  %v2124 = vadd.f32 %v1956, 1e-05
  %v2125 = vadd.f32 %v1957, 1e-05
  %v2126 = vadd.f32 %v1958, 1e-05
  %v2127 = vadd.f32 %v1959, 1e-05
  %v2128 = vadd.f32 %v1960, 1e-05
  %v2129 = vadd.f32 %v1961, 1e-05
  %v2130 = vadd.f32 %v1962, 1e-05
  %v2131 = vadd.f32 %v1963, 1e-05
  %v2132 = vadd.f32 %v1964, 1e-05
  %v2133 = vadd.f32 %v1965, 1e-05
  %v2134 = vadd.f32 %v1966, 1e-05
  %v2135 = vadd.f32 %v1967, 1e-05
  %v2136 = vadd.f32 %v1968, 1e-05
  %v2137 = vadd.f32 %v1969, 1e-05
  %v2138 = vadd.f32 %v1970, 1e-05
  %v2139 = vadd.f32 %v1971, 1e-05
  %v2140 = vadd.f32 %v1972, 1e-05
  %v2141 = vadd.f32 %v1973, 1e-05
  %v2142 = vadd.f32 %v1974, 1e-05
  %v2143 = vadd.f32 %v1975, 1e-05
  %v2144 = vadd.f32 %v1976, 1e-05
  %v2145 = vadd.f32 %v1977, 1e-05
  %v2146 = vadd.f32 %v1978, 1e-05
  %v2147 = vadd.f32 %v1979, 1e-05
  %v2148 = vadd.f32 %v1980, 1e-05
  %v2149 = vadd.f32 %v1981, 1e-05
  %v2150 = vadd.f32 %v1982, 1e-05
  %v2151 = vadd.f32 %v1983, 1e-05
  %v2152 = vadd.f32 %v1984, 1e-05
  %v2153 = vadd.f32 %v1985, 1e-05
  %v2154 = vadd.f32 %v1986, 1e-05
  %v2155 = vadd.f32 %v1987, 1e-05
  %v2156 = vrsqrt.pop %v2072
  %v2157 = vmul.f32 %v2156, %v2072
  %v2158 = vmul.f32 %v2157, %v2156
  %v2159 = vmul.f32 0.5, %v2158
  %v2160 = vsub.f32 1.5, %v2159
  %v2161 = vmul.f32 %v2156, %v2160
  %vm2162 = vweird.f32 %v2072
  %vm2163 = vweird.f32 %v2156
  %vm2164 = vmor %vm2162, %vm2163
  %v2165 = vsel %vm2164, %v2156, %v2161
  %v2166 = vrsqrt.pop %v2073
  %v2167 = vmul.f32 %v2166, %v2073
  %v2168 = vmul.f32 %v2167, %v2166
  %v2169 = vmul.f32 0.5, %v2168
  %v2170 = vsub.f32 1.5, %v2169
  %v2171 = vmul.f32 %v2166, %v2170
  %vm2172 = vweird.f32 %v2073
  %vm2173 = vweird.f32 %v2166
  %vm2174 = vmor %vm2172, %vm2173
  %v2175 = vsel %vm2174, %v2166, %v2171
  %v2176 = vrsqrt.pop %v2074
  %v2177 = vmul.f32 %v2176, %v2074
  %v2178 = vmul.f32 %v2177, %v2176
  %v2179 = vmul.f32 0.5, %v2178
  %v2180 = vsub.f32 1.5, %v2179
  %v2181 = vmul.f32 %v2176, %v2180
  %vm2182 = vweird.f32 %v2074
  %vm2183 = vweird.f32 %v2176
  %vm2184 = vmor %vm2182, %vm2183
  %v2185 = vsel %vm2184, %v2176, %v2181
  %v2186 = vrsqrt.pop %v2075
  %v2187 = vmul.f32 %v2186, %v2075
  %v2188 = vmul.f32 %v2187, %v2186
  %v2189 = vmul.f32 0.5, %v2188
  %v2190 = vsub.f32 1.5, %v2189
  %v2191 = vmul.f32 %v2186, %v2190
  %vm2192 = vweird.f32 %v2075
  %vm2193 = vweird.f32 %v2186
  %vm2194 = vmor %vm2192, %vm2193
  %v2195 = vsel %vm2194, %v2186, %v2191
  %v2196 = vrsqrt.pop %v2076
  %v2197 = vmul.f32 %v2196, %v2076
  %v2198 = vmul.f32 %v2197, %v2196
  %v2199 = vmul.f32 0.5, %v2198
  %v2200 = vsub.f32 1.5, %v2199
  %v2201 = vmul.f32 %v2196, %v2200
  %vm2202 = vweird.f32 %v2076
  %vm2203 = vweird.f32 %v2196
  %vm2204 = vmor %vm2202, %vm2203
  %v2205 = vsel %vm2204, %v2196, %v2201
  %v2206 = vrsqrt.pop %v2077
  %v2207 = vmul.f32 %v2206, %v2077
  %v2208 = vmul.f32 %v2207, %v2206
  %v2209 = vmul.f32 0.5, %v2208
  %v2210 = vsub.f32 1.5, %v2209
  %v2211 = vmul.f32 %v2206, %v2210
  %vm2212 = vweird.f32 %v2077
  %vm2213 = vweird.f32 %v2206
  %vm2214 = vmor %vm2212, %vm2213
  %v2215 = vsel %vm2214, %v2206, %v2211
  %v2216 = vrsqrt.pop %v2078
  %v2217 = vmul.f32 %v2216, %v2078
  %v2218 = vmul.f32 %v2217, %v2216
  %v2219 = vmul.f32 0.5, %v2218
  %v2220 = vsub.f32 1.5, %v2219
  %v2221 = vmul.f32 %v2216, %v2220
  %vm2222 = vweird.f32 %v2078
  %vm2223 = vweird.f32 %v2216
  %vm2224 = vmor %vm2222, %vm2223
  %v2225 = vsel %vm2224, %v2216, %v2221
  %v2226 = vrsqrt.pop %v2079
  %v2227 = vmul.f32 %v2226, %v2079
  %v2228 = vmul.f32 %v2227, %v2226
  %v2229 = vmul.f32 0.5, %v2228
  %v2230 = vsub.f32 1.5, %v2229
  %v2231 = vmul.f32 %v2226, %v2230
  %vm2232 = vweird.f32 %v2079
  %vm2233 = vweird.f32 %v2226
  %vm2234 = vmor %vm2232, %vm2233
  %v2235 = vsel %vm2234, %v2226, %v2231
  %v2236 = vrsqrt.pop %v2080
  %v2237 = vmul.f32 %v2236, %v2080
  %v2238 = vmul.f32 %v2237, %v2236
  %v2239 = vmul.f32 0.5, %v2238
  %v2240 = vsub.f32 1.5, %v2239
  %v2241 = vmul.f32 %v2236, %v2240
  %vm2242 = vweird.f32 %v2080
  %vm2243 = vweird.f32 %v2236
  %vm2244 = vmor %vm2242, %vm2243
  %v2245 = vsel %vm2244, %v2236, %v2241
  %v2246 = vrsqrt.pop %v2081
  %v2247 = vmul.f32 %v2246, %v2081
  %v2248 = vmul.f32 %v2247, %v2246
  %v2249 = vmul.f32 0.5, %v2248
  %v2250 = vsub.f32 1.5, %v2249
  %v2251 = vmul.f32 %v2246, %v2250
  %vm2252 = vweird.f32 %v2081
  %vm2253 = vweird.f32 %v2246
  %vm2254 = vmor %vm2252, %vm2253
  %v2255 = vsel %vm2254, %v2246, %v2251
  %v2256 = vrsqrt.pop %v2082
  %v2257 = vmul.f32 %v2256, %v2082
  %v2258 = vmul.f32 %v2257, %v2256
  %v2259 = vmul.f32 0.5, %v2258
  %v2260 = vsub.f32 1.5, %v2259
  %v2261 = vmul.f32 %v2256, %v2260
  %vm2262 = vweird.f32 %v2082
  %vm2263 = vweird.f32 %v2256
  %vm2264 = vmor %vm2262, %vm2263
  %v2265 = vsel %vm2264, %v2256, %v2261
  %v2266 = vrsqrt.pop %v2083
  %v2267 = vmul.f32 %v2266, %v2083
  %v2268 = vmul.f32 %v2267, %v2266
  %v2269 = vmul.f32 0.5, %v2268
  %v2270 = vsub.f32 1.5, %v2269
  %v2271 = vmul.f32 %v2266, %v2270
  %vm2272 = vweird.f32 %v2083
  %vm2273 = vweird.f32 %v2266
  %vm2274 = vmor %vm2272, %vm2273
  %v2275 = vsel %vm2274, %v2266, %v2271
  %v2276 = vrsqrt.pop %v2084
  %v2277 = vmul.f32 %v2276, %v2084
  %v2278 = vmul.f32 %v2277, %v2276
  %v2279 = vmul.f32 0.5, %v2278
  %v2280 = vsub.f32 1.5, %v2279
  %v2281 = vmul.f32 %v2276, %v2280
  %vm2282 = vweird.f32 %v2084
  %vm2283 = vweird.f32 %v2276
  %vm2284 = vmor %vm2282, %vm2283
  %v2285 = vsel %vm2284, %v2276, %v2281
  %v2286 = vrsqrt.pop %v2085
  %v2287 = vmul.f32 %v2286, %v2085
  %v2288 = vmul.f32 %v2287, %v2286
  %v2289 = vmul.f32 0.5, %v2288
  %v2290 = vsub.f32 1.5, %v2289
  %v2291 = vmul.f32 %v2286, %v2290
  %vm2292 = vweird.f32 %v2085
  %vm2293 = vweird.f32 %v2286
  %vm2294 = vmor %vm2292, %vm2293
  %v2295 = vsel %vm2294, %v2286, %v2291
  %v2296 = vrsqrt.pop %v2086
  %v2297 = vmul.f32 %v2296, %v2086
  %v2298 = vmul.f32 %v2297, %v2296
  %v2299 = vmul.f32 0.5, %v2298
  %v2300 = vsub.f32 1.5, %v2299
  %v2301 = vmul.f32 %v2296, %v2300
  %vm2302 = vweird.f32 %v2086
  %vm2303 = vweird.f32 %v2296
  %vm2304 = vmor %vm2302, %vm2303
  %v2305 = vsel %vm2304, %v2296, %v2301
  %v2306 = vrsqrt.pop %v2087
  %v2307 = vmul.f32 %v2306, %v2087
  %v2308 = vmul.f32 %v2307, %v2306
  %v2309 = vmul.f32 0.5, %v2308
  %v2310 = vsub.f32 1.5, %v2309
  %v2311 = vmul.f32 %v2306, %v2310
  %vm2312 = vweird.f32 %v2087
  %vm2313 = vweird.f32 %v2306
  %vm2314 = vmor %vm2312, %vm2313
  %v2315 = vsel %vm2314, %v2306, %v2311
  %v2316 = vrsqrt.pop %v2088
  %v2317 = vmul.f32 %v2316, %v2088
  %v2318 = vmul.f32 %v2317, %v2316
  %v2319 = vmul.f32 0.5, %v2318
  %v2320 = vsub.f32 1.5, %v2319
  %v2321 = vmul.f32 %v2316, %v2320
  %vm2322 = vweird.f32 %v2088
  %vm2323 = vweird.f32 %v2316
  %vm2324 = vmor %vm2322, %vm2323
  %v2325 = vsel %vm2324, %v2316, %v2321
  %v2326 = vrsqrt.pop %v2089
  %v2327 = vmul.f32 %v2326, %v2089
  %v2328 = vmul.f32 %v2327, %v2326
  %v2329 = vmul.f32 0.5, %v2328
  %v2330 = vsub.f32 1.5, %v2329
  %v2331 = vmul.f32 %v2326, %v2330
  %vm2332 = vweird.f32 %v2089
  %vm2333 = vweird.f32 %v2326
  %vm2334 = vmor %vm2332, %vm2333
  %v2335 = vsel %vm2334, %v2326, %v2331
  %v2336 = vrsqrt.pop %v2090
  %v2337 = vmul.f32 %v2336, %v2090
  %v2338 = vmul.f32 %v2337, %v2336
  %v2339 = vmul.f32 0.5, %v2338
  %v2340 = vsub.f32 1.5, %v2339
  %v2341 = vmul.f32 %v2336, %v2340
  %vm2342 = vweird.f32 %v2090
  %vm2343 = vweird.f32 %v2336
  %vm2344 = vmor %vm2342, %vm2343
  %v2345 = vsel %vm2344, %v2336, %v2341
  %v2346 = vrsqrt.pop %v2091
  %v2347 = vmul.f32 %v2346, %v2091
  %v2348 = vmul.f32 %v2347, %v2346
  %v2349 = vmul.f32 0.5, %v2348
  %v2350 = vsub.f32 1.5, %v2349
  %v2351 = vmul.f32 %v2346, %v2350
  %vm2352 = vweird.f32 %v2091
  %vm2353 = vweird.f32 %v2346
  %vm2354 = vmor %vm2352, %vm2353
  %v2355 = vsel %vm2354, %v2346, %v2351
  %v2356 = vrsqrt.pop %v2092
  %v2357 = vmul.f32 %v2356, %v2092
  %v2358 = vmul.f32 %v2357, %v2356
  %v2359 = vmul.f32 0.5, %v2358
  %v2360 = vsub.f32 1.5, %v2359
  %v2361 = vmul.f32 %v2356, %v2360
  %vm2362 = vweird.f32 %v2092
  %vm2363 = vweird.f32 %v2356
  %vm2364 = vmor %vm2362, %vm2363
  %v2365 = vsel %vm2364, %v2356, %v2361
  %v2366 = vrsqrt.pop %v2093
  %v2367 = vmul.f32 %v2366, %v2093
  %v2368 = vmul.f32 %v2367, %v2366
  %v2369 = vmul.f32 0.5, %v2368
  %v2370 = vsub.f32 1.5, %v2369
  %v2371 = vmul.f32 %v2366, %v2370
  %vm2372 = vweird.f32 %v2093
  %vm2373 = vweird.f32 %v2366
  %vm2374 = vmor %vm2372, %vm2373
  %v2375 = vsel %vm2374, %v2366, %v2371
  %v2376 = vrsqrt.pop %v2094
  %v2377 = vmul.f32 %v2376, %v2094
  %v2378 = vmul.f32 %v2377, %v2376
  %v2379 = vmul.f32 0.5, %v2378
  %v2380 = vsub.f32 1.5, %v2379
  %v2381 = vmul.f32 %v2376, %v2380
  %vm2382 = vweird.f32 %v2094
  %vm2383 = vweird.f32 %v2376
  %vm2384 = vmor %vm2382, %vm2383
  %v2385 = vsel %vm2384, %v2376, %v2381
  %v2386 = vrsqrt.pop %v2095
  %v2387 = vmul.f32 %v2386, %v2095
  %v2388 = vmul.f32 %v2387, %v2386
  %v2389 = vmul.f32 0.5, %v2388
  %v2390 = vsub.f32 1.5, %v2389
  %v2391 = vmul.f32 %v2386, %v2390
  %vm2392 = vweird.f32 %v2095
  %vm2393 = vweird.f32 %v2386
  %vm2394 = vmor %vm2392, %vm2393
  %v2395 = vsel %vm2394, %v2386, %v2391
  %v2396 = vrsqrt.pop %v2096
  %v2397 = vmul.f32 %v2396, %v2096
  %v2398 = vmul.f32 %v2397, %v2396
  %v2399 = vmul.f32 0.5, %v2398
  %v2400 = vsub.f32 1.5, %v2399
  %v2401 = vmul.f32 %v2396, %v2400
  %vm2402 = vweird.f32 %v2096
  %vm2403 = vweird.f32 %v2396
  %vm2404 = vmor %vm2402, %vm2403
  %v2405 = vsel %vm2404, %v2396, %v2401
  %v2406 = vrsqrt.pop %v2097
  %v2407 = vmul.f32 %v2406, %v2097
  %v2408 = vmul.f32 %v2407, %v2406
  %v2409 = vmul.f32 0.5, %v2408
  %v2410 = vsub.f32 1.5, %v2409
  %v2411 = vmul.f32 %v2406, %v2410
  %vm2412 = vweird.f32 %v2097
  %vm2413 = vweird.f32 %v2406
  %vm2414 = vmor %vm2412, %vm2413
  %v2415 = vsel %vm2414, %v2406, %v2411
  %v2416 = vrsqrt.pop %v2098
  %v2417 = vmul.f32 %v2416, %v2098
  %v2418 = vmul.f32 %v2417, %v2416
  %v2419 = vmul.f32 0.5, %v2418
  %v2420 = vsub.f32 1.5, %v2419
  %v2421 = vmul.f32 %v2416, %v2420
  %vm2422 = vweird.f32 %v2098
  %vm2423 = vweird.f32 %v2416
  %vm2424 = vmor %vm2422, %vm2423
  %v2425 = vsel %vm2424, %v2416, %v2421
  %v2426 = vrsqrt.pop %v2099
  %v2427 = vmul.f32 %v2426, %v2099
  %v2428 = vmul.f32 %v2427, %v2426
  %v2429 = vmul.f32 0.5, %v2428
  %v2430 = vsub.f32 1.5, %v2429
  %v2431 = vmul.f32 %v2426, %v2430
  %vm2432 = vweird.f32 %v2099
  %vm2433 = vweird.f32 %v2426
  %vm2434 = vmor %vm2432, %vm2433
  %v2435 = vsel %vm2434, %v2426, %v2431
  %v2436 = vrsqrt.pop %v2100
  %v2437 = vmul.f32 %v2436, %v2100
  %v2438 = vmul.f32 %v2437, %v2436
  %v2439 = vmul.f32 0.5, %v2438
  %v2440 = vsub.f32 1.5, %v2439
  %v2441 = vmul.f32 %v2436, %v2440
  %vm2442 = vweird.f32 %v2100
  %vm2443 = vweird.f32 %v2436
  %vm2444 = vmor %vm2442, %vm2443
  %v2445 = vsel %vm2444, %v2436, %v2441
  %v2446 = vrsqrt.pop %v2101
  %v2447 = vmul.f32 %v2446, %v2101
  %v2448 = vmul.f32 %v2447, %v2446
  %v2449 = vmul.f32 0.5, %v2448
  %v2450 = vsub.f32 1.5, %v2449
  %v2451 = vmul.f32 %v2446, %v2450
  %vm2452 = vweird.f32 %v2101
  %vm2453 = vweird.f32 %v2446
  %vm2454 = vmor %vm2452, %vm2453
  %v2455 = vsel %vm2454, %v2446, %v2451
  %v2456 = vrsqrt.pop %v2102
  %v2457 = vmul.f32 %v2456, %v2102
  %v2458 = vmul.f32 %v2457, %v2456
  %v2459 = vmul.f32 0.5, %v2458
  %v2460 = vsub.f32 1.5, %v2459
  %v2461 = vmul.f32 %v2456, %v2460
  %vm2462 = vweird.f32 %v2102
  %vm2463 = vweird.f32 %v2456
  %vm2464 = vmor %vm2462, %vm2463
  %v2465 = vsel %vm2464, %v2456, %v2461
  %v2466 = vrsqrt.pop %v2103
  %v2467 = vmul.f32 %v2466, %v2103
  %v2468 = vmul.f32 %v2467, %v2466
  %v2469 = vmul.f32 0.5, %v2468
  %v2470 = vsub.f32 1.5, %v2469
  %v2471 = vmul.f32 %v2466, %v2470
  %vm2472 = vweird.f32 %v2103
  %vm2473 = vweird.f32 %v2466
  %vm2474 = vmor %vm2472, %vm2473
  %v2475 = vsel %vm2474, %v2466, %v2471
  %v2476 = vrsqrt.pop %v2104
  %v2477 = vmul.f32 %v2476, %v2104
  %v2478 = vmul.f32 %v2477, %v2476
  %v2479 = vmul.f32 0.5, %v2478
  %v2480 = vsub.f32 1.5, %v2479
  %v2481 = vmul.f32 %v2476, %v2480
  %vm2482 = vweird.f32 %v2104
  %vm2483 = vweird.f32 %v2476
  %vm2484 = vmor %vm2482, %vm2483
  %v2485 = vsel %vm2484, %v2476, %v2481
  %v2486 = vrsqrt.pop %v2105
  %v2487 = vmul.f32 %v2486, %v2105
  %v2488 = vmul.f32 %v2487, %v2486
  %v2489 = vmul.f32 0.5, %v2488
  %v2490 = vsub.f32 1.5, %v2489
  %v2491 = vmul.f32 %v2486, %v2490
  %vm2492 = vweird.f32 %v2105
  %vm2493 = vweird.f32 %v2486
  %vm2494 = vmor %vm2492, %vm2493
  %v2495 = vsel %vm2494, %v2486, %v2491
  %v2496 = vrsqrt.pop %v2106
  %v2497 = vmul.f32 %v2496, %v2106
  %v2498 = vmul.f32 %v2497, %v2496
  %v2499 = vmul.f32 0.5, %v2498
  %v2500 = vsub.f32 1.5, %v2499
  %v2501 = vmul.f32 %v2496, %v2500
  %vm2502 = vweird.f32 %v2106
  %vm2503 = vweird.f32 %v2496
  %vm2504 = vmor %vm2502, %vm2503
  %v2505 = vsel %vm2504, %v2496, %v2501
  %v2506 = vrsqrt.pop %v2107
  %v2507 = vmul.f32 %v2506, %v2107
  %v2508 = vmul.f32 %v2507, %v2506
  %v2509 = vmul.f32 0.5, %v2508
  %v2510 = vsub.f32 1.5, %v2509
  %v2511 = vmul.f32 %v2506, %v2510
  %vm2512 = vweird.f32 %v2107
  %vm2513 = vweird.f32 %v2506
  %vm2514 = vmor %vm2512, %vm2513
  %v2515 = vsel %vm2514, %v2506, %v2511
  %v2516 = vrsqrt.pop %v2108
  %v2517 = vmul.f32 %v2516, %v2108
  %v2518 = vmul.f32 %v2517, %v2516
  %v2519 = vmul.f32 0.5, %v2518
  %v2520 = vsub.f32 1.5, %v2519
  %v2521 = vmul.f32 %v2516, %v2520
  %vm2522 = vweird.f32 %v2108
  %vm2523 = vweird.f32 %v2516
  %vm2524 = vmor %vm2522, %vm2523
  %v2525 = vsel %vm2524, %v2516, %v2521
  %v2526 = vrsqrt.pop %v2109
  %v2527 = vmul.f32 %v2526, %v2109
  %v2528 = vmul.f32 %v2527, %v2526
  %v2529 = vmul.f32 0.5, %v2528
  %v2530 = vsub.f32 1.5, %v2529
  %v2531 = vmul.f32 %v2526, %v2530
  %vm2532 = vweird.f32 %v2109
  %vm2533 = vweird.f32 %v2526
  %vm2534 = vmor %vm2532, %vm2533
  %v2535 = vsel %vm2534, %v2526, %v2531
  %v2536 = vrsqrt.pop %v2110
  %v2537 = vmul.f32 %v2536, %v2110
  %v2538 = vmul.f32 %v2537, %v2536
  %v2539 = vmul.f32 0.5, %v2538
  %v2540 = vsub.f32 1.5, %v2539
  %v2541 = vmul.f32 %v2536, %v2540
  %vm2542 = vweird.f32 %v2110
  %vm2543 = vweird.f32 %v2536
  %vm2544 = vmor %vm2542, %vm2543
  %v2545 = vsel %vm2544, %v2536, %v2541
  %v2546 = vrsqrt.pop %v2111
  %v2547 = vmul.f32 %v2546, %v2111
  %v2548 = vmul.f32 %v2547, %v2546
  %v2549 = vmul.f32 0.5, %v2548
  %v2550 = vsub.f32 1.5, %v2549
  %v2551 = vmul.f32 %v2546, %v2550
  %vm2552 = vweird.f32 %v2111
  %vm2553 = vweird.f32 %v2546
  %vm2554 = vmor %vm2552, %vm2553
  %v2555 = vsel %vm2554, %v2546, %v2551
  %v2556 = vrsqrt.pop %v2112
  %v2557 = vmul.f32 %v2556, %v2112
  %v2558 = vmul.f32 %v2557, %v2556
  %v2559 = vmul.f32 0.5, %v2558
  %v2560 = vsub.f32 1.5, %v2559
  %v2561 = vmul.f32 %v2556, %v2560
  %vm2562 = vweird.f32 %v2112
  %vm2563 = vweird.f32 %v2556
  %vm2564 = vmor %vm2562, %vm2563
  %v2565 = vsel %vm2564, %v2556, %v2561
  %v2566 = vrsqrt.pop %v2113
  %v2567 = vmul.f32 %v2566, %v2113
  %v2568 = vmul.f32 %v2567, %v2566
  %v2569 = vmul.f32 0.5, %v2568
  %v2570 = vsub.f32 1.5, %v2569
  %v2571 = vmul.f32 %v2566, %v2570
  %vm2572 = vweird.f32 %v2113
  %vm2573 = vweird.f32 %v2566
  %vm2574 = vmor %vm2572, %vm2573
  %v2575 = vsel %vm2574, %v2566, %v2571
  %v2576 = vrsqrt.pop %v2114
  %v2577 = vmul.f32 %v2576, %v2114
  %v2578 = vmul.f32 %v2577, %v2576
  %v2579 = vmul.f32 0.5, %v2578
  %v2580 = vsub.f32 1.5, %v2579
  %v2581 = vmul.f32 %v2576, %v2580
  %vm2582 = vweird.f32 %v2114
  %vm2583 = vweird.f32 %v2576
  %vm2584 = vmor %vm2582, %vm2583
  %v2585 = vsel %vm2584, %v2576, %v2581
  %v2586 = vrsqrt.pop %v2115
  %v2587 = vmul.f32 %v2586, %v2115
  %v2588 = vmul.f32 %v2587, %v2586
  %v2589 = vmul.f32 0.5, %v2588
  %v2590 = vsub.f32 1.5, %v2589
  %v2591 = vmul.f32 %v2586, %v2590
  %vm2592 = vweird.f32 %v2115
  %vm2593 = vweird.f32 %v2586
  %vm2594 = vmor %vm2592, %vm2593
  %v2595 = vsel %vm2594, %v2586, %v2591
  %v2596 = vrsqrt.pop %v2116
  %v2597 = vmul.f32 %v2596, %v2116
  %v2598 = vmul.f32 %v2597, %v2596
  %v2599 = vmul.f32 0.5, %v2598
  %v2600 = vsub.f32 1.5, %v2599
  %v2601 = vmul.f32 %v2596, %v2600
  %vm2602 = vweird.f32 %v2116
  %vm2603 = vweird.f32 %v2596
  %vm2604 = vmor %vm2602, %vm2603
  %v2605 = vsel %vm2604, %v2596, %v2601
  %v2606 = vrsqrt.pop %v2117
  %v2607 = vmul.f32 %v2606, %v2117
  %v2608 = vmul.f32 %v2607, %v2606
  %v2609 = vmul.f32 0.5, %v2608
  %v2610 = vsub.f32 1.5, %v2609
  %v2611 = vmul.f32 %v2606, %v2610
  %vm2612 = vweird.f32 %v2117
  %vm2613 = vweird.f32 %v2606
  %vm2614 = vmor %vm2612, %vm2613
  %v2615 = vsel %vm2614, %v2606, %v2611
  %v2616 = vrsqrt.pop %v2118
  %v2617 = vmul.f32 %v2616, %v2118
  %v2618 = vmul.f32 %v2617, %v2616
  %v2619 = vmul.f32 0.5, %v2618
  %v2620 = vsub.f32 1.5, %v2619
  %v2621 = vmul.f32 %v2616, %v2620
  %vm2622 = vweird.f32 %v2118
  %vm2623 = vweird.f32 %v2616
  %vm2624 = vmor %vm2622, %vm2623
  %v2625 = vsel %vm2624, %v2616, %v2621
  %v2626 = vrsqrt.pop %v2119
  %v2627 = vmul.f32 %v2626, %v2119
  %v2628 = vmul.f32 %v2627, %v2626
  %v2629 = vmul.f32 0.5, %v2628
  %v2630 = vsub.f32 1.5, %v2629
  %v2631 = vmul.f32 %v2626, %v2630
  %vm2632 = vweird.f32 %v2119
  %vm2633 = vweird.f32 %v2626
  %vm2634 = vmor %vm2632, %vm2633
  %v2635 = vsel %vm2634, %v2626, %v2631
  %v2636 = vrsqrt.pop %v2120
  %v2637 = vmul.f32 %v2636, %v2120
  %v2638 = vmul.f32 %v2637, %v2636
  %v2639 = vmul.f32 0.5, %v2638
  %v2640 = vsub.f32 1.5, %v2639
  %v2641 = vmul.f32 %v2636, %v2640
  %vm2642 = vweird.f32 %v2120
  %vm2643 = vweird.f32 %v2636
  %vm2644 = vmor %vm2642, %vm2643
  %v2645 = vsel %vm2644, %v2636, %v2641
  %v2646 = vrsqrt.pop %v2121
  %v2647 = vmul.f32 %v2646, %v2121
  %v2648 = vmul.f32 %v2647, %v2646
  %v2649 = vmul.f32 0.5, %v2648
  %v2650 = vsub.f32 1.5, %v2649
  %v2651 = vmul.f32 %v2646, %v2650
  %vm2652 = vweird.f32 %v2121
  %vm2653 = vweird.f32 %v2646
  %vm2654 = vmor %vm2652, %vm2653
  %v2655 = vsel %vm2654, %v2646, %v2651
  %v2656 = vrsqrt.pop %v2122
  %v2657 = vmul.f32 %v2656, %v2122
  %v2658 = vmul.f32 %v2657, %v2656
  %v2659 = vmul.f32 0.5, %v2658
  %v2660 = vsub.f32 1.5, %v2659
  %v2661 = vmul.f32 %v2656, %v2660
  %vm2662 = vweird.f32 %v2122
  %vm2663 = vweird.f32 %v2656
  %vm2664 = vmor %vm2662, %vm2663
  %v2665 = vsel %vm2664, %v2656, %v2661
  %v2666 = vrsqrt.pop %v2123
  %v2667 = vmul.f32 %v2666, %v2123
  %v2668 = vmul.f32 %v2667, %v2666
  %v2669 = vmul.f32 0.5, %v2668
  %v2670 = vsub.f32 1.5, %v2669
  %v2671 = vmul.f32 %v2666, %v2670
  %vm2672 = vweird.f32 %v2123
  %vm2673 = vweird.f32 %v2666
  %vm2674 = vmor %vm2672, %vm2673
  %v2675 = vsel %vm2674, %v2666, %v2671
  %v2676 = vrsqrt.pop %v2124
  %v2677 = vmul.f32 %v2676, %v2124
  %v2678 = vmul.f32 %v2677, %v2676
  %v2679 = vmul.f32 0.5, %v2678
  %v2680 = vsub.f32 1.5, %v2679
  %v2681 = vmul.f32 %v2676, %v2680
  %vm2682 = vweird.f32 %v2124
  %vm2683 = vweird.f32 %v2676
  %vm2684 = vmor %vm2682, %vm2683
  %v2685 = vsel %vm2684, %v2676, %v2681
  %v2686 = vrsqrt.pop %v2125
  %v2687 = vmul.f32 %v2686, %v2125
  %v2688 = vmul.f32 %v2687, %v2686
  %v2689 = vmul.f32 0.5, %v2688
  %v2690 = vsub.f32 1.5, %v2689
  %v2691 = vmul.f32 %v2686, %v2690
  %vm2692 = vweird.f32 %v2125
  %vm2693 = vweird.f32 %v2686
  %vm2694 = vmor %vm2692, %vm2693
  %v2695 = vsel %vm2694, %v2686, %v2691
  %v2696 = vrsqrt.pop %v2126
  %v2697 = vmul.f32 %v2696, %v2126
  %v2698 = vmul.f32 %v2697, %v2696
  %v2699 = vmul.f32 0.5, %v2698
  %v2700 = vsub.f32 1.5, %v2699
  %v2701 = vmul.f32 %v2696, %v2700
  %vm2702 = vweird.f32 %v2126
  %vm2703 = vweird.f32 %v2696
  %vm2704 = vmor %vm2702, %vm2703
  %v2705 = vsel %vm2704, %v2696, %v2701
  %v2706 = vrsqrt.pop %v2127
  %v2707 = vmul.f32 %v2706, %v2127
  %v2708 = vmul.f32 %v2707, %v2706
  %v2709 = vmul.f32 0.5, %v2708
  %v2710 = vsub.f32 1.5, %v2709
  %v2711 = vmul.f32 %v2706, %v2710
  %vm2712 = vweird.f32 %v2127
  %vm2713 = vweird.f32 %v2706
  %vm2714 = vmor %vm2712, %vm2713
  %v2715 = vsel %vm2714, %v2706, %v2711
  %v2716 = vrsqrt.pop %v2128
  %v2717 = vmul.f32 %v2716, %v2128
  %v2718 = vmul.f32 %v2717, %v2716
  %v2719 = vmul.f32 0.5, %v2718
  %v2720 = vsub.f32 1.5, %v2719
  %v2721 = vmul.f32 %v2716, %v2720
  %vm2722 = vweird.f32 %v2128
  %vm2723 = vweird.f32 %v2716
  %vm2724 = vmor %vm2722, %vm2723
  %v2725 = vsel %vm2724, %v2716, %v2721
  %v2726 = vrsqrt.pop %v2129
  %v2727 = vmul.f32 %v2726, %v2129
  %v2728 = vmul.f32 %v2727, %v2726
  %v2729 = vmul.f32 0.5, %v2728
  %v2730 = vsub.f32 1.5, %v2729
  %v2731 = vmul.f32 %v2726, %v2730
  %vm2732 = vweird.f32 %v2129
  %vm2733 = vweird.f32 %v2726
  %vm2734 = vmor %vm2732, %vm2733
  %v2735 = vsel %vm2734, %v2726, %v2731
  %v2736 = vrsqrt.pop %v2130
  %v2737 = vmul.f32 %v2736, %v2130
  %v2738 = vmul.f32 %v2737, %v2736
  %v2739 = vmul.f32 0.5, %v2738
  %v2740 = vsub.f32 1.5, %v2739
  %v2741 = vmul.f32 %v2736, %v2740
  %vm2742 = vweird.f32 %v2130
  %vm2743 = vweird.f32 %v2736
  %vm2744 = vmor %vm2742, %vm2743
  %v2745 = vsel %vm2744, %v2736, %v2741
  %v2746 = vrsqrt.pop %v2131
  %v2747 = vmul.f32 %v2746, %v2131
  %v2748 = vmul.f32 %v2747, %v2746
  %v2749 = vmul.f32 0.5, %v2748
  %v2750 = vsub.f32 1.5, %v2749
  %v2751 = vmul.f32 %v2746, %v2750
  %vm2752 = vweird.f32 %v2131
  %vm2753 = vweird.f32 %v2746
  %vm2754 = vmor %vm2752, %vm2753
  %v2755 = vsel %vm2754, %v2746, %v2751
  %v2756 = vrsqrt.pop %v2132
  %v2757 = vmul.f32 %v2756, %v2132
  %v2758 = vmul.f32 %v2757, %v2756
  %v2759 = vmul.f32 0.5, %v2758
  %v2760 = vsub.f32 1.5, %v2759
  %v2761 = vmul.f32 %v2756, %v2760
  %vm2762 = vweird.f32 %v2132
  %vm2763 = vweird.f32 %v2756
  %vm2764 = vmor %vm2762, %vm2763
  %v2765 = vsel %vm2764, %v2756, %v2761
  %v2766 = vrsqrt.pop %v2133
  %v2767 = vmul.f32 %v2766, %v2133
  %v2768 = vmul.f32 %v2767, %v2766
  %v2769 = vmul.f32 0.5, %v2768
  %v2770 = vsub.f32 1.5, %v2769
  %v2771 = vmul.f32 %v2766, %v2770
  %vm2772 = vweird.f32 %v2133
  %vm2773 = vweird.f32 %v2766
  %vm2774 = vmor %vm2772, %vm2773
  %v2775 = vsel %vm2774, %v2766, %v2771
  %v2776 = vrsqrt.pop %v2134
  %v2777 = vmul.f32 %v2776, %v2134
  %v2778 = vmul.f32 %v2777, %v2776
  %v2779 = vmul.f32 0.5, %v2778
  %v2780 = vsub.f32 1.5, %v2779
  %v2781 = vmul.f32 %v2776, %v2780
  %vm2782 = vweird.f32 %v2134
  %vm2783 = vweird.f32 %v2776
  %vm2784 = vmor %vm2782, %vm2783
  %v2785 = vsel %vm2784, %v2776, %v2781
  %v2786 = vrsqrt.pop %v2135
  %v2787 = vmul.f32 %v2786, %v2135
  %v2788 = vmul.f32 %v2787, %v2786
  %v2789 = vmul.f32 0.5, %v2788
  %v2790 = vsub.f32 1.5, %v2789
  %v2791 = vmul.f32 %v2786, %v2790
  %vm2792 = vweird.f32 %v2135
  %vm2793 = vweird.f32 %v2786
  %vm2794 = vmor %vm2792, %vm2793
  %v2795 = vsel %vm2794, %v2786, %v2791
  %v2796 = vrsqrt.pop %v2136
  %v2797 = vmul.f32 %v2796, %v2136
  %v2798 = vmul.f32 %v2797, %v2796
  %v2799 = vmul.f32 0.5, %v2798
  %v2800 = vsub.f32 1.5, %v2799
  %v2801 = vmul.f32 %v2796, %v2800
  %vm2802 = vweird.f32 %v2136
  %vm2803 = vweird.f32 %v2796
  %vm2804 = vmor %vm2802, %vm2803
  %v2805 = vsel %vm2804, %v2796, %v2801
  %v2806 = vrsqrt.pop %v2137
  %v2807 = vmul.f32 %v2806, %v2137
  %v2808 = vmul.f32 %v2807, %v2806
  %v2809 = vmul.f32 0.5, %v2808
  %v2810 = vsub.f32 1.5, %v2809
  %v2811 = vmul.f32 %v2806, %v2810
  %vm2812 = vweird.f32 %v2137
  %vm2813 = vweird.f32 %v2806
  %vm2814 = vmor %vm2812, %vm2813
  %v2815 = vsel %vm2814, %v2806, %v2811
  %v2816 = vrsqrt.pop %v2138
  %v2817 = vmul.f32 %v2816, %v2138
  %v2818 = vmul.f32 %v2817, %v2816
  %v2819 = vmul.f32 0.5, %v2818
  %v2820 = vsub.f32 1.5, %v2819
  %v2821 = vmul.f32 %v2816, %v2820
  %vm2822 = vweird.f32 %v2138
  %vm2823 = vweird.f32 %v2816
  %vm2824 = vmor %vm2822, %vm2823
  %v2825 = vsel %vm2824, %v2816, %v2821
  %v2826 = vrsqrt.pop %v2139
  %v2827 = vmul.f32 %v2826, %v2139
  %v2828 = vmul.f32 %v2827, %v2826
  %v2829 = vmul.f32 0.5, %v2828
  %v2830 = vsub.f32 1.5, %v2829
  %v2831 = vmul.f32 %v2826, %v2830
  %vm2832 = vweird.f32 %v2139
  %vm2833 = vweird.f32 %v2826
  %vm2834 = vmor %vm2832, %vm2833
  %v2835 = vsel %vm2834, %v2826, %v2831
  %v2836 = vrsqrt.pop %v2140
  %v2837 = vmul.f32 %v2836, %v2140
  %v2838 = vmul.f32 %v2837, %v2836
  %v2839 = vmul.f32 0.5, %v2838
  %v2840 = vsub.f32 1.5, %v2839
  %v2841 = vmul.f32 %v2836, %v2840
  %vm2842 = vweird.f32 %v2140
  %vm2843 = vweird.f32 %v2836
  %vm2844 = vmor %vm2842, %vm2843
  %v2845 = vsel %vm2844, %v2836, %v2841
  %v2846 = vrsqrt.pop %v2141
  %v2847 = vmul.f32 %v2846, %v2141
  %v2848 = vmul.f32 %v2847, %v2846
  %v2849 = vmul.f32 0.5, %v2848
  %v2850 = vsub.f32 1.5, %v2849
  %v2851 = vmul.f32 %v2846, %v2850
  %vm2852 = vweird.f32 %v2141
  %vm2853 = vweird.f32 %v2846
  %vm2854 = vmor %vm2852, %vm2853
  %v2855 = vsel %vm2854, %v2846, %v2851
  %v2856 = vrsqrt.pop %v2142
  %v2857 = vmul.f32 %v2856, %v2142
  %v2858 = vmul.f32 %v2857, %v2856
  %v2859 = vmul.f32 0.5, %v2858
  %v2860 = vsub.f32 1.5, %v2859
  %v2861 = vmul.f32 %v2856, %v2860
  %vm2862 = vweird.f32 %v2142
  %vm2863 = vweird.f32 %v2856
  %vm2864 = vmor %vm2862, %vm2863
  %v2865 = vsel %vm2864, %v2856, %v2861
  %v2866 = vrsqrt.pop %v2143
  %v2867 = vmul.f32 %v2866, %v2143
  %v2868 = vmul.f32 %v2867, %v2866
  %v2869 = vmul.f32 0.5, %v2868
  %v2870 = vsub.f32 1.5, %v2869
  %v2871 = vmul.f32 %v2866, %v2870
  %vm2872 = vweird.f32 %v2143
  %vm2873 = vweird.f32 %v2866
  %vm2874 = vmor %vm2872, %vm2873
  %v2875 = vsel %vm2874, %v2866, %v2871
  %v2876 = vrsqrt.pop %v2144
  %v2877 = vmul.f32 %v2876, %v2144
  %v2878 = vmul.f32 %v2877, %v2876
  %v2879 = vmul.f32 0.5, %v2878
  %v2880 = vsub.f32 1.5, %v2879
  %v2881 = vmul.f32 %v2876, %v2880
  %vm2882 = vweird.f32 %v2144
  %vm2883 = vweird.f32 %v2876
  %vm2884 = vmor %vm2882, %vm2883
  %v2885 = vsel %vm2884, %v2876, %v2881
  %v2886 = vrsqrt.pop %v2145
  %v2887 = vmul.f32 %v2886, %v2145
  %v2888 = vmul.f32 %v2887, %v2886
  %v2889 = vmul.f32 0.5, %v2888
  %v2890 = vsub.f32 1.5, %v2889
  %v2891 = vmul.f32 %v2886, %v2890
  %vm2892 = vweird.f32 %v2145
  %vm2893 = vweird.f32 %v2886
  %vm2894 = vmor %vm2892, %vm2893
  %v2895 = vsel %vm2894, %v2886, %v2891
  %v2896 = vrsqrt.pop %v2146
  %v2897 = vmul.f32 %v2896, %v2146
  %v2898 = vmul.f32 %v2897, %v2896
  %v2899 = vmul.f32 0.5, %v2898
  %v2900 = vsub.f32 1.5, %v2899
  %v2901 = vmul.f32 %v2896, %v2900
  %vm2902 = vweird.f32 %v2146
  %vm2903 = vweird.f32 %v2896
  %vm2904 = vmor %vm2902, %vm2903
  %v2905 = vsel %vm2904, %v2896, %v2901
  %v2906 = vrsqrt.pop %v2147
  %v2907 = vmul.f32 %v2906, %v2147
  %v2908 = vmul.f32 %v2907, %v2906
  %v2909 = vmul.f32 0.5, %v2908
  %v2910 = vsub.f32 1.5, %v2909
  %v2911 = vmul.f32 %v2906, %v2910
  %vm2912 = vweird.f32 %v2147
  %vm2913 = vweird.f32 %v2906
  %vm2914 = vmor %vm2912, %vm2913
  %v2915 = vsel %vm2914, %v2906, %v2911
  %v2916 = vrsqrt.pop %v2148
  %v2917 = vmul.f32 %v2916, %v2148
  %v2918 = vmul.f32 %v2917, %v2916
  %v2919 = vmul.f32 0.5, %v2918
  %v2920 = vsub.f32 1.5, %v2919
  %v2921 = vmul.f32 %v2916, %v2920
  %vm2922 = vweird.f32 %v2148
  %vm2923 = vweird.f32 %v2916
  %vm2924 = vmor %vm2922, %vm2923
  %v2925 = vsel %vm2924, %v2916, %v2921
  %v2926 = vrsqrt.pop %v2149
  %v2927 = vmul.f32 %v2926, %v2149
  %v2928 = vmul.f32 %v2927, %v2926
  %v2929 = vmul.f32 0.5, %v2928
  %v2930 = vsub.f32 1.5, %v2929
  %v2931 = vmul.f32 %v2926, %v2930
  %vm2932 = vweird.f32 %v2149
  %vm2933 = vweird.f32 %v2926
  %vm2934 = vmor %vm2932, %vm2933
  %v2935 = vsel %vm2934, %v2926, %v2931
  %v2936 = vrsqrt.pop %v2150
  %v2937 = vmul.f32 %v2936, %v2150
  %v2938 = vmul.f32 %v2937, %v2936
  %v2939 = vmul.f32 0.5, %v2938
  %v2940 = vsub.f32 1.5, %v2939
  %v2941 = vmul.f32 %v2936, %v2940
  %vm2942 = vweird.f32 %v2150
  %vm2943 = vweird.f32 %v2936
  %vm2944 = vmor %vm2942, %vm2943
  %v2945 = vsel %vm2944, %v2936, %v2941
  %v2946 = vrsqrt.pop %v2151
  %v2947 = vmul.f32 %v2946, %v2151
  %v2948 = vmul.f32 %v2947, %v2946
  %v2949 = vmul.f32 0.5, %v2948
  %v2950 = vsub.f32 1.5, %v2949
  %v2951 = vmul.f32 %v2946, %v2950
  %vm2952 = vweird.f32 %v2151
  %vm2953 = vweird.f32 %v2946
  %vm2954 = vmor %vm2952, %vm2953
  %v2955 = vsel %vm2954, %v2946, %v2951
  %v2956 = vrsqrt.pop %v2152
  %v2957 = vmul.f32 %v2956, %v2152
  %v2958 = vmul.f32 %v2957, %v2956
  %v2959 = vmul.f32 0.5, %v2958
  %v2960 = vsub.f32 1.5, %v2959
  %v2961 = vmul.f32 %v2956, %v2960
  %vm2962 = vweird.f32 %v2152
  %vm2963 = vweird.f32 %v2956
  %vm2964 = vmor %vm2962, %vm2963
  %v2965 = vsel %vm2964, %v2956, %v2961
  %v2966 = vrsqrt.pop %v2153
  %v2967 = vmul.f32 %v2966, %v2153
  %v2968 = vmul.f32 %v2967, %v2966
  %v2969 = vmul.f32 0.5, %v2968
  %v2970 = vsub.f32 1.5, %v2969
  %v2971 = vmul.f32 %v2966, %v2970
  %vm2972 = vweird.f32 %v2153
  %vm2973 = vweird.f32 %v2966
  %vm2974 = vmor %vm2972, %vm2973
  %v2975 = vsel %vm2974, %v2966, %v2971
  %v2976 = vrsqrt.pop %v2154
  %v2977 = vmul.f32 %v2976, %v2154
  %v2978 = vmul.f32 %v2977, %v2976
  %v2979 = vmul.f32 0.5, %v2978
  %v2980 = vsub.f32 1.5, %v2979
  %v2981 = vmul.f32 %v2976, %v2980
  %vm2982 = vweird.f32 %v2154
  %vm2983 = vweird.f32 %v2976
  %vm2984 = vmor %vm2982, %vm2983
  %v2985 = vsel %vm2984, %v2976, %v2981
  %v2986 = vrsqrt.pop %v2155
  %v2987 = vmul.f32 %v2986, %v2155
  %v2988 = vmul.f32 %v2987, %v2986
  %v2989 = vmul.f32 0.5, %v2988
  %v2990 = vsub.f32 1.5, %v2989
  %v2991 = vmul.f32 %v2986, %v2990
  %vm2992 = vweird.f32 %v2155
  %vm2993 = vweird.f32 %v2986
  %vm2994 = vmor %vm2992, %vm2993
  %v2995 = vsel %vm2994, %v2986, %v2991
  %v2996 = vmul.f32 %v1988, %v2165
  %v2997 = vmul.f32 %v1989, %v2175
  %v2998 = vmul.f32 %v1990, %v2185
  %v2999 = vmul.f32 %v1991, %v2195
  %v3000 = vmul.f32 %v1992, %v2205
  %v3001 = vmul.f32 %v1993, %v2215
  %v3002 = vmul.f32 %v1994, %v2225
  %v3003 = vmul.f32 %v1995, %v2235
  %v3004 = vmul.f32 %v1996, %v2245
  %v3005 = vmul.f32 %v1997, %v2255
  %v3006 = vmul.f32 %v1998, %v2265
  %v3007 = vmul.f32 %v1999, %v2275
  %v3008 = vmul.f32 %v2000, %v2285
  %v3009 = vmul.f32 %v2001, %v2295
  %v3010 = vmul.f32 %v2002, %v2305
  %v3011 = vmul.f32 %v2003, %v2315
  %v3012 = vmul.f32 %v2004, %v2325
  %v3013 = vmul.f32 %v2005, %v2335
  %v3014 = vmul.f32 %v2006, %v2345
  %v3015 = vmul.f32 %v2007, %v2355
  %v3016 = vmul.f32 %v2008, %v2365
  %v3017 = vmul.f32 %v2009, %v2375
  %v3018 = vmul.f32 %v2010, %v2385
  %v3019 = vmul.f32 %v2011, %v2395
  %v3020 = vmul.f32 %v2012, %v2405
  %v3021 = vmul.f32 %v2013, %v2415
  %v3022 = vmul.f32 %v2014, %v2425
  %v3023 = vmul.f32 %v2015, %v2435
  %v3024 = vmul.f32 %v2016, %v2445
  %v3025 = vmul.f32 %v2017, %v2455
  %v3026 = vmul.f32 %v2018, %v2465
  %v3027 = vmul.f32 %v2019, %v2475
  %v3028 = vmul.f32 %v2020, %v2485
  %v3029 = vmul.f32 %v2021, %v2495
  %v3030 = vmul.f32 %v2022, %v2505
  %v3031 = vmul.f32 %v2023, %v2515
  %v3032 = vmul.f32 %v2024, %v2525
  %v3033 = vmul.f32 %v2025, %v2535
  %v3034 = vmul.f32 %v2026, %v2545
  %v3035 = vmul.f32 %v2027, %v2555
  %v3036 = vmul.f32 %v2028, %v2565
  %v3037 = vmul.f32 %v2029, %v2575
  %v3038 = vmul.f32 %v2030, %v2585
  %v3039 = vmul.f32 %v2031, %v2595
  %v3040 = vmul.f32 %v2032, %v2605
  %v3041 = vmul.f32 %v2033, %v2615
  %v3042 = vmul.f32 %v2034, %v2625
  %v3043 = vmul.f32 %v2035, %v2635
  %v3044 = vmul.f32 %v2036, %v2645
  %v3045 = vmul.f32 %v2037, %v2655
  %v3046 = vmul.f32 %v2038, %v2665
  %v3047 = vmul.f32 %v2039, %v2675
  %v3048 = vmul.f32 %v2040, %v2685
  %v3049 = vmul.f32 %v2041, %v2695
  %v3050 = vmul.f32 %v2042, %v2705
  %v3051 = vmul.f32 %v2043, %v2715
  %v3052 = vmul.f32 %v2044, %v2725
  %v3053 = vmul.f32 %v2045, %v2735
  %v3054 = vmul.f32 %v2046, %v2745
  %v3055 = vmul.f32 %v2047, %v2755
  %v3056 = vmul.f32 %v2048, %v2765
  %v3057 = vmul.f32 %v2049, %v2775
  %v3058 = vmul.f32 %v2050, %v2785
  %v3059 = vmul.f32 %v2051, %v2795
  %v3060 = vmul.f32 %v2052, %v2805
  %v3061 = vmul.f32 %v2053, %v2815
  %v3062 = vmul.f32 %v2054, %v2825
  %v3063 = vmul.f32 %v2055, %v2835
  %v3064 = vmul.f32 %v2056, %v2845
  %v3065 = vmul.f32 %v2057, %v2855
  %v3066 = vmul.f32 %v2058, %v2865
  %v3067 = vmul.f32 %v2059, %v2875
  %v3068 = vmul.f32 %v2060, %v2885
  %v3069 = vmul.f32 %v2061, %v2895
  %v3070 = vmul.f32 %v2062, %v2905
  %v3071 = vmul.f32 %v2063, %v2915
  %v3072 = vmul.f32 %v2064, %v2925
  %v3073 = vmul.f32 %v2065, %v2935
  %v3074 = vmul.f32 %v2066, %v2945
  %v3075 = vmul.f32 %v2067, %v2955
  %v3076 = vmul.f32 %v2068, %v2965
  %v3077 = vmul.f32 %v2069, %v2975
  %v3078 = vmul.f32 %v2070, %v2985
  %v3079 = vmul.f32 %v2071, %v2995
  %3081 = vset.pattern.permute.xlu0 0
  %3082 = vperm.xlu0 %3081, %v2996
  %v3083 = vpop.permute.xlu0 %3082
  %3086 = vset.pattern.permute.xlu0 0
  %3087 = vperm.xlu0 %3086, %v2997
  %v3088 = vpop.permute.xlu0 %3087
  %3091 = vset.pattern.permute.xlu0 0
  %3092 = vperm.xlu0 %3091, %v2998
  %v3093 = vpop.permute.xlu0 %3092
  %3096 = vset.pattern.permute.xlu0 0
  %3097 = vperm.xlu0 %3096, %v2999
  %v3098 = vpop.permute.xlu0 %3097
  %3101 = vset.pattern.permute.xlu0 0
  %3102 = vperm.xlu0 %3101, %v3000
  %v3103 = vpop.permute.xlu0 %3102
  %3106 = vset.pattern.permute.xlu0 0
  %3107 = vperm.xlu0 %3106, %v3001
  %v3108 = vpop.permute.xlu0 %3107
  %3111 = vset.pattern.permute.xlu0 0
  %3112 = vperm.xlu0 %3111, %v3002
  %v3113 = vpop.permute.xlu0 %3112
  %3116 = vset.pattern.permute.xlu0 0
  %3117 = vperm.xlu0 %3116, %v3003
  %v3118 = vpop.permute.xlu0 %3117
  %3121 = vset.pattern.permute.xlu0 0
  %3122 = vperm.xlu0 %3121, %v3004
  %v3123 = vpop.permute.xlu0 %3122
  %3126 = vset.pattern.permute.xlu0 0
  %3127 = vperm.xlu0 %3126, %v3005
  %v3128 = vpop.permute.xlu0 %3127
  %3131 = vset.pattern.permute.xlu0 0
  %3132 = vperm.xlu0 %3131, %v3006
  %v3133 = vpop.permute.xlu0 %3132
  %3136 = vset.pattern.permute.xlu0 0
  %3137 = vperm.xlu0 %3136, %v3007
  %v3138 = vpop.permute.xlu0 %3137
  %3141 = vset.pattern.permute.xlu0 0
  %3142 = vperm.xlu0 %3141, %v3008
  %v3143 = vpop.permute.xlu0 %3142
  %3146 = vset.pattern.permute.xlu0 0
  %3147 = vperm.xlu0 %3146, %v3009
  %v3148 = vpop.permute.xlu0 %3147
  %3151 = vset.pattern.permute.xlu0 0
  %3152 = vperm.xlu0 %3151, %v3010
  %v3153 = vpop.permute.xlu0 %3152
  %3156 = vset.pattern.permute.xlu0 0
  %3157 = vperm.xlu0 %3156, %v3011
  %v3158 = vpop.permute.xlu0 %3157
  %3161 = vset.pattern.permute.xlu0 0
  %3162 = vperm.xlu0 %3161, %v3012
  %v3163 = vpop.permute.xlu0 %3162
  %3166 = vset.pattern.permute.xlu0 0
  %3167 = vperm.xlu0 %3166, %v3013
  %v3168 = vpop.permute.xlu0 %3167
  %3171 = vset.pattern.permute.xlu0 0
  %3172 = vperm.xlu0 %3171, %v3014
  %v3173 = vpop.permute.xlu0 %3172
  %3176 = vset.pattern.permute.xlu0 0
  %3177 = vperm.xlu0 %3176, %v3015
  %v3178 = vpop.permute.xlu0 %3177
  %3181 = vset.pattern.permute.xlu0 0
  %3182 = vperm.xlu0 %3181, %v3016
  %v3183 = vpop.permute.xlu0 %3182
  %3186 = vset.pattern.permute.xlu0 0
  %3187 = vperm.xlu0 %3186, %v3017
  %v3188 = vpop.permute.xlu0 %3187
  %3191 = vset.pattern.permute.xlu0 0
  %3192 = vperm.xlu0 %3191, %v3018
  %v3193 = vpop.permute.xlu0 %3192
  %3196 = vset.pattern.permute.xlu0 0
  %3197 = vperm.xlu0 %3196, %v3019
  %v3198 = vpop.permute.xlu0 %3197
  %3201 = vset.pattern.permute.xlu0 0
  %3202 = vperm.xlu0 %3201, %v3020
  %v3203 = vpop.permute.xlu0 %3202
  %3206 = vset.pattern.permute.xlu0 0
  %3207 = vperm.xlu0 %3206, %v3021
  %v3208 = vpop.permute.xlu0 %3207
  %3211 = vset.pattern.permute.xlu0 0
  %3212 = vperm.xlu0 %3211, %v3022
  %v3213 = vpop.permute.xlu0 %3212
  %3216 = vset.pattern.permute.xlu0 0
  %3217 = vperm.xlu0 %3216, %v3023
  %v3218 = vpop.permute.xlu0 %3217
  %3221 = vset.pattern.permute.xlu0 0
  %3222 = vperm.xlu0 %3221, %v3024
  %v3223 = vpop.permute.xlu0 %3222
  %3226 = vset.pattern.permute.xlu0 0
  %3227 = vperm.xlu0 %3226, %v3025
  %v3228 = vpop.permute.xlu0 %3227
  %3231 = vset.pattern.permute.xlu0 0
  %3232 = vperm.xlu0 %3231, %v3026
  %v3233 = vpop.permute.xlu0 %3232
  %3236 = vset.pattern.permute.xlu0 0
  %3237 = vperm.xlu0 %3236, %v3027
  %v3238 = vpop.permute.xlu0 %3237
  %3241 = vset.pattern.permute.xlu0 0
  %3242 = vperm.xlu0 %3241, %v3028
  %v3243 = vpop.permute.xlu0 %3242
  %3246 = vset.pattern.permute.xlu0 0
  %3247 = vperm.xlu0 %3246, %v3029
  %v3248 = vpop.permute.xlu0 %3247
  %3251 = vset.pattern.permute.xlu0 0
  %3252 = vperm.xlu0 %3251, %v3030
  %v3253 = vpop.permute.xlu0 %3252
  %3256 = vset.pattern.permute.xlu0 0
  %3257 = vperm.xlu0 %3256, %v3031
  %v3258 = vpop.permute.xlu0 %3257
  %3261 = vset.pattern.permute.xlu0 0
  %3262 = vperm.xlu0 %3261, %v3032
  %v3263 = vpop.permute.xlu0 %3262
  %3266 = vset.pattern.permute.xlu0 0
  %3267 = vperm.xlu0 %3266, %v3033
  %v3268 = vpop.permute.xlu0 %3267
  %3271 = vset.pattern.permute.xlu0 0
  %3272 = vperm.xlu0 %3271, %v3034
  %v3273 = vpop.permute.xlu0 %3272
  %3276 = vset.pattern.permute.xlu0 0
  %3277 = vperm.xlu0 %3276, %v3035
  %v3278 = vpop.permute.xlu0 %3277
  %3281 = vset.pattern.permute.xlu0 0
  %3282 = vperm.xlu0 %3281, %v3036
  %v3283 = vpop.permute.xlu0 %3282
  %3286 = vset.pattern.permute.xlu0 0
  %3287 = vperm.xlu0 %3286, %v3037
  %v3288 = vpop.permute.xlu0 %3287
  %3291 = vset.pattern.permute.xlu0 0
  %3292 = vperm.xlu0 %3291, %v3038
  %v3293 = vpop.permute.xlu0 %3292
  %3296 = vset.pattern.permute.xlu0 0
  %3297 = vperm.xlu0 %3296, %v3039
  %v3298 = vpop.permute.xlu0 %3297
  %3301 = vset.pattern.permute.xlu0 0
  %3302 = vperm.xlu0 %3301, %v3040
  %v3303 = vpop.permute.xlu0 %3302
  %3306 = vset.pattern.permute.xlu0 0
  %3307 = vperm.xlu0 %3306, %v3041
  %v3308 = vpop.permute.xlu0 %3307
  %3311 = vset.pattern.permute.xlu0 0
  %3312 = vperm.xlu0 %3311, %v3042
  %v3313 = vpop.permute.xlu0 %3312
  %3316 = vset.pattern.permute.xlu0 0
  %3317 = vperm.xlu0 %3316, %v3043
  %v3318 = vpop.permute.xlu0 %3317
  %3321 = vset.pattern.permute.xlu0 0
  %3322 = vperm.xlu0 %3321, %v3044
  %v3323 = vpop.permute.xlu0 %3322
  %3326 = vset.pattern.permute.xlu0 0
  %3327 = vperm.xlu0 %3326, %v3045
  %v3328 = vpop.permute.xlu0 %3327
  %3331 = vset.pattern.permute.xlu0 0
  %3332 = vperm.xlu0 %3331, %v3046
  %v3333 = vpop.permute.xlu0 %3332
  %3336 = vset.pattern.permute.xlu0 0
  %3337 = vperm.xlu0 %3336, %v3047
  %v3338 = vpop.permute.xlu0 %3337
  %3341 = vset.pattern.permute.xlu0 0
  %3342 = vperm.xlu0 %3341, %v3048
  %v3343 = vpop.permute.xlu0 %3342
  %3346 = vset.pattern.permute.xlu0 0
  %3347 = vperm.xlu0 %3346, %v3049
  %v3348 = vpop.permute.xlu0 %3347
  %3351 = vset.pattern.permute.xlu0 0
  %3352 = vperm.xlu0 %3351, %v3050
  %v3353 = vpop.permute.xlu0 %3352
  %3356 = vset.pattern.permute.xlu0 0
  %3357 = vperm.xlu0 %3356, %v3051
  %v3358 = vpop.permute.xlu0 %3357
  %3361 = vset.pattern.permute.xlu0 0
  %3362 = vperm.xlu0 %3361, %v3052
  %v3363 = vpop.permute.xlu0 %3362
  %3366 = vset.pattern.permute.xlu0 0
  %3367 = vperm.xlu0 %3366, %v3053
  %v3368 = vpop.permute.xlu0 %3367
  %3371 = vset.pattern.permute.xlu0 0
  %3372 = vperm.xlu0 %3371, %v3054
  %v3373 = vpop.permute.xlu0 %3372
  %3376 = vset.pattern.permute.xlu0 0
  %3377 = vperm.xlu0 %3376, %v3055
  %v3378 = vpop.permute.xlu0 %3377
  %3381 = vset.pattern.permute.xlu0 0
  %3382 = vperm.xlu0 %3381, %v3056
  %v3383 = vpop.permute.xlu0 %3382
  %3386 = vset.pattern.permute.xlu0 0
  %3387 = vperm.xlu0 %3386, %v3057
  %v3388 = vpop.permute.xlu0 %3387
  %3391 = vset.pattern.permute.xlu0 0
  %3392 = vperm.xlu0 %3391, %v3058
  %v3393 = vpop.permute.xlu0 %3392
  %3396 = vset.pattern.permute.xlu0 0
  %3397 = vperm.xlu0 %3396, %v3059
  %v3398 = vpop.permute.xlu0 %3397
  %3401 = vset.pattern.permute.xlu0 0
  %3402 = vperm.xlu0 %3401, %v3060
  %v3403 = vpop.permute.xlu0 %3402
  %3406 = vset.pattern.permute.xlu0 0
  %3407 = vperm.xlu0 %3406, %v3061
  %v3408 = vpop.permute.xlu0 %3407
  %3411 = vset.pattern.permute.xlu0 0
  %3412 = vperm.xlu0 %3411, %v3062
  %v3413 = vpop.permute.xlu0 %3412
  %3416 = vset.pattern.permute.xlu0 0
  %3417 = vperm.xlu0 %3416, %v3063
  %v3418 = vpop.permute.xlu0 %3417
  %3421 = vset.pattern.permute.xlu0 0
  %3422 = vperm.xlu0 %3421, %v3064
  %v3423 = vpop.permute.xlu0 %3422
  %3426 = vset.pattern.permute.xlu0 0
  %3427 = vperm.xlu0 %3426, %v3065
  %v3428 = vpop.permute.xlu0 %3427
  %3431 = vset.pattern.permute.xlu0 0
  %3432 = vperm.xlu0 %3431, %v3066
  %v3433 = vpop.permute.xlu0 %3432
  %3436 = vset.pattern.permute.xlu0 0
  %3437 = vperm.xlu0 %3436, %v3067
  %v3438 = vpop.permute.xlu0 %3437
  %3441 = vset.pattern.permute.xlu0 0
  %3442 = vperm.xlu0 %3441, %v3068
  %v3443 = vpop.permute.xlu0 %3442
  %3446 = vset.pattern.permute.xlu0 0
  %3447 = vperm.xlu0 %3446, %v3069
  %v3448 = vpop.permute.xlu0 %3447
  %3451 = vset.pattern.permute.xlu0 0
  %3452 = vperm.xlu0 %3451, %v3070
  %v3453 = vpop.permute.xlu0 %3452
  %3456 = vset.pattern.permute.xlu0 0
  %3457 = vperm.xlu0 %3456, %v3071
  %v3458 = vpop.permute.xlu0 %3457
  %3461 = vset.pattern.permute.xlu0 0
  %3462 = vperm.xlu0 %3461, %v3072
  %v3463 = vpop.permute.xlu0 %3462
  %3466 = vset.pattern.permute.xlu0 0
  %3467 = vperm.xlu0 %3466, %v3073
  %v3468 = vpop.permute.xlu0 %3467
  %3471 = vset.pattern.permute.xlu0 0
  %3472 = vperm.xlu0 %3471, %v3074
  %v3473 = vpop.permute.xlu0 %3472
  %3476 = vset.pattern.permute.xlu0 0
  %3477 = vperm.xlu0 %3476, %v3075
  %v3478 = vpop.permute.xlu0 %3477
  %3481 = vset.pattern.permute.xlu0 0
  %3482 = vperm.xlu0 %3481, %v3076
  %v3483 = vpop.permute.xlu0 %3482
  %3486 = vset.pattern.permute.xlu0 0
  %3487 = vperm.xlu0 %3486, %v3077
  %v3488 = vpop.permute.xlu0 %3487
  %3491 = vset.pattern.permute.xlu0 0
  %3492 = vperm.xlu0 %3491, %v3078
  %v3493 = vpop.permute.xlu0 %3492
  %3496 = vset.pattern.permute.xlu0 0
  %3497 = vperm.xlu0 %3496, %v3079
  %v3498 = vpop.permute.xlu0 %3497
  %v3500 = vmul.f32 %v880, %v3083
  %v3501 = vmul.f32 %v1149, %v3083
  %v3502 = vmul.f32 %v883, %v3088
  %v3503 = vmul.f32 %v1152, %v3088
  %v3504 = vmul.f32 %v886, %v3093
  %v3505 = vmul.f32 %v1155, %v3093
  %v3506 = vmul.f32 %v889, %v3098
  %v3507 = vmul.f32 %v1158, %v3098
  %v3508 = vmul.f32 %v892, %v3103
  %v3509 = vmul.f32 %v1161, %v3103
  %v3510 = vmul.f32 %v895, %v3108
  %v3511 = vmul.f32 %v1164, %v3108
  %v3512 = vmul.f32 %v898, %v3113
  %v3513 = vmul.f32 %v1167, %v3113
  %v3514 = vmul.f32 %v901, %v3118
  %v3515 = vmul.f32 %v1170, %v3118
  %v3516 = vmul.f32 %v904, %v3123
  %v3517 = vmul.f32 %v1173, %v3123
  %v3518 = vmul.f32 %v907, %v3128
  %v3519 = vmul.f32 %v1176, %v3128
  %v3520 = vmul.f32 %v910, %v3133
  %v3521 = vmul.f32 %v1179, %v3133
  %v3522 = vmul.f32 %v913, %v3138
  %v3523 = vmul.f32 %v1182, %v3138
  %v3524 = vmul.f32 %v916, %v3143
  %v3525 = vmul.f32 %v1185, %v3143
  %v3526 = vmul.f32 %v919, %v3148
  %v3527 = vmul.f32 %v1188, %v3148
  %v3528 = vmul.f32 %v922, %v3153
  %v3529 = vmul.f32 %v1191, %v3153
  %v3530 = vmul.f32 %v925, %v3158
  %v3531 = vmul.f32 %v1194, %v3158
  %v3532 = vmul.f32 %v928, %v3163
  %v3533 = vmul.f32 %v1197, %v3163
  %v3534 = vmul.f32 %v931, %v3168
  %v3535 = vmul.f32 %v1200, %v3168
  %v3536 = vmul.f32 %v934, %v3173
  %v3537 = vmul.f32 %v1203, %v3173
  %v3538 = vmul.f32 %v937, %v3178
  %v3539 = vmul.f32 %v1206, %v3178
  %v3540 = vmul.f32 %v940, %v3183
  %v3541 = vmul.f32 %v1209, %v3183
  %v3542 = vmul.f32 %v943, %v3188
  %v3543 = vmul.f32 %v1212, %v3188
  %v3544 = vmul.f32 %v946, %v3193
  %v3545 = vmul.f32 %v1215, %v3193
  %v3546 = vmul.f32 %v949, %v3198
  %v3547 = vmul.f32 %v1218, %v3198
  %v3548 = vmul.f32 %v952, %v3203
  %v3549 = vmul.f32 %v1221, %v3203
  %v3550 = vmul.f32 %v955, %v3208
  %v3551 = vmul.f32 %v1224, %v3208
  %v3552 = vmul.f32 %v958, %v3213
  %v3553 = vmul.f32 %v1227, %v3213
  %v3554 = vmul.f32 %v961, %v3218
  %v3555 = vmul.f32 %v1230, %v3218
  %v3556 = vmul.f32 %v964, %v3223
  %v3557 = vmul.f32 %v1233, %v3223
  %v3558 = vmul.f32 %v967, %v3228
  %v3559 = vmul.f32 %v1236, %v3228
  %v3560 = vmul.f32 %v970, %v3233
  %v3561 = vmul.f32 %v1239, %v3233
  %v3562 = vmul.f32 %v973, %v3238
  %v3563 = vmul.f32 %v1242, %v3238
  %v3564 = vmul.f32 %v976, %v3243
  %v3565 = vmul.f32 %v1245, %v3243
  %v3566 = vmul.f32 %v979, %v3248
  %v3567 = vmul.f32 %v1248, %v3248
  %v3568 = vmul.f32 %v982, %v3253
  %v3569 = vmul.f32 %v1251, %v3253
  %v3570 = vmul.f32 %v985, %v3258
  %v3571 = vmul.f32 %v1254, %v3258
  %v3572 = vmul.f32 %v988, %v3263
  %v3573 = vmul.f32 %v1257, %v3263
  %v3574 = vmul.f32 %v991, %v3268
  %v3575 = vmul.f32 %v1260, %v3268
  %v3576 = vmul.f32 %v994, %v3273
  %v3577 = vmul.f32 %v1263, %v3273
  %v3578 = vmul.f32 %v997, %v3278
  %v3579 = vmul.f32 %v1266, %v3278
  %v3580 = vmul.f32 %v1000, %v3283
  %v3581 = vmul.f32 %v1269, %v3283
  %v3582 = vmul.f32 %v1003, %v3288
  %v3583 = vmul.f32 %v1272, %v3288
  %v3584 = vmul.f32 %v1006, %v3293
  %v3585 = vmul.f32 %v1275, %v3293
  %v3586 = vmul.f32 %v1009, %v3298
  %v3587 = vmul.f32 %v1278, %v3298
  %v3588 = vmul.f32 %v1012, %v3303
  %v3589 = vmul.f32 %v1281, %v3303
  %v3590 = vmul.f32 %v1015, %v3308
  %v3591 = vmul.f32 %v1284, %v3308
  %v3592 = vmul.f32 %v1018, %v3313
  %v3593 = vmul.f32 %v1287, %v3313
  %v3594 = vmul.f32 %v1021, %v3318
  %v3595 = vmul.f32 %v1290, %v3318
  %v3596 = vmul.f32 %v1024, %v3323
  %v3597 = vmul.f32 %v1293, %v3323
  %v3598 = vmul.f32 %v1027, %v3328
  %v3599 = vmul.f32 %v1296, %v3328
  %v3600 = vmul.f32 %v1030, %v3333
  %v3601 = vmul.f32 %v1299, %v3333
  %v3602 = vmul.f32 %v1033, %v3338
  %v3603 = vmul.f32 %v1302, %v3338
  %v3604 = vmul.f32 %v1036, %v3343
  %v3605 = vmul.f32 %v1305, %v3343
  %v3606 = vmul.f32 %v1039, %v3348
  %v3607 = vmul.f32 %v1308, %v3348
  %v3608 = vmul.f32 %v1042, %v3353
  %v3609 = vmul.f32 %v1311, %v3353
  %v3610 = vmul.f32 %v1045, %v3358
  %v3611 = vmul.f32 %v1314, %v3358
  %v3612 = vmul.f32 %v1048, %v3363
  %v3613 = vmul.f32 %v1317, %v3363
  %v3614 = vmul.f32 %v1051, %v3368
  %v3615 = vmul.f32 %v1320, %v3368
  %v3616 = vmul.f32 %v1054, %v3373
  %v3617 = vmul.f32 %v1323, %v3373
  %v3618 = vmul.f32 %v1057, %v3378
  %v3619 = vmul.f32 %v1326, %v3378
  %v3620 = vmul.f32 %v1060, %v3383
  %v3621 = vmul.f32 %v1329, %v3383
  %v3622 = vmul.f32 %v1063, %v3388
  %v3623 = vmul.f32 %v1332, %v3388
  %v3624 = vmul.f32 %v1066, %v3393
  %v3625 = vmul.f32 %v1335, %v3393
  %v3626 = vmul.f32 %v1069, %v3398
  %v3627 = vmul.f32 %v1338, %v3398
  %v3628 = vmul.f32 %v1072, %v3403
  %v3629 = vmul.f32 %v1341, %v3403
  %v3630 = vmul.f32 %v1075, %v3408
  %v3631 = vmul.f32 %v1344, %v3408
  %v3632 = vmul.f32 %v1078, %v3413
  %v3633 = vmul.f32 %v1347, %v3413
  %v3634 = vmul.f32 %v1081, %v3418
  %v3635 = vmul.f32 %v1350, %v3418
  %v3636 = vmul.f32 %v1084, %v3423
  %v3637 = vmul.f32 %v1353, %v3423
  %v3638 = vmul.f32 %v1087, %v3428
  %v3639 = vmul.f32 %v1356, %v3428
  %v3640 = vmul.f32 %v1090, %v3433
  %v3641 = vmul.f32 %v1359, %v3433
  %v3642 = vmul.f32 %v1093, %v3438
  %v3643 = vmul.f32 %v1362, %v3438
  %v3644 = vmul.f32 %v1096, %v3443
  %v3645 = vmul.f32 %v1365, %v3443
  %v3646 = vmul.f32 %v1099, %v3448
  %v3647 = vmul.f32 %v1368, %v3448
  %v3648 = vmul.f32 %v1102, %v3453
  %v3649 = vmul.f32 %v1371, %v3453
  %v3650 = vmul.f32 %v1105, %v3458
  %v3651 = vmul.f32 %v1374, %v3458
  %v3652 = vmul.f32 %v1108, %v3463
  %v3653 = vmul.f32 %v1377, %v3463
  %v3654 = vmul.f32 %v1111, %v3468
  %v3655 = vmul.f32 %v1380, %v3468
  %v3656 = vmul.f32 %v1114, %v3473
  %v3657 = vmul.f32 %v1383, %v3473
  %v3658 = vmul.f32 %v1117, %v3478
  %v3659 = vmul.f32 %v1386, %v3478
  %v3660 = vmul.f32 %v1120, %v3483
  %v3661 = vmul.f32 %v1389, %v3483
  %v3662 = vmul.f32 %v1123, %v3488
  %v3663 = vmul.f32 %v1392, %v3488
  %v3664 = vmul.f32 %v1126, %v3493
  %v3665 = vmul.f32 %v1395, %v3493
  %v3666 = vmul.f32 %v1129, %v3498
  %v3667 = vmul.f32 %v1398, %v3498
  %v3668 = vld [vmem:[%s4] sm:$0xff]
  %v3669 = vld [vmem:[%s4 + $0x8] sm:$0xff]
  %v3670 = vld [vmem:[%s4 + $0x10] sm:$0xff]
  %v3671 = vld [vmem:[%s4 + $0x18] sm:$0xff]
  %v3672 = vld [vmem:[%s4 + $0x20] sm:$0xff]
  %v3673 = vld [vmem:[%s4 + $0x28] sm:$0xff]
  %v3674 = vld [vmem:[%s4 + $0x30] sm:$0xff]
  %v3675 = vld [vmem:[%s4 + $0x38] sm:$0xff]
  %v3676 = vld [vmem:[%s4 + $0x40] sm:$0xff]
  %v3677 = vld [vmem:[%s4 + $0x48] sm:$0xff]
  %v3678 = vld [vmem:[%s4 + $0x50] sm:$0xff]
  %v3679 = vld [vmem:[%s4 + $0x58] sm:$0xff]
  %v3680 = vld [vmem:[%s4 + $0x60] sm:$0xff]
  %v3681 = vld [vmem:[%s4 + $0x68] sm:$0xff]
  %v3682 = vld [vmem:[%s4 + $0x70] sm:$0xff]
  %v3683 = vld [vmem:[%s4 + $0x78] sm:$0xff]
  %v3684 = vld [vmem:[%s4 + $0x80] sm:$0xff]
  %v3685 = vld [vmem:[%s4 + $0x88] sm:$0xff]
  %v3686 = vld [vmem:[%s4 + $0x90] sm:$0xff]
  %v3687 = vld [vmem:[%s4 + $0x98] sm:$0xff]
  %v3688 = vld [vmem:[%s4 + $0xa0] sm:$0xff]
  %v3689 = vld [vmem:[%s4 + $0xa8] sm:$0xff]
  %v3690 = vld [vmem:[%s4 + $0xb0] sm:$0xff]
  %v3691 = vld [vmem:[%s4 + $0xb8] sm:$0xff]
  %v3692 = vld [vmem:[%s4 + $0xc0] sm:$0xff]
  %v3693 = vld [vmem:[%s4 + $0xc8] sm:$0xff]
  %v3694 = vld [vmem:[%s4 + $0xd0] sm:$0xff]
  %v3695 = vld [vmem:[%s4 + $0xd8] sm:$0xff]
  %v3696 = vld [vmem:[%s4 + $0xe0] sm:$0xff]
  %v3697 = vld [vmem:[%s4 + $0xe8] sm:$0xff]
  %v3698 = vld [vmem:[%s4 + $0xf0] sm:$0xff]
  %v3699 = vld [vmem:[%s4 + $0xf8] sm:$0xff]
  %v3700 = vld [vmem:[%s4 + $0x100] sm:$0xff]
  %v3701 = vld [vmem:[%s4 + $0x108] sm:$0xff]
  %v3702 = vld [vmem:[%s4 + $0x110] sm:$0xff]
  %v3703 = vld [vmem:[%s4 + $0x118] sm:$0xff]
  %v3704 = vld [vmem:[%s4 + $0x120] sm:$0xff]
  %v3705 = vld [vmem:[%s4 + $0x128] sm:$0xff]
  %v3706 = vld [vmem:[%s4 + $0x130] sm:$0xff]
  %v3707 = vld [vmem:[%s4 + $0x138] sm:$0xff]
  %v3708 = vld [vmem:[%s4 + $0x140] sm:$0xff]
  %v3709 = vld [vmem:[%s4 + $0x148] sm:$0xff]
  %v3710 = vld [vmem:[%s4 + $0x150] sm:$0xff]
  %v3711 = vld [vmem:[%s4 + $0x158] sm:$0xff]
  %v3712 = vld [vmem:[%s4 + $0x160] sm:$0xff]
  %v3713 = vld [vmem:[%s4 + $0x168] sm:$0xff]
  %v3714 = vld [vmem:[%s4 + $0x170] sm:$0xff]
  %v3715 = vld [vmem:[%s4 + $0x178] sm:$0xff]
  %v3716 = vld [vmem:[%s4 + $0x180] sm:$0xff]
  %v3717 = vld [vmem:[%s4 + $0x188] sm:$0xff]
  %v3718 = vld [vmem:[%s4 + $0x190] sm:$0xff]
  %v3719 = vld [vmem:[%s4 + $0x198] sm:$0xff]
  %v3720 = vld [vmem:[%s4 + $0x1a0] sm:$0xff]
  %v3721 = vld [vmem:[%s4 + $0x1a8] sm:$0xff]
  %v3722 = vld [vmem:[%s4 + $0x1b0] sm:$0xff]
  %v3723 = vld [vmem:[%s4 + $0x1b8] sm:$0xff]
  %v3724 = vld [vmem:[%s4 + $0x1c0] sm:$0xff]
  %v3725 = vld [vmem:[%s4 + $0x1c8] sm:$0xff]
  %v3726 = vld [vmem:[%s4 + $0x1d0] sm:$0xff]
  %v3727 = vld [vmem:[%s4 + $0x1d8] sm:$0xff]
  %v3728 = vld [vmem:[%s4 + $0x1e0] sm:$0xff]
  %v3729 = vld [vmem:[%s4 + $0x1e8] sm:$0xff]
  %v3730 = vld [vmem:[%s4 + $0x1f0] sm:$0xff]
  %v3731 = vld [vmem:[%s4 + $0x1f8] sm:$0xff]
  %v3732 = vld [vmem:[%s4 + $0x200] sm:$0xff]
  %v3733 = vld [vmem:[%s4 + $0x208] sm:$0xff]
  %v3734 = vld [vmem:[%s4 + $0x210] sm:$0xff]
  %v3735 = vld [vmem:[%s4 + $0x218] sm:$0xff]
  %v3736 = vld [vmem:[%s4 + $0x220] sm:$0xff]
  %v3737 = vld [vmem:[%s4 + $0x228] sm:$0xff]
  %v3738 = vld [vmem:[%s4 + $0x230] sm:$0xff]
  %v3739 = vld [vmem:[%s4 + $0x238] sm:$0xff]
  %v3740 = vld [vmem:[%s4 + $0x240] sm:$0xff]
  %v3741 = vld [vmem:[%s4 + $0x248] sm:$0xff]
  %v3742 = vld [vmem:[%s4 + $0x250] sm:$0xff]
  %v3743 = vld [vmem:[%s4 + $0x258] sm:$0xff]
  %v3744 = vld [vmem:[%s4 + $0x260] sm:$0xff]
  %v3745 = vld [vmem:[%s4 + $0x268] sm:$0xff]
  %v3746 = vld [vmem:[%s4 + $0x270] sm:$0xff]
  %v3747 = vld [vmem:[%s4 + $0x278] sm:$0xff]
  %v3748 = vld [vmem:[%s4 + $0x280] sm:$0xff]
  %v3749 = vld [vmem:[%s4 + $0x288] sm:$0xff]
  %v3750 = vld [vmem:[%s4 + $0x290] sm:$0xff]
  %v3751 = vld [vmem:[%s4 + $0x298] sm:$0xff]
  %3753 = vset.pattern.permute.xlu0 0
  %3754 = vperm.xlu0 %3753, %v3668
  %v3755 = vpop.permute.xlu0 %3754
  %3758 = vset.pattern.permute.xlu0 0
  %3759 = vperm.xlu0 %3758, %v3669
  %v3760 = vpop.permute.xlu0 %3759
  %3763 = vset.pattern.permute.xlu0 0
  %3764 = vperm.xlu0 %3763, %v3670
  %v3765 = vpop.permute.xlu0 %3764
  %3768 = vset.pattern.permute.xlu0 0
  %3769 = vperm.xlu0 %3768, %v3671
  %v3770 = vpop.permute.xlu0 %3769
  %3773 = vset.pattern.permute.xlu0 0
  %3774 = vperm.xlu0 %3773, %v3672
  %v3775 = vpop.permute.xlu0 %3774
  %3778 = vset.pattern.permute.xlu0 0
  %3779 = vperm.xlu0 %3778, %v3673
  %v3780 = vpop.permute.xlu0 %3779
  %3783 = vset.pattern.permute.xlu0 0
  %3784 = vperm.xlu0 %3783, %v3674
  %v3785 = vpop.permute.xlu0 %3784
  %3788 = vset.pattern.permute.xlu0 0
  %3789 = vperm.xlu0 %3788, %v3675
  %v3790 = vpop.permute.xlu0 %3789
  %3793 = vset.pattern.permute.xlu0 0
  %3794 = vperm.xlu0 %3793, %v3676
  %v3795 = vpop.permute.xlu0 %3794
  %3798 = vset.pattern.permute.xlu0 0
  %3799 = vperm.xlu0 %3798, %v3677
  %v3800 = vpop.permute.xlu0 %3799
  %3803 = vset.pattern.permute.xlu0 0
  %3804 = vperm.xlu0 %3803, %v3678
  %v3805 = vpop.permute.xlu0 %3804
  %3808 = vset.pattern.permute.xlu0 0
  %3809 = vperm.xlu0 %3808, %v3679
  %v3810 = vpop.permute.xlu0 %3809
  %3813 = vset.pattern.permute.xlu0 0
  %3814 = vperm.xlu0 %3813, %v3680
  %v3815 = vpop.permute.xlu0 %3814
  %3818 = vset.pattern.permute.xlu0 0
  %3819 = vperm.xlu0 %3818, %v3681
  %v3820 = vpop.permute.xlu0 %3819
  %3823 = vset.pattern.permute.xlu0 0
  %3824 = vperm.xlu0 %3823, %v3682
  %v3825 = vpop.permute.xlu0 %3824
  %3828 = vset.pattern.permute.xlu0 0
  %3829 = vperm.xlu0 %3828, %v3683
  %v3830 = vpop.permute.xlu0 %3829
  %3833 = vset.pattern.permute.xlu0 0
  %3834 = vperm.xlu0 %3833, %v3684
  %v3835 = vpop.permute.xlu0 %3834
  %3838 = vset.pattern.permute.xlu0 0
  %3839 = vperm.xlu0 %3838, %v3685
  %v3840 = vpop.permute.xlu0 %3839
  %3843 = vset.pattern.permute.xlu0 0
  %3844 = vperm.xlu0 %3843, %v3686
  %v3845 = vpop.permute.xlu0 %3844
  %3848 = vset.pattern.permute.xlu0 0
  %3849 = vperm.xlu0 %3848, %v3687
  %v3850 = vpop.permute.xlu0 %3849
  %3853 = vset.pattern.permute.xlu0 0
  %3854 = vperm.xlu0 %3853, %v3688
  %v3855 = vpop.permute.xlu0 %3854
  %3858 = vset.pattern.permute.xlu0 0
  %3859 = vperm.xlu0 %3858, %v3689
  %v3860 = vpop.permute.xlu0 %3859
  %3863 = vset.pattern.permute.xlu0 0
  %3864 = vperm.xlu0 %3863, %v3690
  %v3865 = vpop.permute.xlu0 %3864
  %3868 = vset.pattern.permute.xlu0 0
  %3869 = vperm.xlu0 %3868, %v3691
  %v3870 = vpop.permute.xlu0 %3869
  %3873 = vset.pattern.permute.xlu0 0
  %3874 = vperm.xlu0 %3873, %v3692
  %v3875 = vpop.permute.xlu0 %3874
  %3878 = vset.pattern.permute.xlu0 0
  %3879 = vperm.xlu0 %3878, %v3693
  %v3880 = vpop.permute.xlu0 %3879
  %3883 = vset.pattern.permute.xlu0 0
  %3884 = vperm.xlu0 %3883, %v3694
  %v3885 = vpop.permute.xlu0 %3884
  %3888 = vset.pattern.permute.xlu0 0
  %3889 = vperm.xlu0 %3888, %v3695
  %v3890 = vpop.permute.xlu0 %3889
  %3893 = vset.pattern.permute.xlu0 0
  %3894 = vperm.xlu0 %3893, %v3696
  %v3895 = vpop.permute.xlu0 %3894
  %3898 = vset.pattern.permute.xlu0 0
  %3899 = vperm.xlu0 %3898, %v3697
  %v3900 = vpop.permute.xlu0 %3899
  %3903 = vset.pattern.permute.xlu0 0
  %3904 = vperm.xlu0 %3903, %v3698
  %v3905 = vpop.permute.xlu0 %3904
  %3908 = vset.pattern.permute.xlu0 0
  %3909 = vperm.xlu0 %3908, %v3699
  %v3910 = vpop.permute.xlu0 %3909
  %3913 = vset.pattern.permute.xlu0 0
  %3914 = vperm.xlu0 %3913, %v3700
  %v3915 = vpop.permute.xlu0 %3914
  %3918 = vset.pattern.permute.xlu0 0
  %3919 = vperm.xlu0 %3918, %v3701
  %v3920 = vpop.permute.xlu0 %3919
  %3923 = vset.pattern.permute.xlu0 0
  %3924 = vperm.xlu0 %3923, %v3702
  %v3925 = vpop.permute.xlu0 %3924
  %3928 = vset.pattern.permute.xlu0 0
  %3929 = vperm.xlu0 %3928, %v3703
  %v3930 = vpop.permute.xlu0 %3929
  %3933 = vset.pattern.permute.xlu0 0
  %3934 = vperm.xlu0 %3933, %v3704
  %v3935 = vpop.permute.xlu0 %3934
  %3938 = vset.pattern.permute.xlu0 0
  %3939 = vperm.xlu0 %3938, %v3705
  %v3940 = vpop.permute.xlu0 %3939
  %3943 = vset.pattern.permute.xlu0 0
  %3944 = vperm.xlu0 %3943, %v3706
  %v3945 = vpop.permute.xlu0 %3944
  %3948 = vset.pattern.permute.xlu0 0
  %3949 = vperm.xlu0 %3948, %v3707
  %v3950 = vpop.permute.xlu0 %3949
  %3953 = vset.pattern.permute.xlu0 0
  %3954 = vperm.xlu0 %3953, %v3708
  %v3955 = vpop.permute.xlu0 %3954
  %3958 = vset.pattern.permute.xlu0 0
  %3959 = vperm.xlu0 %3958, %v3709
  %v3960 = vpop.permute.xlu0 %3959
  %3963 = vset.pattern.permute.xlu0 0
  %3964 = vperm.xlu0 %3963, %v3710
  %v3965 = vpop.permute.xlu0 %3964
  %3968 = vset.pattern.permute.xlu0 0
  %3969 = vperm.xlu0 %3968, %v3711
  %v3970 = vpop.permute.xlu0 %3969
  %3973 = vset.pattern.permute.xlu0 0
  %3974 = vperm.xlu0 %3973, %v3712
  %v3975 = vpop.permute.xlu0 %3974
  %3978 = vset.pattern.permute.xlu0 0
  %3979 = vperm.xlu0 %3978, %v3713
  %v3980 = vpop.permute.xlu0 %3979
  %3983 = vset.pattern.permute.xlu0 0
  %3984 = vperm.xlu0 %3983, %v3714
  %v3985 = vpop.permute.xlu0 %3984
  %3988 = vset.pattern.permute.xlu0 0
  %3989 = vperm.xlu0 %3988, %v3715
  %v3990 = vpop.permute.xlu0 %3989
  %3993 = vset.pattern.permute.xlu0 0
  %3994 = vperm.xlu0 %3993, %v3716
  %v3995 = vpop.permute.xlu0 %3994
  %3998 = vset.pattern.permute.xlu0 0
  %3999 = vperm.xlu0 %3998, %v3717
  %v4000 = vpop.permute.xlu0 %3999
  %4003 = vset.pattern.permute.xlu0 0
  %4004 = vperm.xlu0 %4003, %v3718
  %v4005 = vpop.permute.xlu0 %4004
  %4008 = vset.pattern.permute.xlu0 0
  %4009 = vperm.xlu0 %4008, %v3719
  %v4010 = vpop.permute.xlu0 %4009
  %4013 = vset.pattern.permute.xlu0 0
  %4014 = vperm.xlu0 %4013, %v3720
  %v4015 = vpop.permute.xlu0 %4014
  %4018 = vset.pattern.permute.xlu0 0
  %4019 = vperm.xlu0 %4018, %v3721
  %v4020 = vpop.permute.xlu0 %4019
  %4023 = vset.pattern.permute.xlu0 0
  %4024 = vperm.xlu0 %4023, %v3722
  %v4025 = vpop.permute.xlu0 %4024
  %4028 = vset.pattern.permute.xlu0 0
  %4029 = vperm.xlu0 %4028, %v3723
  %v4030 = vpop.permute.xlu0 %4029
  %4033 = vset.pattern.permute.xlu0 0
  %4034 = vperm.xlu0 %4033, %v3724
  %v4035 = vpop.permute.xlu0 %4034
  %4038 = vset.pattern.permute.xlu0 0
  %4039 = vperm.xlu0 %4038, %v3725
  %v4040 = vpop.permute.xlu0 %4039
  %4043 = vset.pattern.permute.xlu0 0
  %4044 = vperm.xlu0 %4043, %v3726
  %v4045 = vpop.permute.xlu0 %4044
  %4048 = vset.pattern.permute.xlu0 0
  %4049 = vperm.xlu0 %4048, %v3727
  %v4050 = vpop.permute.xlu0 %4049
  %4053 = vset.pattern.permute.xlu0 0
  %4054 = vperm.xlu0 %4053, %v3728
  %v4055 = vpop.permute.xlu0 %4054
  %4058 = vset.pattern.permute.xlu0 0
  %4059 = vperm.xlu0 %4058, %v3729
  %v4060 = vpop.permute.xlu0 %4059
  %4063 = vset.pattern.permute.xlu0 0
  %4064 = vperm.xlu0 %4063, %v3730
  %v4065 = vpop.permute.xlu0 %4064
  %4068 = vset.pattern.permute.xlu0 0
  %4069 = vperm.xlu0 %4068, %v3731
  %v4070 = vpop.permute.xlu0 %4069
  %4073 = vset.pattern.permute.xlu0 0
  %4074 = vperm.xlu0 %4073, %v3732
  %v4075 = vpop.permute.xlu0 %4074
  %4078 = vset.pattern.permute.xlu0 0
  %4079 = vperm.xlu0 %4078, %v3733
  %v4080 = vpop.permute.xlu0 %4079
  %4083 = vset.pattern.permute.xlu0 0
  %4084 = vperm.xlu0 %4083, %v3734
  %v4085 = vpop.permute.xlu0 %4084
  %4088 = vset.pattern.permute.xlu0 0
  %4089 = vperm.xlu0 %4088, %v3735
  %v4090 = vpop.permute.xlu0 %4089
  %4093 = vset.pattern.permute.xlu0 0
  %4094 = vperm.xlu0 %4093, %v3736
  %v4095 = vpop.permute.xlu0 %4094
  %4098 = vset.pattern.permute.xlu0 0
  %4099 = vperm.xlu0 %4098, %v3737
  %v4100 = vpop.permute.xlu0 %4099
  %4103 = vset.pattern.permute.xlu0 0
  %4104 = vperm.xlu0 %4103, %v3738
  %v4105 = vpop.permute.xlu0 %4104
  %4108 = vset.pattern.permute.xlu0 0
  %4109 = vperm.xlu0 %4108, %v3739
  %v4110 = vpop.permute.xlu0 %4109
  %4113 = vset.pattern.permute.xlu0 0
  %4114 = vperm.xlu0 %4113, %v3740
  %v4115 = vpop.permute.xlu0 %4114
  %4118 = vset.pattern.permute.xlu0 0
  %4119 = vperm.xlu0 %4118, %v3741
  %v4120 = vpop.permute.xlu0 %4119
  %4123 = vset.pattern.permute.xlu0 0
  %4124 = vperm.xlu0 %4123, %v3742
  %v4125 = vpop.permute.xlu0 %4124
  %4128 = vset.pattern.permute.xlu0 0
  %4129 = vperm.xlu0 %4128, %v3743
  %v4130 = vpop.permute.xlu0 %4129
  %4133 = vset.pattern.permute.xlu0 0
  %4134 = vperm.xlu0 %4133, %v3744
  %v4135 = vpop.permute.xlu0 %4134
  %4138 = vset.pattern.permute.xlu0 0
  %4139 = vperm.xlu0 %4138, %v3745
  %v4140 = vpop.permute.xlu0 %4139
  %4143 = vset.pattern.permute.xlu0 0
  %4144 = vperm.xlu0 %4143, %v3746
  %v4145 = vpop.permute.xlu0 %4144
  %4148 = vset.pattern.permute.xlu0 0
  %4149 = vperm.xlu0 %4148, %v3747
  %v4150 = vpop.permute.xlu0 %4149
  %4153 = vset.pattern.permute.xlu0 0
  %4154 = vperm.xlu0 %4153, %v3748
  %v4155 = vpop.permute.xlu0 %4154
  %4158 = vset.pattern.permute.xlu0 0
  %4159 = vperm.xlu0 %4158, %v3749
  %v4160 = vpop.permute.xlu0 %4159
  %4163 = vset.pattern.permute.xlu0 0
  %4164 = vperm.xlu0 %4163, %v3750
  %v4165 = vpop.permute.xlu0 %4164
  %4168 = vset.pattern.permute.xlu0 0
  %4169 = vperm.xlu0 %4168, %v3751
  %v4170 = vpop.permute.xlu0 %4169
  %v4172 = vadd.f32 %v3500, %v3755
  %v4173 = vadd.f32 %v3501, %v3755
  %v4174 = vadd.f32 %v3502, %v3760
  %v4175 = vadd.f32 %v3503, %v3760
  %v4176 = vadd.f32 %v3504, %v3765
  %v4177 = vadd.f32 %v3505, %v3765
  %v4178 = vadd.f32 %v3506, %v3770
  %v4179 = vadd.f32 %v3507, %v3770
  %v4180 = vadd.f32 %v3508, %v3775
  %v4181 = vadd.f32 %v3509, %v3775
  %v4182 = vadd.f32 %v3510, %v3780
  %v4183 = vadd.f32 %v3511, %v3780
  %v4184 = vadd.f32 %v3512, %v3785
  %v4185 = vadd.f32 %v3513, %v3785
  %v4186 = vadd.f32 %v3514, %v3790
  %v4187 = vadd.f32 %v3515, %v3790
  %v4188 = vadd.f32 %v3516, %v3795
  %v4189 = vadd.f32 %v3517, %v3795
  %v4190 = vadd.f32 %v3518, %v3800
  %v4191 = vadd.f32 %v3519, %v3800
  %v4192 = vadd.f32 %v3520, %v3805
  %v4193 = vadd.f32 %v3521, %v3805
  %v4194 = vadd.f32 %v3522, %v3810
  %v4195 = vadd.f32 %v3523, %v3810
  %v4196 = vadd.f32 %v3524, %v3815
  %v4197 = vadd.f32 %v3525, %v3815
  %v4198 = vadd.f32 %v3526, %v3820
  %v4199 = vadd.f32 %v3527, %v3820
  %v4200 = vadd.f32 %v3528, %v3825
  %v4201 = vadd.f32 %v3529, %v3825
  %v4202 = vadd.f32 %v3530, %v3830
  %v4203 = vadd.f32 %v3531, %v3830
  %v4204 = vadd.f32 %v3532, %v3835
  %v4205 = vadd.f32 %v3533, %v3835
  %v4206 = vadd.f32 %v3534, %v3840
  %v4207 = vadd.f32 %v3535, %v3840
  %v4208 = vadd.f32 %v3536, %v3845
  %v4209 = vadd.f32 %v3537, %v3845
  %v4210 = vadd.f32 %v3538, %v3850
  %v4211 = vadd.f32 %v3539, %v3850
  %v4212 = vadd.f32 %v3540, %v3855
  %v4213 = vadd.f32 %v3541, %v3855
  %v4214 = vadd.f32 %v3542, %v3860
  %v4215 = vadd.f32 %v3543, %v3860
  %v4216 = vadd.f32 %v3544, %v3865
  %v4217 = vadd.f32 %v3545, %v3865
  %v4218 = vadd.f32 %v3546, %v3870
  %v4219 = vadd.f32 %v3547, %v3870
  %v4220 = vadd.f32 %v3548, %v3875
  %v4221 = vadd.f32 %v3549, %v3875
  %v4222 = vadd.f32 %v3550, %v3880
  %v4223 = vadd.f32 %v3551, %v3880
  %v4224 = vadd.f32 %v3552, %v3885
  %v4225 = vadd.f32 %v3553, %v3885
  %v4226 = vadd.f32 %v3554, %v3890
  %v4227 = vadd.f32 %v3555, %v3890
  %v4228 = vadd.f32 %v3556, %v3895
  %v4229 = vadd.f32 %v3557, %v3895
  %v4230 = vadd.f32 %v3558, %v3900
  %v4231 = vadd.f32 %v3559, %v3900
  %v4232 = vadd.f32 %v3560, %v3905
  %v4233 = vadd.f32 %v3561, %v3905
  %v4234 = vadd.f32 %v3562, %v3910
  %v4235 = vadd.f32 %v3563, %v3910
  %v4236 = vadd.f32 %v3564, %v3915
  %v4237 = vadd.f32 %v3565, %v3915
  %v4238 = vadd.f32 %v3566, %v3920
  %v4239 = vadd.f32 %v3567, %v3920
  %v4240 = vadd.f32 %v3568, %v3925
  %v4241 = vadd.f32 %v3569, %v3925
  %v4242 = vadd.f32 %v3570, %v3930
  %v4243 = vadd.f32 %v3571, %v3930
  %v4244 = vadd.f32 %v3572, %v3935
  %v4245 = vadd.f32 %v3573, %v3935
  %v4246 = vadd.f32 %v3574, %v3940
  %v4247 = vadd.f32 %v3575, %v3940
  %v4248 = vadd.f32 %v3576, %v3945
  %v4249 = vadd.f32 %v3577, %v3945
  %v4250 = vadd.f32 %v3578, %v3950
  %v4251 = vadd.f32 %v3579, %v3950
  %v4252 = vadd.f32 %v3580, %v3955
  %v4253 = vadd.f32 %v3581, %v3955
  %v4254 = vadd.f32 %v3582, %v3960
  %v4255 = vadd.f32 %v3583, %v3960
  %v4256 = vadd.f32 %v3584, %v3965
  %v4257 = vadd.f32 %v3585, %v3965
  %v4258 = vadd.f32 %v3586, %v3970
  %v4259 = vadd.f32 %v3587, %v3970
  %v4260 = vadd.f32 %v3588, %v3975
  %v4261 = vadd.f32 %v3589, %v3975
  %v4262 = vadd.f32 %v3590, %v3980
  %v4263 = vadd.f32 %v3591, %v3980
  %v4264 = vadd.f32 %v3592, %v3985
  %v4265 = vadd.f32 %v3593, %v3985
  %v4266 = vadd.f32 %v3594, %v3990
  %v4267 = vadd.f32 %v3595, %v3990
  %v4268 = vadd.f32 %v3596, %v3995
  %v4269 = vadd.f32 %v3597, %v3995
  %v4270 = vadd.f32 %v3598, %v4000
  %v4271 = vadd.f32 %v3599, %v4000
  %v4272 = vadd.f32 %v3600, %v4005
  %v4273 = vadd.f32 %v3601, %v4005
  %v4274 = vadd.f32 %v3602, %v4010
  %v4275 = vadd.f32 %v3603, %v4010
  %v4276 = vadd.f32 %v3604, %v4015
  %v4277 = vadd.f32 %v3605, %v4015
  %v4278 = vadd.f32 %v3606, %v4020
  %v4279 = vadd.f32 %v3607, %v4020
  %v4280 = vadd.f32 %v3608, %v4025
  %v4281 = vadd.f32 %v3609, %v4025
  %v4282 = vadd.f32 %v3610, %v4030
  %v4283 = vadd.f32 %v3611, %v4030
  %v4284 = vadd.f32 %v3612, %v4035
  %v4285 = vadd.f32 %v3613, %v4035
  %v4286 = vadd.f32 %v3614, %v4040
  %v4287 = vadd.f32 %v3615, %v4040
  %v4288 = vadd.f32 %v3616, %v4045
  %v4289 = vadd.f32 %v3617, %v4045
  %v4290 = vadd.f32 %v3618, %v4050
  %v4291 = vadd.f32 %v3619, %v4050
  %v4292 = vadd.f32 %v3620, %v4055
  %v4293 = vadd.f32 %v3621, %v4055
  %v4294 = vadd.f32 %v3622, %v4060
  %v4295 = vadd.f32 %v3623, %v4060
  %v4296 = vadd.f32 %v3624, %v4065
  %v4297 = vadd.f32 %v3625, %v4065
  %v4298 = vadd.f32 %v3626, %v4070
  %v4299 = vadd.f32 %v3627, %v4070
  %v4300 = vadd.f32 %v3628, %v4075
  %v4301 = vadd.f32 %v3629, %v4075
  %v4302 = vadd.f32 %v3630, %v4080
  %v4303 = vadd.f32 %v3631, %v4080
  %v4304 = vadd.f32 %v3632, %v4085
  %v4305 = vadd.f32 %v3633, %v4085
  %v4306 = vadd.f32 %v3634, %v4090
  %v4307 = vadd.f32 %v3635, %v4090
  %v4308 = vadd.f32 %v3636, %v4095
  %v4309 = vadd.f32 %v3637, %v4095
  %v4310 = vadd.f32 %v3638, %v4100
  %v4311 = vadd.f32 %v3639, %v4100
  %v4312 = vadd.f32 %v3640, %v4105
  %v4313 = vadd.f32 %v3641, %v4105
  %v4314 = vadd.f32 %v3642, %v4110
  %v4315 = vadd.f32 %v3643, %v4110
  %v4316 = vadd.f32 %v3644, %v4115
  %v4317 = vadd.f32 %v3645, %v4115
  %v4318 = vadd.f32 %v3646, %v4120
  %v4319 = vadd.f32 %v3647, %v4120
  %v4320 = vadd.f32 %v3648, %v4125
  %v4321 = vadd.f32 %v3649, %v4125
  %v4322 = vadd.f32 %v3650, %v4130
  %v4323 = vadd.f32 %v3651, %v4130
  %v4324 = vadd.f32 %v3652, %v4135
  %v4325 = vadd.f32 %v3653, %v4135
  %v4326 = vadd.f32 %v3654, %v4140
  %v4327 = vadd.f32 %v3655, %v4140
  %v4328 = vadd.f32 %v3656, %v4145
  %v4329 = vadd.f32 %v3657, %v4145
  %v4330 = vadd.f32 %v3658, %v4150
  %v4331 = vadd.f32 %v3659, %v4150
  %v4332 = vadd.f32 %v3660, %v4155
  %v4333 = vadd.f32 %v3661, %v4155
  %v4334 = vadd.f32 %v3662, %v4160
  %v4335 = vadd.f32 %v3663, %v4160
  %v4336 = vadd.f32 %v3664, %v4165
  %v4337 = vadd.f32 %v3665, %v4165
  %v4338 = vadd.f32 %v3666, %v4170
  %v4339 = vadd.f32 %v3667, %v4170
  %4340 = vst [vmem:[%s5] sm:$0xff] %v4172
  %4341 = vst.msk [vmem:[%s5 + $0x8] sm:$0xff] %vm48, %v4173
  %4342 = vst [vmem:[%s5 + $0x10] sm:$0xff] %v4174
  %4343 = vst.msk [vmem:[%s5 + $0x18] sm:$0xff] %vm48, %v4175
  %4344 = vst [vmem:[%s5 + $0x20] sm:$0xff] %v4176
  %4345 = vst.msk [vmem:[%s5 + $0x28] sm:$0xff] %vm48, %v4177
  %4346 = vst [vmem:[%s5 + $0x30] sm:$0xff] %v4178
  %4347 = vst.msk [vmem:[%s5 + $0x38] sm:$0xff] %vm48, %v4179
  %4348 = vst [vmem:[%s5 + $0x40] sm:$0xff] %v4180
  %4349 = vst.msk [vmem:[%s5 + $0x48] sm:$0xff] %vm48, %v4181
  %4350 = vst [vmem:[%s5 + $0x50] sm:$0xff] %v4182
  %4351 = vst.msk [vmem:[%s5 + $0x58] sm:$0xff] %vm48, %v4183
  %4352 = vst [vmem:[%s5 + $0x60] sm:$0xff] %v4184
  %4353 = vst.msk [vmem:[%s5 + $0x68] sm:$0xff] %vm48, %v4185
  %4354 = vst [vmem:[%s5 + $0x70] sm:$0xff] %v4186
  %4355 = vst.msk [vmem:[%s5 + $0x78] sm:$0xff] %vm48, %v4187
  %4356 = vst [vmem:[%s5 + $0x80] sm:$0xff] %v4188
  %4357 = vst.msk [vmem:[%s5 + $0x88] sm:$0xff] %vm48, %v4189
  %4358 = vst [vmem:[%s5 + $0x90] sm:$0xff] %v4190
  %4359 = vst.msk [vmem:[%s5 + $0x98] sm:$0xff] %vm48, %v4191
  %4360 = vst [vmem:[%s5 + $0xa0] sm:$0xff] %v4192
  %4361 = vst.msk [vmem:[%s5 + $0xa8] sm:$0xff] %vm48, %v4193
  %4362 = vst [vmem:[%s5 + $0xb0] sm:$0xff] %v4194
  %4363 = vst.msk [vmem:[%s5 + $0xb8] sm:$0xff] %vm48, %v4195
  %4364 = vst [vmem:[%s5 + $0xc0] sm:$0xff] %v4196
  %4365 = vst.msk [vmem:[%s5 + $0xc8] sm:$0xff] %vm48, %v4197
  %4366 = vst [vmem:[%s5 + $0xd0] sm:$0xff] %v4198
  %4367 = vst.msk [vmem:[%s5 + $0xd8] sm:$0xff] %vm48, %v4199
  %4368 = vst [vmem:[%s5 + $0xe0] sm:$0xff] %v4200
  %4369 = vst.msk [vmem:[%s5 + $0xe8] sm:$0xff] %vm48, %v4201
  %4370 = vst [vmem:[%s5 + $0xf0] sm:$0xff] %v4202
  %4371 = vst.msk [vmem:[%s5 + $0xf8] sm:$0xff] %vm48, %v4203
  %4372 = vst [vmem:[%s5 + $0x100] sm:$0xff] %v4204
  %4373 = vst.msk [vmem:[%s5 + $0x108] sm:$0xff] %vm48, %v4205
  %4374 = vst [vmem:[%s5 + $0x110] sm:$0xff] %v4206
  %4375 = vst.msk [vmem:[%s5 + $0x118] sm:$0xff] %vm48, %v4207
  %4376 = vst [vmem:[%s5 + $0x120] sm:$0xff] %v4208
  %4377 = vst.msk [vmem:[%s5 + $0x128] sm:$0xff] %vm48, %v4209
  %4378 = vst [vmem:[%s5 + $0x130] sm:$0xff] %v4210
  %4379 = vst.msk [vmem:[%s5 + $0x138] sm:$0xff] %vm48, %v4211
  %4380 = vst [vmem:[%s5 + $0x140] sm:$0xff] %v4212
  %4381 = vst.msk [vmem:[%s5 + $0x148] sm:$0xff] %vm48, %v4213
  %4382 = vst [vmem:[%s5 + $0x150] sm:$0xff] %v4214
  %4383 = vst.msk [vmem:[%s5 + $0x158] sm:$0xff] %vm48, %v4215
  %4384 = vst [vmem:[%s5 + $0x160] sm:$0xff] %v4216
  %4385 = vst.msk [vmem:[%s5 + $0x168] sm:$0xff] %vm48, %v4217
  %4386 = vst [vmem:[%s5 + $0x170] sm:$0xff] %v4218
  %4387 = vst.msk [vmem:[%s5 + $0x178] sm:$0xff] %vm48, %v4219
  %4388 = vst [vmem:[%s5 + $0x180] sm:$0xff] %v4220
  %4389 = vst.msk [vmem:[%s5 + $0x188] sm:$0xff] %vm48, %v4221
  %4390 = vst [vmem:[%s5 + $0x190] sm:$0xff] %v4222
  %4391 = vst.msk [vmem:[%s5 + $0x198] sm:$0xff] %vm48, %v4223
  %4392 = vst [vmem:[%s5 + $0x1a0] sm:$0xff] %v4224
  %4393 = vst.msk [vmem:[%s5 + $0x1a8] sm:$0xff] %vm48, %v4225
  %4394 = vst [vmem:[%s5 + $0x1b0] sm:$0xff] %v4226
  %4395 = vst.msk [vmem:[%s5 + $0x1b8] sm:$0xff] %vm48, %v4227
  %4396 = vst [vmem:[%s5 + $0x1c0] sm:$0xff] %v4228
  %4397 = vst.msk [vmem:[%s5 + $0x1c8] sm:$0xff] %vm48, %v4229
  %4398 = vst [vmem:[%s5 + $0x1d0] sm:$0xff] %v4230
  %4399 = vst.msk [vmem:[%s5 + $0x1d8] sm:$0xff] %vm48, %v4231
  %4400 = vst [vmem:[%s5 + $0x1e0] sm:$0xff] %v4232
  %4401 = vst.msk [vmem:[%s5 + $0x1e8] sm:$0xff] %vm48, %v4233
  %4402 = vst [vmem:[%s5 + $0x1f0] sm:$0xff] %v4234
  %4403 = vst.msk [vmem:[%s5 + $0x1f8] sm:$0xff] %vm48, %v4235
  %4404 = vst [vmem:[%s5 + $0x200] sm:$0xff] %v4236
  %4405 = vst.msk [vmem:[%s5 + $0x208] sm:$0xff] %vm48, %v4237
  %4406 = vst [vmem:[%s5 + $0x210] sm:$0xff] %v4238
  %4407 = vst.msk [vmem:[%s5 + $0x218] sm:$0xff] %vm48, %v4239
  %4408 = vst [vmem:[%s5 + $0x220] sm:$0xff] %v4240
  %4409 = vst.msk [vmem:[%s5 + $0x228] sm:$0xff] %vm48, %v4241
  %4410 = vst [vmem:[%s5 + $0x230] sm:$0xff] %v4242
  %4411 = vst.msk [vmem:[%s5 + $0x238] sm:$0xff] %vm48, %v4243
  %4412 = vst [vmem:[%s5 + $0x240] sm:$0xff] %v4244
  %4413 = vst.msk [vmem:[%s5 + $0x248] sm:$0xff] %vm48, %v4245
  %4414 = vst [vmem:[%s5 + $0x250] sm:$0xff] %v4246
  %4415 = vst.msk [vmem:[%s5 + $0x258] sm:$0xff] %vm48, %v4247
  %4416 = vst [vmem:[%s5 + $0x260] sm:$0xff] %v4248
  %4417 = vst.msk [vmem:[%s5 + $0x268] sm:$0xff] %vm48, %v4249
  %4418 = vst [vmem:[%s5 + $0x270] sm:$0xff] %v4250
  %4419 = vst.msk [vmem:[%s5 + $0x278] sm:$0xff] %vm48, %v4251
  %4420 = vst [vmem:[%s5 + $0x280] sm:$0xff] %v4252
  %4421 = vst.msk [vmem:[%s5 + $0x288] sm:$0xff] %vm48, %v4253
  %4422 = vst [vmem:[%s5 + $0x290] sm:$0xff] %v4254
  %4423 = vst.msk [vmem:[%s5 + $0x298] sm:$0xff] %vm48, %v4255
  %4424 = vst [vmem:[%s5 + $0x2a0] sm:$0xff] %v4256
  %4425 = vst.msk [vmem:[%s5 + $0x2a8] sm:$0xff] %vm48, %v4257
  %4426 = vst [vmem:[%s5 + $0x2b0] sm:$0xff] %v4258
  %4427 = vst.msk [vmem:[%s5 + $0x2b8] sm:$0xff] %vm48, %v4259
  %4428 = vst [vmem:[%s5 + $0x2c0] sm:$0xff] %v4260
  %4429 = vst.msk [vmem:[%s5 + $0x2c8] sm:$0xff] %vm48, %v4261
  %4430 = vst [vmem:[%s5 + $0x2d0] sm:$0xff] %v4262
  %4431 = vst.msk [vmem:[%s5 + $0x2d8] sm:$0xff] %vm48, %v4263
  %4432 = vst [vmem:[%s5 + $0x2e0] sm:$0xff] %v4264
  %4433 = vst.msk [vmem:[%s5 + $0x2e8] sm:$0xff] %vm48, %v4265
  %4434 = vst [vmem:[%s5 + $0x2f0] sm:$0xff] %v4266
  %4435 = vst.msk [vmem:[%s5 + $0x2f8] sm:$0xff] %vm48, %v4267
  %4436 = vst [vmem:[%s5 + $0x300] sm:$0xff] %v4268
  %4437 = vst.msk [vmem:[%s5 + $0x308] sm:$0xff] %vm48, %v4269
  %4438 = vst [vmem:[%s5 + $0x310] sm:$0xff] %v4270
  %4439 = vst.msk [vmem:[%s5 + $0x318] sm:$0xff] %vm48, %v4271
  %4440 = vst [vmem:[%s5 + $0x320] sm:$0xff] %v4272
  %4441 = vst.msk [vmem:[%s5 + $0x328] sm:$0xff] %vm48, %v4273
  %4442 = vst [vmem:[%s5 + $0x330] sm:$0xff] %v4274
  %4443 = vst.msk [vmem:[%s5 + $0x338] sm:$0xff] %vm48, %v4275
  %4444 = vst [vmem:[%s5 + $0x340] sm:$0xff] %v4276
  %4445 = vst.msk [vmem:[%s5 + $0x348] sm:$0xff] %vm48, %v4277
  %4446 = vst [vmem:[%s5 + $0x350] sm:$0xff] %v4278
  %4447 = vst.msk [vmem:[%s5 + $0x358] sm:$0xff] %vm48, %v4279
  %4448 = vst [vmem:[%s5 + $0x360] sm:$0xff] %v4280
  %4449 = vst.msk [vmem:[%s5 + $0x368] sm:$0xff] %vm48, %v4281
  %4450 = vst [vmem:[%s5 + $0x370] sm:$0xff] %v4282
  %4451 = vst.msk [vmem:[%s5 + $0x378] sm:$0xff] %vm48, %v4283
  %4452 = vst [vmem:[%s5 + $0x380] sm:$0xff] %v4284
  %4453 = vst.msk [vmem:[%s5 + $0x388] sm:$0xff] %vm48, %v4285
  %4454 = vst [vmem:[%s5 + $0x390] sm:$0xff] %v4286
  %4455 = vst.msk [vmem:[%s5 + $0x398] sm:$0xff] %vm48, %v4287
  %4456 = vst [vmem:[%s5 + $0x3a0] sm:$0xff] %v4288
  %4457 = vst.msk [vmem:[%s5 + $0x3a8] sm:$0xff] %vm48, %v4289
  %4458 = vst [vmem:[%s5 + $0x3b0] sm:$0xff] %v4290
  %4459 = vst.msk [vmem:[%s5 + $0x3b8] sm:$0xff] %vm48, %v4291
  %4460 = vst [vmem:[%s5 + $0x3c0] sm:$0xff] %v4292
  %4461 = vst.msk [vmem:[%s5 + $0x3c8] sm:$0xff] %vm48, %v4293
  %4462 = vst [vmem:[%s5 + $0x3d0] sm:$0xff] %v4294
  %4463 = vst.msk [vmem:[%s5 + $0x3d8] sm:$0xff] %vm48, %v4295
  %4464 = vst [vmem:[%s5 + $0x3e0] sm:$0xff] %v4296
  %4465 = vst.msk [vmem:[%s5 + $0x3e8] sm:$0xff] %vm48, %v4297
  %4466 = vst [vmem:[%s5 + $0x3f0] sm:$0xff] %v4298
  %4467 = vst.msk [vmem:[%s5 + $0x3f8] sm:$0xff] %vm48, %v4299
  %4468 = vst [vmem:[%s5 + $0x400] sm:$0xff] %v4300
  %4469 = vst.msk [vmem:[%s5 + $0x408] sm:$0xff] %vm48, %v4301
  %4470 = vst [vmem:[%s5 + $0x410] sm:$0xff] %v4302
  %4471 = vst.msk [vmem:[%s5 + $0x418] sm:$0xff] %vm48, %v4303
  %4472 = vst [vmem:[%s5 + $0x420] sm:$0xff] %v4304
  %4473 = vst.msk [vmem:[%s5 + $0x428] sm:$0xff] %vm48, %v4305
  %4474 = vst [vmem:[%s5 + $0x430] sm:$0xff] %v4306
  %4475 = vst.msk [vmem:[%s5 + $0x438] sm:$0xff] %vm48, %v4307
  %4476 = vst [vmem:[%s5 + $0x440] sm:$0xff] %v4308
  %4477 = vst.msk [vmem:[%s5 + $0x448] sm:$0xff] %vm48, %v4309
  %4478 = vst [vmem:[%s5 + $0x450] sm:$0xff] %v4310
  %4479 = vst.msk [vmem:[%s5 + $0x458] sm:$0xff] %vm48, %v4311
  %4480 = vst [vmem:[%s5 + $0x460] sm:$0xff] %v4312
  %4481 = vst.msk [vmem:[%s5 + $0x468] sm:$0xff] %vm48, %v4313
  %4482 = vst [vmem:[%s5 + $0x470] sm:$0xff] %v4314
  %4483 = vst.msk [vmem:[%s5 + $0x478] sm:$0xff] %vm48, %v4315
  %4484 = vst [vmem:[%s5 + $0x480] sm:$0xff] %v4316
  %4485 = vst.msk [vmem:[%s5 + $0x488] sm:$0xff] %vm48, %v4317
  %4486 = vst [vmem:[%s5 + $0x490] sm:$0xff] %v4318
  %4487 = vst.msk [vmem:[%s5 + $0x498] sm:$0xff] %vm48, %v4319
  %4488 = vst [vmem:[%s5 + $0x4a0] sm:$0xff] %v4320
  %4489 = vst.msk [vmem:[%s5 + $0x4a8] sm:$0xff] %vm48, %v4321
  %4490 = vst [vmem:[%s5 + $0x4b0] sm:$0xff] %v4322
  %4491 = vst.msk [vmem:[%s5 + $0x4b8] sm:$0xff] %vm48, %v4323
  %4492 = vst [vmem:[%s5 + $0x4c0] sm:$0xff] %v4324
  %4493 = vst.msk [vmem:[%s5 + $0x4c8] sm:$0xff] %vm48, %v4325
  %4494 = vst [vmem:[%s5 + $0x4d0] sm:$0xff] %v4326
  %4495 = vst.msk [vmem:[%s5 + $0x4d8] sm:$0xff] %vm48, %v4327
  %4496 = vst [vmem:[%s5 + $0x4e0] sm:$0xff] %v4328
  %4497 = vst.msk [vmem:[%s5 + $0x4e8] sm:$0xff] %vm48, %v4329
  %4498 = vst [vmem:[%s5 + $0x4f0] sm:$0xff] %v4330
  %4499 = vst.msk [vmem:[%s5 + $0x4f8] sm:$0xff] %vm48, %v4331
  %4500 = vst [vmem:[%s5 + $0x500] sm:$0xff] %v4332
  %4501 = vst.msk [vmem:[%s5 + $0x508] sm:$0xff] %vm48, %v4333
  %4502 = vst [vmem:[%s5 + $0x510] sm:$0xff] %v4334
  %4503 = vst.msk [vmem:[%s5 + $0x518] sm:$0xff] %vm48, %v4335
  %4504 = vst [vmem:[%s5 + $0x520] sm:$0xff] %v4336
  %4505 = vst.msk [vmem:[%s5 + $0x528] sm:$0xff] %vm48, %v4337
  %4506 = vst [vmem:[%s5 + $0x530] sm:$0xff] %v4338
  %4507 = vst.msk [vmem:[%s5 + $0x538] sm:$0xff] %vm48, %v4339
  // Predicated region
  $region22: #{tpu_custom_call.1} parent=0 // pred_check
    _
  $region23: #{tpu_custom_call.1} parent=0 // pred_check_branch
    %4509 = sbr.rel (0) target = $region25
  $region24: #{tpu_custom_call.1} parent=0 // pred_region
    _
  $region25: #{tpu_custom_call.1} parent=0 // pred_fallthru
    _
  // Predicated region
  $region26: #{tpu_custom_call.1} parent=0 // pred_check
    _
  $region27: #{tpu_custom_call.1} parent=0 // pred_check_branch
    %4511 = sbr.rel (0) target = $region29
  $region28: #{tpu_custom_call.1} parent=0 // pred_region
    _
  $region29: #{tpu_custom_call.1} parent=0 // pred_fallthru
    _

</llo_original>
